<compile_context>
chip_gen: v5e
topology: v5e:2x2
jax: 0.10.0
libtpu: 0.0.40
codegen_flags: <defaults>
</compile_context>

<pallas_src>
import functools

import jax
import jax.numpy as jnp
from jax.experimental import pallas as pl
from jax.experimental.pallas import tpu as pltpu

HIDDEN = 768       # BERT hidden size (EnvPredictor in_features=768)
BOTTLENECK = 1024  # EnvPredictor bottleneck_dim
NUM_CLASSES = 2
CPAD = 128         # packed-head lane width (one full lane group)

# lane layout inside the packed [B, CPAD] output
DD_LO, DD_HI = 0, 2   # EnvPredictor logits (domain_dependant), already /temp
DC_LO, DC_HI = 2, 4   # domain_classifier logits
CI_LO, CI_HI = 4, 6   # domain_invariant_predictor (class) logits


def _lirr_kernel(x_ref,             # [TM, HIDDEN] f32  pooled BERT features
                 wfe_ref, bfe_ref,  # feature extractor Linear(768->768): bf16 W, f32 b
                 w1_ref, b1_ref,    # bottleneck Linear(769->1024): bf16 W[:768], f32 (b + env*W[768])
                 w2_ref,            # fc head packed [1024, CPAD] bf16, lanes 0:2, pre-scaled by 1/temp
                 wh_ref,            # dc/di heads packed [768, CPAD] bf16, lanes 2:4 / 4:6
                 bh_ref,            # packed head bias [1, CPAD] f32
                 out_ref):          # [TM, CPAD] f32
    x = x_ref[...]

    # feature_extractor: Linear + ReLU (bf16 MXU operands, f32 accumulate, f32 elementwise)
    feat = jnp.dot(x.astype(jnp.bfloat16), wfe_ref[...],
                   preferred_element_type=jnp.float32) + bfe_ref[...]
    feat = jnp.maximum(feat, 0.0)
    feat_bf = feat.astype(jnp.bfloat16)

    # EnvPredictor bottleneck.  cat([feat, env]) @ W1 == feat @ W1[:768] + env * W1[768];
    # the env term (compile-time const) is folded into b1 on the host.
    # Dropout(p=0.5) is eval-mode identity.
    h = jnp.dot(feat_bf, w1_ref[...], preferred_element_type=jnp.float32) + b1_ref[...]
    h = jnp.maximum(h, 0.0)

    # All three heads in one lane-dense store:
    #   lanes 0:2 = fc(h)/temp   (1/temp folded into w2 / bias)
    #   lanes 2:4 = domain_classifier(feat)   (ReverseLayerF is identity in forward)
    #   lanes 4:6 = domain_invariant_predictor(feat)
    out = (jnp.dot(h.astype(jnp.bfloat16), w2_ref[...], preferred_element_type=jnp.float32)
           + jnp.dot(feat_bf, wh_ref[...], preferred_element_type=jnp.float32)
           + bh_ref[...])
    out_ref[...] = out


def pack_params(params, env, temp):
    """Host/trace-time folding & packing (env, temp are Python constants)."""
    env_val = 0.0 if env == 'src' else 1.0
    inv_temp = 1.0 / float(temp)
    bf16 = lambda a: a.astype(jnp.bfloat16)

    # fold env column of the 769-wide bottleneck weight into its bias
    b1_eff = params['b1'] + env_val * params['w1e']                      # [1, BOTTLENECK] f32

    # pack the 2-wide heads into lane-dense slabs (unused lanes are zero)
    w2 = jnp.zeros((BOTTLENECK, CPAD), jnp.float32)
    w2 = w2.at[:, DD_LO:DD_HI].set(params['w_fc'] * inv_temp)            # fc / temp
    wh = jnp.zeros((HIDDEN, CPAD), jnp.float32)
    wh = wh.at[:, DC_LO:DC_HI].set(params['wdc'])
    wh = wh.at[:, CI_LO:CI_HI].set(params['wdi'])
    bh = jnp.zeros((1, CPAD), jnp.float32)
    bh = bh.at[:, DD_LO:DD_HI].set(params['b_fc'] * inv_temp)
    bh = bh.at[:, DC_LO:DC_HI].set(params['bdc'])
    bh = bh.at[:, CI_LO:CI_HI].set(params['bdi'])

    return {
        'wfe': bf16(params['wfe']), 'bfe': params['bfe'],
        'w1': bf16(params['w1']), 'b1': b1_eff,
        'w2': bf16(w2), 'wh': bf16(wh), 'bh': bh,
    }


@functools.partial(jax.jit, static_argnames=("env", "temp"))
def lirr_forward(pooled, params, env="src", temp=1.0):
    """pooled: [B, HIDDEN] f32.
    Returns (domain_dependant, domain_classifier, class) logits, each [B, 2]."""
    B = pooled.shape[0]

    # sublane-aligned batch tile; pad the batch so the grid tiles it exactly
    if B <= 128:
        tm = ((B + 7) // 8) * 8
    else:
        tm = 128
    Bp = ((B + tm - 1) // tm) * tm
    x = pooled.astype(jnp.float32)
    if Bp != B:
        x = jnp.pad(x, ((0, Bp - B), (0, 0)))

    p = pack_params(params, env, temp)

    x_spec = pl.BlockSpec((tm, HIDDEN), lambda i: (i, 0))
    w_spec = lambda shape: pl.BlockSpec(shape, lambda i: (0, 0))   # weights VMEM-resident

    out = pl.pallas_call(
        _lirr_kernel,
        grid=(Bp // tm,),
        in_specs=[
            x_spec,
            w_spec((HIDDEN, HIDDEN)), w_spec((1, HIDDEN)),
            w_spec((HIDDEN, BOTTLENECK)), w_spec((1, BOTTLENECK)),
            w_spec((BOTTLENECK, CPAD)),
            w_spec((HIDDEN, CPAD)),
            w_spec((1, CPAD)),
        ],
        out_specs=pl.BlockSpec((tm, CPAD), lambda i: (i, 0)),
        out_shape=jax.ShapeDtypeStruct((Bp, CPAD), jnp.float32),
        compiler_params=pltpu.CompilerParams(
            dimension_semantics=("parallel",),
            vmem_limit_bytes=32 * 1024 * 1024,   # real footprint ~6-7 MiB; fits v7x's 64 MiB
        ),
    )(x, p['wfe'], p['bfe'], p['w1'], p['b1'], p['w2'], p['wh'], p['bh'])

    dd = out[:B, DD_LO:DD_HI]
    dc = out[:B, DC_LO:DC_HI]
    ci = out[:B, CI_LO:CI_HI]
    return dd, dc, ci


def lirr_forward_ref(pooled, params, env="src", temp=1.0):
    """Pure-JAX reference with the same bf16 weight casts as the kernel."""
    p = pack_params(params, env, temp)
    x = pooled.astype(jnp.bfloat16)
    feat = jnp.dot(x, p['wfe'], preferred_element_type=jnp.float32) + p['bfe']
    feat = jnp.maximum(feat, 0.0)
    feat_bf = feat.astype(jnp.bfloat16)
    h = jnp.dot(feat_bf, p['w1'], preferred_element_type=jnp.float32) + p['b1']
    h = jnp.maximum(h, 0.0)
    out = (jnp.dot(h.astype(jnp.bfloat16), p['w2'], preferred_element_type=jnp.float32)
           + jnp.dot(feat_bf, p['wh'], preferred_element_type=jnp.float32)
           + p['bh'])
    return out[:, DD_LO:DD_HI], out[:, DC_LO:DC_HI], out[:, CI_LO:CI_HI]


def bert_stub_pool(input_data, emb_table):
    # TODO(synk): the pretrained 'deepset/gbert-base' encoder cannot be reproduced
    # in-script; stand-in = deterministic token embedding + attention-masked mean pooling.
    input_ids = input_data[:, 0]                              # [B, S] int32
    attn_mask = input_data[:, 1].astype(jnp.float32)          # [B, S]
    emb = emb_table[input_ids]                                # [B, S, HIDDEN]
    pooled = jnp.sum(emb * attn_mask[..., None], axis=1) / jnp.maximum(
        jnp.sum(attn_mask, axis=1, keepdims=True), 1.0)
    return pooled.astype(jnp.float32)


def init_params(key):
    ks = jax.random.split(key, 8)
    s = 0.02
    zeros = lambda shp: jnp.zeros(shp, jnp.float32)
    nrm = lambda k, shp: (s * jax.random.normal(k, shp)).astype(jnp.float32)

    return {
        # feature extractor Linear(768 -> 768)
        'wfe': nrm(ks[0], (HIDDEN, HIDDEN)), 'bfe': zeros((1, HIDDEN)),
        # EnvPredictor bottleneck Linear(769 -> 1024): 768-row part + env row
        'w1': nrm(ks[1], (HIDDEN, BOTTLENECK)),
        'w1e': nrm(ks[2], (1, BOTTLENECK)),
        'b1': zeros((1, BOTTLENECK)),
        # EnvPredictor fc Linear(1024 -> 2)
        'w_fc': nrm(ks[3], (BOTTLENECK, NUM_CLASSES)), 'b_fc': zeros((1, NUM_CLASSES)),
        # domain_classifier Linear(768 -> 2)
        'wdc': nrm(ks[4], (HIDDEN, NUM_CLASSES)), 'bdc': zeros((1, NUM_CLASSES)),
        # domain_invariant_predictor Linear(768 -> 2)
        'wdi': nrm(ks[5], (HIDDEN, NUM_CLASSES)), 'bdi': zeros((1, NUM_CLASSES)),
        # BERT stand-in embedding table
        'emb': nrm(ks[6], (64, HIDDEN)),
    }


if __name__ == "__main__":
    key = jax.random.PRNGKey(0)
    params = init_params(key)

    B, S = 8, 16
    k_ids, _ = jax.random.split(jax.random.PRNGKey(0))
    input_ids = jax.random.randint(k_ids, (B, S), 0, 64, dtype=jnp.int32)
    attn_mask = jnp.ones((B, S), jnp.int32).at[:, S // 2:].set(
        jnp.tile(jnp.array([1, 0, 1, 0, 1, 1, 0, 1], jnp.int32), (B, 1)))
    input_data = jnp.stack([input_ids, attn_mask], axis=1)    # [B, 2, S] ~ (ids, mask)

    pooled = bert_stub_pool(input_data, params['emb'])        # [B, 768]

    dd, dc, ci = lirr_forward(pooled, params, env='src', temp=1.0)
    jax.block_until_ready((dd, dc, ci))

    assert dd.shape == (B, NUM_CLASSES)
    assert dc.shape == (B, NUM_CLASSES)
    assert ci.shape == (B, NUM_CLASSES)
    assert bool(jnp.all(jnp.isfinite(dd)) & jnp.all(jnp.isfinite(dc)) & jnp.all(jnp.isfinite(ci)))

    # correctness check against a pure-JAX reference using identical bf16 weight casts
    rdd, rdc, rci = lirr_forward_ref(pooled, params, env='src', temp=1.0)
    for got, ref in ((dd, rdd), (dc, rdc), (ci, rci)):
        assert bool(jnp.allclose(got, ref, atol=1e-3, rtol=1e-3))

    print("KERNEL_OK")
</pallas_src>

<mosaic_0001>
module attributes {stable_mosaic.version = 11 : i64} {
  func.func @_lirr_kernel(%arg0: i32, %arg1: memref<8x768xf32, #tpu.memory_space<vmem>>, %arg2: memref<768x768xbf16, #tpu.memory_space<vmem>>, %arg3: memref<1x768xf32, #tpu.memory_space<vmem>>, %arg4: memref<768x1024xbf16, #tpu.memory_space<vmem>>, %arg5: memref<1x1024xf32, #tpu.memory_space<vmem>>, %arg6: memref<1024x128xbf16, #tpu.memory_space<vmem>>, %arg7: memref<768x128xbf16, #tpu.memory_space<vmem>>, %arg8: memref<1x128xf32, #tpu.memory_space<vmem>>, %arg9: memref<8x128xf32, #tpu.memory_space<vmem>>) attributes {dimension_semantics = [#tpu.dimension_semantics<parallel>], iteration_bounds = array<i64: 1>, scalar_prefetch = 0 : i64, scratch_operands = 0 : i64, tpu.core_type = #tpu.core_type<tc>, window_params = [{transform_indices = @transform_0, window_bounds = array<i64: 8, 768>}, {pipeline_mode = #tpu.pipeline_mode<synchronous>, transform_indices = @transform_1, window_bounds = array<i64: 768, 768>}, {pipeline_mode = #tpu.pipeline_mode<synchronous>, transform_indices = @transform_2, window_bounds = array<i64: 1, 768>}, {pipeline_mode = #tpu.pipeline_mode<synchronous>, transform_indices = @transform_3, window_bounds = array<i64: 768, 1024>}, {pipeline_mode = #tpu.pipeline_mode<synchronous>, transform_indices = @transform_4, window_bounds = array<i64: 1, 1024>}, {pipeline_mode = #tpu.pipeline_mode<synchronous>, transform_indices = @transform_5, window_bounds = array<i64: 1024, 128>}, {pipeline_mode = #tpu.pipeline_mode<synchronous>, transform_indices = @transform_6, window_bounds = array<i64: 768, 128>}, {pipeline_mode = #tpu.pipeline_mode<synchronous>, transform_indices = @transform_7, window_bounds = array<i64: 1, 128>}, {transform_indices = @transform_8, window_bounds = array<i64: 8, 128>}]} {
    %c0 = arith.constant 0 : index
    %c0_0 = arith.constant 0 : index
    %0 = vector.load %arg1[%c0, %c0_0] : memref<8x768xf32, #tpu.memory_space<vmem>>, vector<8x768xf32>
    %1 = arith.truncf %0 : vector<8x768xf32> to vector<8x768xbf16>
    %c0_1 = arith.constant 0 : index
    %c0_2 = arith.constant 0 : index
    %2 = vector.load %arg2[%c0_1, %c0_2] : memref<768x768xbf16, #tpu.memory_space<vmem>>, vector<768x768xbf16>
    %cst = arith.constant dense<0.000000e+00> : vector<8x768xf32>
    %3 = tpu.matmul %1, %2, %cst {dimension_numbers = #tpu.dot_dimension_numbers<[1], [0], [0], [1], [0, 0, 1, 1], [], []>} : vector<8x768xbf16>, vector<768x768xbf16>, vector<8x768xf32> -> vector<8x768xf32>
    %c0_3 = arith.constant 0 : index
    %c0_4 = arith.constant 0 : index
    %4 = vector.load %arg3[%c0_3, %c0_4] : memref<1x768xf32, #tpu.memory_space<vmem>>, vector<1x768xf32>
    %5 = vector.broadcast %4 : vector<1x768xf32> to vector<8x768xf32>
    %6 = arith.addf %3, %5 : vector<8x768xf32>
    %cst_5 = arith.constant 0.000000e+00 : f32
    %7 = vector.broadcast %cst_5 : f32 to vector<8x768xf32>
    %8 = arith.maximumf %6, %7 : vector<8x768xf32>
    %9 = arith.truncf %8 : vector<8x768xf32> to vector<8x768xbf16>
    %c0_6 = arith.constant 0 : index
    %c0_7 = arith.constant 0 : index
    %10 = vector.load %arg4[%c0_6, %c0_7] : memref<768x1024xbf16, #tpu.memory_space<vmem>>, vector<768x1024xbf16>
    %cst_8 = arith.constant dense<0.000000e+00> : vector<8x1024xf32>
    %11 = tpu.matmul %9, %10, %cst_8 {dimension_numbers = #tpu.dot_dimension_numbers<[1], [0], [0], [1], [0, 0, 1, 1], [], []>} : vector<8x768xbf16>, vector<768x1024xbf16>, vector<8x1024xf32> -> vector<8x1024xf32>
    %c0_9 = arith.constant 0 : index
    %c0_10 = arith.constant 0 : index
    %12 = vector.load %arg5[%c0_9, %c0_10] : memref<1x1024xf32, #tpu.memory_space<vmem>>, vector<1x1024xf32>
    %13 = vector.broadcast %12 : vector<1x1024xf32> to vector<8x1024xf32>
    %14 = arith.addf %11, %13 : vector<8x1024xf32>
    %cst_11 = arith.constant 0.000000e+00 : f32
    %15 = vector.broadcast %cst_11 : f32 to vector<8x1024xf32>
    %16 = arith.maximumf %14, %15 : vector<8x1024xf32>
    %17 = arith.truncf %16 : vector<8x1024xf32> to vector<8x1024xbf16>
    %c0_12 = arith.constant 0 : index
    %c0_13 = arith.constant 0 : index
    %18 = vector.load %arg6[%c0_12, %c0_13] : memref<1024x128xbf16, #tpu.memory_space<vmem>>, vector<1024x128xbf16>
    %cst_14 = arith.constant dense<0.000000e+00> : vector<8x128xf32>
    %19 = tpu.matmul %17, %18, %cst_14 {dimension_numbers = #tpu.dot_dimension_numbers<[1], [0], [0], [1], [0, 0, 1, 1], [], []>} : vector<8x1024xbf16>, vector<1024x128xbf16>, vector<8x128xf32> -> vector<8x128xf32>
    %c0_15 = arith.constant 0 : index
    %c0_16 = arith.constant 0 : index
    %20 = vector.load %arg7[%c0_15, %c0_16] : memref<768x128xbf16, #tpu.memory_space<vmem>>, vector<768x128xbf16>
    %cst_17 = arith.constant dense<0.000000e+00> : vector<8x128xf32>
    %21 = tpu.matmul %9, %20, %cst_17 {dimension_numbers = #tpu.dot_dimension_numbers<[1], [0], [0], [1], [0, 0, 1, 1], [], []>} : vector<8x768xbf16>, vector<768x128xbf16>, vector<8x128xf32> -> vector<8x128xf32>
    %22 = arith.addf %19, %21 : vector<8x128xf32>
    %c0_18 = arith.constant 0 : index
    %c0_19 = arith.constant 0 : index
    %23 = vector.load %arg8[%c0_18, %c0_19] : memref<1x128xf32, #tpu.memory_space<vmem>>, vector<1x128xf32>
    %24 = vector.broadcast %23 : vector<1x128xf32> to vector<8x128xf32>
    %25 = arith.addf %22, %24 : vector<8x128xf32>
    %c0_20 = arith.constant 0 : index
    %c0_21 = arith.constant 0 : index
    %26 = vector.load %arg9[%c0_20, %c0_21] : memref<8x128xf32, #tpu.memory_space<vmem>>, vector<8x128xf32>
    tpu.vector_store %arg9[%c0_20, %c0_21], %25 {strides = array<i32>} : memref<8x128xf32, #tpu.memory_space<vmem>>, vector<8x128xf32>,
    return
  }
  func.func @transform_0(%arg0: i32) -> (i32, i32) {
    %c0_i32 = arith.constant 0 : i32
    %c0_i32_0 = arith.constant 0 : i32
    return %arg0, %c0_i32 : i32, i32
  }
  func.func @transform_1(%arg0: i32) -> (i32, i32) {
    %c0_i32 = arith.constant 0 : i32
    %c0_i32_0 = arith.constant 0 : i32
    %c0_i32_1 = arith.constant 0 : i32
    return %c0_i32, %c0_i32_0 : i32, i32
  }
  func.func @transform_2(%arg0: i32) -> (i32, i32) {
    %c0_i32 = arith.constant 0 : i32
    %c0_i32_0 = arith.constant 0 : i32
    %c0_i32_1 = arith.constant 0 : i32
    return %c0_i32, %c0_i32_0 : i32, i32
  }
  func.func @transform_3(%arg0: i32) -> (i32, i32) {
    %c0_i32 = arith.constant 0 : i32
    %c0_i32_0 = arith.constant 0 : i32
    %c0_i32_1 = arith.constant 0 : i32
    return %c0_i32, %c0_i32_0 : i32, i32
  }
  func.func @transform_4(%arg0: i32) -> (i32, i32) {
    %c0_i32 = arith.constant 0 : i32
    %c0_i32_0 = arith.constant 0 : i32
    %c0_i32_1 = arith.constant 0 : i32
    return %c0_i32, %c0_i32_0 : i32, i32
  }
  func.func @transform_5(%arg0: i32) -> (i32, i32) {
    %c0_i32 = arith.constant 0 : i32
    %c0_i32_0 = arith.constant 0 : i32
    %c0_i32_1 = arith.constant 0 : i32
    return %c0_i32, %c0_i32_0 : i32, i32
  }
  func.func @transform_6(%arg0: i32) -> (i32, i32) {
    %c0_i32 = arith.constant 0 : i32
    %c0_i32_0 = arith.constant 0 : i32
    %c0_i32_1 = arith.constant 0 : i32
    return %c0_i32, %c0_i32_0 : i32, i32
  }
  func.func @transform_7(%arg0: i32) -> (i32, i32) {
    %c0_i32 = arith.constant 0 : i32
    %c0_i32_0 = arith.constant 0 : i32
    %c0_i32_1 = arith.constant 0 : i32
    return %c0_i32, %c0_i32_0 : i32, i32
  }
  func.func @transform_8(%arg0: i32) -> (i32, i32) {
    %c0_i32 = arith.constant 0 : i32
    %c0_i32_0 = arith.constant 0 : i32
    return %arg0, %c0_i32 : i32, i32
  }
}

</mosaic_0001>

<llo_original>
// kernel: lirr_forward.1
$region0: #{lirr_forward.1}
  #allocation0 [shape = 'u32[]', space=smem, size = 0x4, offset = 0x4, fixed_abs, tag = 'smem constant byte address 0x4 - core index']
  #allocation1 [shape = 'u32[72,128]{1,0:T(1,128)}', space=vmem, size = 0x9000, scoped, tag = 'internal scratch']
  %s0 = inlined_call_operand.vmem [shape: f32[8,768], index: 0, kind: input, shape index: {}]
  %s1 = inlined_call_operand.vmem [shape: bf16[768,768], index: 1, kind: input, shape index: {}]
  %s2 = inlined_call_operand.vmem [shape: f32[1,768], index: 2, kind: input, shape index: {}]
  %s3 = inlined_call_operand.vmem [shape: bf16[768,1024], index: 3, kind: input, shape index: {}]
  %s4 = inlined_call_operand.vmem [shape: f32[1,1024], index: 4, kind: input, shape index: {}]
  %s5 = inlined_call_operand.vmem [shape: bf16[1024,128], index: 5, kind: input, shape index: {}]
  %s6 = inlined_call_operand.vmem [shape: bf16[768,128], index: 6, kind: input, shape index: {}]
  %s7 = inlined_call_operand.vmem [shape: f32[1,128], index: 7, kind: input, shape index: {}]
  %s8 = inlined_call_operand.vmem [shape: f32[8,128], index: 8, kind: output, shape index: {}]
  %s9 = sld [smem:[#allocation0]]
  $region42: #{lirr_forward.1} parent=0
    _
  %s11 = ssub.s32 1, %s9
  %s12 = scalar_select 0, %s11, %s9
  // Predicated region
  $region2: #{lirr_forward.1} parent=0 // pred_check
    _
  $region3: #{lirr_forward.1} parent=0 // pred_check_branch
    %14 = sbr.rel (0) target = $region5
  $region4: #{lirr_forward.1} parent=0 // pred_region
    _
  $region5: #{lirr_forward.1} parent=0 // pred_fallthru
    _
  // Predicated region
  $region6: #{lirr_forward.1} parent=0 // pred_check
    _
  $region7: #{lirr_forward.1} parent=0 // pred_check_branch
    %16 = sbr.rel (0) target = $region9
  $region8: #{lirr_forward.1} parent=0 // pred_region
    _
  $region9: #{lirr_forward.1} parent=0 // pred_fallthru
    _
  // Predicated region
  $region10: #{lirr_forward.1} parent=0 // pred_check
    _
  $region11: #{lirr_forward.1} parent=0 // pred_check_branch
    %18 = sbr.rel (0) target = $region13
  $region12: #{lirr_forward.1} parent=0 // pred_region
    _
  $region13: #{lirr_forward.1} parent=0 // pred_fallthru
    _
  // Predicated region
  $region14: #{lirr_forward.1} parent=0 // pred_check
    _
  $region15: #{lirr_forward.1} parent=0 // pred_check_branch
    %20 = sbr.rel (0) target = $region17
  $region16: #{lirr_forward.1} parent=0 // pred_region
    _
  $region17: #{lirr_forward.1} parent=0 // pred_fallthru
    _
  // Predicated region
  $region18: #{lirr_forward.1} parent=0 // pred_check
    _
  $region19: #{lirr_forward.1} parent=0 // pred_check_branch
    %22 = sbr.rel (0) target = $region21
  $region20: #{lirr_forward.1} parent=0 // pred_region
    _
  $region21: #{lirr_forward.1} parent=0 // pred_fallthru
    _
  // Predicated region
  $region22: #{lirr_forward.1} parent=0 // pred_check
    _
  $region23: #{lirr_forward.1} parent=0 // pred_check_branch
    %24 = sbr.rel (0) target = $region25
  $region24: #{lirr_forward.1} parent=0 // pred_region
    _
  $region25: #{lirr_forward.1} parent=0 // pred_fallthru
    _
  // Predicated region
  $region26: #{lirr_forward.1} parent=0 // pred_check
    _
  $region27: #{lirr_forward.1} parent=0 // pred_check_branch
    %26 = sbr.rel (0) target = $region29
  $region28: #{lirr_forward.1} parent=0 // pred_region
    _
  $region29: #{lirr_forward.1} parent=0 // pred_fallthru
    _
  // Predicated region
  $region30: #{lirr_forward.1} parent=0 // pred_check
    _
  $region31: #{lirr_forward.1} parent=0 // pred_check_branch
    %28 = sbr.rel (0) target = $region33
  $region32: #{lirr_forward.1} parent=0 // pred_region
    _
  $region33: #{lirr_forward.1} parent=0 // pred_fallthru
    _
  %v29 = vld [vmem:[%s0] sm:$0xff]
  %v30 = vld [vmem:[%s0 + $0x8] sm:$0xff]
  %v31 = vld [vmem:[%s0 + $0x10] sm:$0xff]
  %v32 = vld [vmem:[%s0 + $0x18] sm:$0xff]
  %v33 = vld [vmem:[%s0 + $0x20] sm:$0xff]
  %v34 = vld [vmem:[%s0 + $0x28] sm:$0xff]
  %v35 = vpack.c.bf16 %v29, %v29
  %v36 = vpack.c.bf16 %v30, %v30
  %v37 = vpack.c.bf16 %v31, %v31
  %v38 = vpack.c.bf16 %v32, %v32
  %v39 = vpack.c.bf16 %v33, %v33
  %v40 = vpack.c.bf16 %v34, %v34
  %v41 = vld [vmem:[%s1] sm:$0xff]
  %v42 = vld [vmem:[%s1 + $0x8] sm:$0xff]
  %v43 = vld [vmem:[%s1 + $0x10] sm:$0xff]
  %v44 = vld [vmem:[%s1 + $0x18] sm:$0xff]
  %v45 = vld [vmem:[%s1 + $0x20] sm:$0xff]
  %v46 = vld [vmem:[%s1 + $0x28] sm:$0xff]
  %v47 = vld [vmem:[%s1 + $0x30] sm:$0xff]
  %v48 = vld [vmem:[%s1 + $0x38] sm:$0xff]
  %v49 = vld [vmem:[%s1 + $0x40] sm:$0xff]
  %v50 = vld [vmem:[%s1 + $0x48] sm:$0xff]
  %v51 = vld [vmem:[%s1 + $0x50] sm:$0xff]
  %v52 = vld [vmem:[%s1 + $0x58] sm:$0xff]
  %v53 = vld [vmem:[%s1 + $0x60] sm:$0xff]
  %v54 = vld [vmem:[%s1 + $0x68] sm:$0xff]
  %v55 = vld [vmem:[%s1 + $0x70] sm:$0xff]
  %v56 = vld [vmem:[%s1 + $0x78] sm:$0xff]
  %v57 = vld [vmem:[%s1 + $0x80] sm:$0xff]
  %v58 = vld [vmem:[%s1 + $0x88] sm:$0xff]
  %v59 = vld [vmem:[%s1 + $0x90] sm:$0xff]
  %v60 = vld [vmem:[%s1 + $0x98] sm:$0xff]
  %v61 = vld [vmem:[%s1 + $0xa0] sm:$0xff]
  %v62 = vld [vmem:[%s1 + $0xa8] sm:$0xff]
  %v63 = vld [vmem:[%s1 + $0xb0] sm:$0xff]
  %v64 = vld [vmem:[%s1 + $0xb8] sm:$0xff]
  %v65 = vld [vmem:[%s1 + $0xc0] sm:$0xff]
  %v66 = vld [vmem:[%s1 + $0xc8] sm:$0xff]
  %v67 = vld [vmem:[%s1 + $0xd0] sm:$0xff]
  %v68 = vld [vmem:[%s1 + $0xd8] sm:$0xff]
  %v69 = vld [vmem:[%s1 + $0xe0] sm:$0xff]
  %v70 = vld [vmem:[%s1 + $0xe8] sm:$0xff]
  %v71 = vld [vmem:[%s1 + $0xf0] sm:$0xff]
  %v72 = vld [vmem:[%s1 + $0xf8] sm:$0xff]
  %v73 = vld [vmem:[%s1 + $0x100] sm:$0xff]
  %v74 = vld [vmem:[%s1 + $0x108] sm:$0xff]
  %v75 = vld [vmem:[%s1 + $0x110] sm:$0xff]
  %v76 = vld [vmem:[%s1 + $0x118] sm:$0xff]
  %v77 = vld [vmem:[%s1 + $0x120] sm:$0xff]
  %v78 = vld [vmem:[%s1 + $0x128] sm:$0xff]
  %v79 = vld [vmem:[%s1 + $0x130] sm:$0xff]
  %v80 = vld [vmem:[%s1 + $0x138] sm:$0xff]
  %v81 = vld [vmem:[%s1 + $0x140] sm:$0xff]
  %v82 = vld [vmem:[%s1 + $0x148] sm:$0xff]
  %v83 = vld [vmem:[%s1 + $0x150] sm:$0xff]
  %v84 = vld [vmem:[%s1 + $0x158] sm:$0xff]
  %v85 = vld [vmem:[%s1 + $0x160] sm:$0xff]
  %v86 = vld [vmem:[%s1 + $0x168] sm:$0xff]
  %v87 = vld [vmem:[%s1 + $0x170] sm:$0xff]
  %v88 = vld [vmem:[%s1 + $0x178] sm:$0xff]
  %v89 = vld [vmem:[%s1 + $0x180] sm:$0xff]
  %v90 = vld [vmem:[%s1 + $0x188] sm:$0xff]
  %v91 = vld [vmem:[%s1 + $0x190] sm:$0xff]
  %v92 = vld [vmem:[%s1 + $0x198] sm:$0xff]
  %v93 = vld [vmem:[%s1 + $0x1a0] sm:$0xff]
  %v94 = vld [vmem:[%s1 + $0x1a8] sm:$0xff]
  %v95 = vld [vmem:[%s1 + $0x1b0] sm:$0xff]
  %v96 = vld [vmem:[%s1 + $0x1b8] sm:$0xff]
  %v97 = vld [vmem:[%s1 + $0x1c0] sm:$0xff]
  %v98 = vld [vmem:[%s1 + $0x1c8] sm:$0xff]
  %v99 = vld [vmem:[%s1 + $0x1d0] sm:$0xff]
  %v100 = vld [vmem:[%s1 + $0x1d8] sm:$0xff]
  %v101 = vld [vmem:[%s1 + $0x1e0] sm:$0xff]
  %v102 = vld [vmem:[%s1 + $0x1e8] sm:$0xff]
  %v103 = vld [vmem:[%s1 + $0x1f0] sm:$0xff]
  %v104 = vld [vmem:[%s1 + $0x1f8] sm:$0xff]
  %v105 = vld [vmem:[%s1 + $0x200] sm:$0xff]
  %v106 = vld [vmem:[%s1 + $0x208] sm:$0xff]
  %v107 = vld [vmem:[%s1 + $0x210] sm:$0xff]
  %v108 = vld [vmem:[%s1 + $0x218] sm:$0xff]
  %v109 = vld [vmem:[%s1 + $0x220] sm:$0xff]
  %v110 = vld [vmem:[%s1 + $0x228] sm:$0xff]
  %v111 = vld [vmem:[%s1 + $0x230] sm:$0xff]
  %v112 = vld [vmem:[%s1 + $0x238] sm:$0xff]
  %v113 = vld [vmem:[%s1 + $0x240] sm:$0xff]
  %v114 = vld [vmem:[%s1 + $0x248] sm:$0xff]
  %v115 = vld [vmem:[%s1 + $0x250] sm:$0xff]
  %v116 = vld [vmem:[%s1 + $0x258] sm:$0xff]
  %v117 = vld [vmem:[%s1 + $0x260] sm:$0xff]
  %v118 = vld [vmem:[%s1 + $0x268] sm:$0xff]
  %v119 = vld [vmem:[%s1 + $0x270] sm:$0xff]
  %v120 = vld [vmem:[%s1 + $0x278] sm:$0xff]
  %v121 = vld [vmem:[%s1 + $0x280] sm:$0xff]
  %v122 = vld [vmem:[%s1 + $0x288] sm:$0xff]
  %v123 = vld [vmem:[%s1 + $0x290] sm:$0xff]
  %v124 = vld [vmem:[%s1 + $0x298] sm:$0xff]
  %v125 = vld [vmem:[%s1 + $0x2a0] sm:$0xff]
  %v126 = vld [vmem:[%s1 + $0x2a8] sm:$0xff]
  %v127 = vld [vmem:[%s1 + $0x2b0] sm:$0xff]
  %v128 = vld [vmem:[%s1 + $0x2b8] sm:$0xff]
  %v129 = vld [vmem:[%s1 + $0x2c0] sm:$0xff]
  %v130 = vld [vmem:[%s1 + $0x2c8] sm:$0xff]
  %v131 = vld [vmem:[%s1 + $0x2d0] sm:$0xff]
  %v132 = vld [vmem:[%s1 + $0x2d8] sm:$0xff]
  %v133 = vld [vmem:[%s1 + $0x2e0] sm:$0xff]
  %v134 = vld [vmem:[%s1 + $0x2e8] sm:$0xff]
  %v135 = vld [vmem:[%s1 + $0x2f0] sm:$0xff]
  %v136 = vld [vmem:[%s1 + $0x2f8] sm:$0xff]
  %v137 = vld [vmem:[%s1 + $0x300] sm:$0xff]
  %v138 = vld [vmem:[%s1 + $0x308] sm:$0xff]
  %v139 = vld [vmem:[%s1 + $0x310] sm:$0xff]
  %v140 = vld [vmem:[%s1 + $0x318] sm:$0xff]
  %v141 = vld [vmem:[%s1 + $0x320] sm:$0xff]
  %v142 = vld [vmem:[%s1 + $0x328] sm:$0xff]
  %v143 = vld [vmem:[%s1 + $0x330] sm:$0xff]
  %v144 = vld [vmem:[%s1 + $0x338] sm:$0xff]
  %v145 = vld [vmem:[%s1 + $0x340] sm:$0xff]
  %v146 = vld [vmem:[%s1 + $0x348] sm:$0xff]
  %v147 = vld [vmem:[%s1 + $0x350] sm:$0xff]
  %v148 = vld [vmem:[%s1 + $0x358] sm:$0xff]
  %v149 = vld [vmem:[%s1 + $0x360] sm:$0xff]
  %v150 = vld [vmem:[%s1 + $0x368] sm:$0xff]
  %v151 = vld [vmem:[%s1 + $0x370] sm:$0xff]
  %v152 = vld [vmem:[%s1 + $0x378] sm:$0xff]
  %v153 = vld [vmem:[%s1 + $0x380] sm:$0xff]
  %v154 = vld [vmem:[%s1 + $0x388] sm:$0xff]
  %v155 = vld [vmem:[%s1 + $0x390] sm:$0xff]
  %v156 = vld [vmem:[%s1 + $0x398] sm:$0xff]
  %v157 = vld [vmem:[%s1 + $0x3a0] sm:$0xff]
  %v158 = vld [vmem:[%s1 + $0x3a8] sm:$0xff]
  %v159 = vld [vmem:[%s1 + $0x3b0] sm:$0xff]
  %v160 = vld [vmem:[%s1 + $0x3b8] sm:$0xff]
  %v161 = vld [vmem:[%s1 + $0x3c0] sm:$0xff]
  %v162 = vld [vmem:[%s1 + $0x3c8] sm:$0xff]
  %v163 = vld [vmem:[%s1 + $0x3d0] sm:$0xff]
  %v164 = vld [vmem:[%s1 + $0x3d8] sm:$0xff]
  %v165 = vld [vmem:[%s1 + $0x3e0] sm:$0xff]
  %v166 = vld [vmem:[%s1 + $0x3e8] sm:$0xff]
  %v167 = vld [vmem:[%s1 + $0x3f0] sm:$0xff]
  %v168 = vld [vmem:[%s1 + $0x3f8] sm:$0xff]
  %v169 = vld [vmem:[%s1 + $0x400] sm:$0xff]
  %v170 = vld [vmem:[%s1 + $0x408] sm:$0xff]
  %v171 = vld [vmem:[%s1 + $0x410] sm:$0xff]
  %v172 = vld [vmem:[%s1 + $0x418] sm:$0xff]
  %v173 = vld [vmem:[%s1 + $0x420] sm:$0xff]
  %v174 = vld [vmem:[%s1 + $0x428] sm:$0xff]
  %v175 = vld [vmem:[%s1 + $0x430] sm:$0xff]
  %v176 = vld [vmem:[%s1 + $0x438] sm:$0xff]
  %v177 = vld [vmem:[%s1 + $0x440] sm:$0xff]
  %v178 = vld [vmem:[%s1 + $0x448] sm:$0xff]
  %v179 = vld [vmem:[%s1 + $0x450] sm:$0xff]
  %v180 = vld [vmem:[%s1 + $0x458] sm:$0xff]
  %v181 = vld [vmem:[%s1 + $0x460] sm:$0xff]
  %v182 = vld [vmem:[%s1 + $0x468] sm:$0xff]
  %v183 = vld [vmem:[%s1 + $0x470] sm:$0xff]
  %v184 = vld [vmem:[%s1 + $0x478] sm:$0xff]
  %v185 = vld [vmem:[%s1 + $0x480] sm:$0xff]
  %v186 = vld [vmem:[%s1 + $0x488] sm:$0xff]
  %v187 = vld [vmem:[%s1 + $0x490] sm:$0xff]
  %v188 = vld [vmem:[%s1 + $0x498] sm:$0xff]
  %v189 = vld [vmem:[%s1 + $0x4a0] sm:$0xff]
  %v190 = vld [vmem:[%s1 + $0x4a8] sm:$0xff]
  %v191 = vld [vmem:[%s1 + $0x4b0] sm:$0xff]
  %v192 = vld [vmem:[%s1 + $0x4b8] sm:$0xff]
  %v193 = vld [vmem:[%s1 + $0x4c0] sm:$0xff]
  %v194 = vld [vmem:[%s1 + $0x4c8] sm:$0xff]
  %v195 = vld [vmem:[%s1 + $0x4d0] sm:$0xff]
  %v196 = vld [vmem:[%s1 + $0x4d8] sm:$0xff]
  %v197 = vld [vmem:[%s1 + $0x4e0] sm:$0xff]
  %v198 = vld [vmem:[%s1 + $0x4e8] sm:$0xff]
  %v199 = vld [vmem:[%s1 + $0x4f0] sm:$0xff]
  %v200 = vld [vmem:[%s1 + $0x4f8] sm:$0xff]
  %v201 = vld [vmem:[%s1 + $0x500] sm:$0xff]
  %v202 = vld [vmem:[%s1 + $0x508] sm:$0xff]
  %v203 = vld [vmem:[%s1 + $0x510] sm:$0xff]
  %v204 = vld [vmem:[%s1 + $0x518] sm:$0xff]
  %v205 = vld [vmem:[%s1 + $0x520] sm:$0xff]
  %v206 = vld [vmem:[%s1 + $0x528] sm:$0xff]
  %v207 = vld [vmem:[%s1 + $0x530] sm:$0xff]
  %v208 = vld [vmem:[%s1 + $0x538] sm:$0xff]
  %v209 = vld [vmem:[%s1 + $0x540] sm:$0xff]
  %v210 = vld [vmem:[%s1 + $0x548] sm:$0xff]
  %v211 = vld [vmem:[%s1 + $0x550] sm:$0xff]
  %v212 = vld [vmem:[%s1 + $0x558] sm:$0xff]
  %v213 = vld [vmem:[%s1 + $0x560] sm:$0xff]
  %v214 = vld [vmem:[%s1 + $0x568] sm:$0xff]
  %v215 = vld [vmem:[%s1 + $0x570] sm:$0xff]
  %v216 = vld [vmem:[%s1 + $0x578] sm:$0xff]
  %v217 = vld [vmem:[%s1 + $0x580] sm:$0xff]
  %v218 = vld [vmem:[%s1 + $0x588] sm:$0xff]
  %v219 = vld [vmem:[%s1 + $0x590] sm:$0xff]
  %v220 = vld [vmem:[%s1 + $0x598] sm:$0xff]
  %v221 = vld [vmem:[%s1 + $0x5a0] sm:$0xff]
  %v222 = vld [vmem:[%s1 + $0x5a8] sm:$0xff]
  %v223 = vld [vmem:[%s1 + $0x5b0] sm:$0xff]
  %v224 = vld [vmem:[%s1 + $0x5b8] sm:$0xff]
  %v225 = vld [vmem:[%s1 + $0x5c0] sm:$0xff]
  %v226 = vld [vmem:[%s1 + $0x5c8] sm:$0xff]
  %v227 = vld [vmem:[%s1 + $0x5d0] sm:$0xff]
  %v228 = vld [vmem:[%s1 + $0x5d8] sm:$0xff]
  %v229 = vld [vmem:[%s1 + $0x5e0] sm:$0xff]
  %v230 = vld [vmem:[%s1 + $0x5e8] sm:$0xff]
  %v231 = vld [vmem:[%s1 + $0x5f0] sm:$0xff]
  %v232 = vld [vmem:[%s1 + $0x5f8] sm:$0xff]
  %v233 = vld [vmem:[%s1 + $0x600] sm:$0xff]
  %v234 = vld [vmem:[%s1 + $0x608] sm:$0xff]
  %v235 = vld [vmem:[%s1 + $0x610] sm:$0xff]
  %v236 = vld [vmem:[%s1 + $0x618] sm:$0xff]
  %v237 = vld [vmem:[%s1 + $0x620] sm:$0xff]
  %v238 = vld [vmem:[%s1 + $0x628] sm:$0xff]
  %v239 = vld [vmem:[%s1 + $0x630] sm:$0xff]
  %v240 = vld [vmem:[%s1 + $0x638] sm:$0xff]
  %v241 = vld [vmem:[%s1 + $0x640] sm:$0xff]
  %v242 = vld [vmem:[%s1 + $0x648] sm:$0xff]
  %v243 = vld [vmem:[%s1 + $0x650] sm:$0xff]
  %v244 = vld [vmem:[%s1 + $0x658] sm:$0xff]
  %v245 = vld [vmem:[%s1 + $0x660] sm:$0xff]
  %v246 = vld [vmem:[%s1 + $0x668] sm:$0xff]
  %v247 = vld [vmem:[%s1 + $0x670] sm:$0xff]
  %v248 = vld [vmem:[%s1 + $0x678] sm:$0xff]
  %v249 = vld [vmem:[%s1 + $0x680] sm:$0xff]
  %v250 = vld [vmem:[%s1 + $0x688] sm:$0xff]
  %v251 = vld [vmem:[%s1 + $0x690] sm:$0xff]
  %v252 = vld [vmem:[%s1 + $0x698] sm:$0xff]
  %v253 = vld [vmem:[%s1 + $0x6a0] sm:$0xff]
  %v254 = vld [vmem:[%s1 + $0x6a8] sm:$0xff]
  %v255 = vld [vmem:[%s1 + $0x6b0] sm:$0xff]
  %v256 = vld [vmem:[%s1 + $0x6b8] sm:$0xff]
  %v257 = vld [vmem:[%s1 + $0x6c0] sm:$0xff]
  %v258 = vld [vmem:[%s1 + $0x6c8] sm:$0xff]
  %v259 = vld [vmem:[%s1 + $0x6d0] sm:$0xff]
  %v260 = vld [vmem:[%s1 + $0x6d8] sm:$0xff]
  %v261 = vld [vmem:[%s1 + $0x6e0] sm:$0xff]
  %v262 = vld [vmem:[%s1 + $0x6e8] sm:$0xff]
  %v263 = vld [vmem:[%s1 + $0x6f0] sm:$0xff]
  %v264 = vld [vmem:[%s1 + $0x6f8] sm:$0xff]
  %v265 = vld [vmem:[%s1 + $0x700] sm:$0xff]
  %v266 = vld [vmem:[%s1 + $0x708] sm:$0xff]
  %v267 = vld [vmem:[%s1 + $0x710] sm:$0xff]
  %v268 = vld [vmem:[%s1 + $0x718] sm:$0xff]
  %v269 = vld [vmem:[%s1 + $0x720] sm:$0xff]
  %v270 = vld [vmem:[%s1 + $0x728] sm:$0xff]
  %v271 = vld [vmem:[%s1 + $0x730] sm:$0xff]
  %v272 = vld [vmem:[%s1 + $0x738] sm:$0xff]
  %v273 = vld [vmem:[%s1 + $0x740] sm:$0xff]
  %v274 = vld [vmem:[%s1 + $0x748] sm:$0xff]
  %v275 = vld [vmem:[%s1 + $0x750] sm:$0xff]
  %v276 = vld [vmem:[%s1 + $0x758] sm:$0xff]
  %v277 = vld [vmem:[%s1 + $0x760] sm:$0xff]
  %v278 = vld [vmem:[%s1 + $0x768] sm:$0xff]
  %v279 = vld [vmem:[%s1 + $0x770] sm:$0xff]
  %v280 = vld [vmem:[%s1 + $0x778] sm:$0xff]
  %v281 = vld [vmem:[%s1 + $0x780] sm:$0xff]
  %v282 = vld [vmem:[%s1 + $0x788] sm:$0xff]
  %v283 = vld [vmem:[%s1 + $0x790] sm:$0xff]
  %v284 = vld [vmem:[%s1 + $0x798] sm:$0xff]
  %v285 = vld [vmem:[%s1 + $0x7a0] sm:$0xff]
  %v286 = vld [vmem:[%s1 + $0x7a8] sm:$0xff]
  %v287 = vld [vmem:[%s1 + $0x7b0] sm:$0xff]
  %v288 = vld [vmem:[%s1 + $0x7b8] sm:$0xff]
  %v289 = vld [vmem:[%s1 + $0x7c0] sm:$0xff]
  %v290 = vld [vmem:[%s1 + $0x7c8] sm:$0xff]
  %v291 = vld [vmem:[%s1 + $0x7d0] sm:$0xff]
  %v292 = vld [vmem:[%s1 + $0x7d8] sm:$0xff]
  %v293 = vld [vmem:[%s1 + $0x7e0] sm:$0xff]
  %v294 = vld [vmem:[%s1 + $0x7e8] sm:$0xff]
  %v295 = vld [vmem:[%s1 + $0x7f0] sm:$0xff]
  %v296 = vld [vmem:[%s1 + $0x7f8] sm:$0xff]
  %v297 = vld [vmem:[%s1 + $0x800] sm:$0xff]
  %v298 = vld [vmem:[%s1 + $0x808] sm:$0xff]
  %v299 = vld [vmem:[%s1 + $0x810] sm:$0xff]
  %v300 = vld [vmem:[%s1 + $0x818] sm:$0xff]
  %v301 = vld [vmem:[%s1 + $0x820] sm:$0xff]
  %v302 = vld [vmem:[%s1 + $0x828] sm:$0xff]
  %v303 = vld [vmem:[%s1 + $0x830] sm:$0xff]
  %v304 = vld [vmem:[%s1 + $0x838] sm:$0xff]
  %v305 = vld [vmem:[%s1 + $0x840] sm:$0xff]
  %v306 = vld [vmem:[%s1 + $0x848] sm:$0xff]
  %v307 = vld [vmem:[%s1 + $0x850] sm:$0xff]
  %v308 = vld [vmem:[%s1 + $0x858] sm:$0xff]
  %v309 = vld [vmem:[%s1 + $0x860] sm:$0xff]
  %v310 = vld [vmem:[%s1 + $0x868] sm:$0xff]
  %v311 = vld [vmem:[%s1 + $0x870] sm:$0xff]
  %v312 = vld [vmem:[%s1 + $0x878] sm:$0xff]
  %v313 = vld [vmem:[%s1 + $0x880] sm:$0xff]
  %v314 = vld [vmem:[%s1 + $0x888] sm:$0xff]
  %v315 = vld [vmem:[%s1 + $0x890] sm:$0xff]
  %v316 = vld [vmem:[%s1 + $0x898] sm:$0xff]
  %v317 = vld [vmem:[%s1 + $0x8a0] sm:$0xff]
  %v318 = vld [vmem:[%s1 + $0x8a8] sm:$0xff]
  %v319 = vld [vmem:[%s1 + $0x8b0] sm:$0xff]
  %v320 = vld [vmem:[%s1 + $0x8b8] sm:$0xff]
  %v321 = vld [vmem:[%s1 + $0x8c0] sm:$0xff]
  %v322 = vld [vmem:[%s1 + $0x8c8] sm:$0xff]
  %v323 = vld [vmem:[%s1 + $0x8d0] sm:$0xff]
  %v324 = vld [vmem:[%s1 + $0x8d8] sm:$0xff]
  %v325 = vld [vmem:[%s1 + $0x8e0] sm:$0xff]
  %v326 = vld [vmem:[%s1 + $0x8e8] sm:$0xff]
  %v327 = vld [vmem:[%s1 + $0x8f0] sm:$0xff]
  %v328 = vld [vmem:[%s1 + $0x8f8] sm:$0xff]
  %v329 = vld [vmem:[%s2] sm:$0x3f]
  %v331 = vperm.slane %v329, 0
  %v332 = vperm.slane %v329, 1
  %v333 = vperm.slane %v329, 2
  %v334 = vperm.slane %v329, 3
  %v335 = vperm.slane %v329, 4
  %v336 = vperm.slane %v329, 5
  %v631 = vunpack.c.l.b16 %v41
  %v632 = vunpack.c.h.b16 %v41
  %v633 = vunpack.c.l.b16 %v42
  %v634 = vunpack.c.h.b16 %v42
  %v635 = vunpack.c.l.b16 %v43
  %v636 = vunpack.c.h.b16 %v43
  %v637 = vunpack.c.l.b16 %v44
  %v638 = vunpack.c.h.b16 %v44
  %v639 = vunpack.c.l.b16 %v45
  %v640 = vunpack.c.h.b16 %v45
  %v641 = vunpack.c.l.b16 %v46
  %v642 = vunpack.c.h.b16 %v46
  %v643 = vunpack.c.l.b16 %v47
  %v644 = vunpack.c.h.b16 %v47
  %v645 = vunpack.c.l.b16 %v48
  %v646 = vunpack.c.h.b16 %v48
  %v647 = vunpack.c.l.b16 %v49
  %v648 = vunpack.c.h.b16 %v49
  %v649 = vunpack.c.l.b16 %v50
  %v650 = vunpack.c.h.b16 %v50
  %v651 = vunpack.c.l.b16 %v51
  %v652 = vunpack.c.h.b16 %v51
  %v653 = vunpack.c.l.b16 %v52
  %v654 = vunpack.c.h.b16 %v52
  %v655 = vunpack.c.l.b16 %v53
  %v656 = vunpack.c.h.b16 %v53
  %v657 = vunpack.c.l.b16 %v54
  %v658 = vunpack.c.h.b16 %v54
  %v659 = vunpack.c.l.b16 %v55
  %v660 = vunpack.c.h.b16 %v55
  %v661 = vunpack.c.l.b16 %v56
  %v662 = vunpack.c.h.b16 %v56
  %v663 = vunpack.c.l.b16 %v57
  %v664 = vunpack.c.h.b16 %v57
  %v665 = vunpack.c.l.b16 %v58
  %v666 = vunpack.c.h.b16 %v58
  %v667 = vunpack.c.l.b16 %v59
  %v668 = vunpack.c.h.b16 %v59
  %v669 = vunpack.c.l.b16 %v60
  %v670 = vunpack.c.h.b16 %v60
  %v671 = vunpack.c.l.b16 %v61
  %v672 = vunpack.c.h.b16 %v61
  %v673 = vunpack.c.l.b16 %v62
  %v674 = vunpack.c.h.b16 %v62
  %v675 = vunpack.c.l.b16 %v63
  %v676 = vunpack.c.h.b16 %v63
  %v677 = vunpack.c.l.b16 %v64
  %v678 = vunpack.c.h.b16 %v64
  %v679 = vunpack.c.l.b16 %v65
  %v680 = vunpack.c.h.b16 %v65
  %v681 = vunpack.c.l.b16 %v66
  %v682 = vunpack.c.h.b16 %v66
  %v683 = vunpack.c.l.b16 %v67
  %v684 = vunpack.c.h.b16 %v67
  %v685 = vunpack.c.l.b16 %v68
  %v686 = vunpack.c.h.b16 %v68
  %v687 = vunpack.c.l.b16 %v69
  %v688 = vunpack.c.h.b16 %v69
  %v689 = vunpack.c.l.b16 %v70
  %v690 = vunpack.c.h.b16 %v70
  %v691 = vunpack.c.l.b16 %v71
  %v692 = vunpack.c.h.b16 %v71
  %v693 = vunpack.c.l.b16 %v72
  %v694 = vunpack.c.h.b16 %v72
  %v695 = vunpack.c.l.b16 %v73
  %v696 = vunpack.c.h.b16 %v73
  %v697 = vunpack.c.l.b16 %v74
  %v698 = vunpack.c.h.b16 %v74
  %v699 = vunpack.c.l.b16 %v75
  %v700 = vunpack.c.h.b16 %v75
  %v701 = vunpack.c.l.b16 %v76
  %v702 = vunpack.c.h.b16 %v76
  %v703 = vunpack.c.l.b16 %v77
  %v704 = vunpack.c.h.b16 %v77
  %v705 = vunpack.c.l.b16 %v78
  %v706 = vunpack.c.h.b16 %v78
  %v707 = vunpack.c.l.b16 %v79
  %v708 = vunpack.c.h.b16 %v79
  %v709 = vunpack.c.l.b16 %v80
  %v710 = vunpack.c.h.b16 %v80
  %v711 = vunpack.c.l.b16 %v81
  %v712 = vunpack.c.h.b16 %v81
  %v713 = vunpack.c.l.b16 %v82
  %v714 = vunpack.c.h.b16 %v82
  %v715 = vunpack.c.l.b16 %v83
  %v716 = vunpack.c.h.b16 %v83
  %v717 = vunpack.c.l.b16 %v84
  %v718 = vunpack.c.h.b16 %v84
  %v719 = vunpack.c.l.b16 %v85
  %v720 = vunpack.c.h.b16 %v85
  %v721 = vunpack.c.l.b16 %v86
  %v722 = vunpack.c.h.b16 %v86
  %v723 = vunpack.c.l.b16 %v87
  %v724 = vunpack.c.h.b16 %v87
  %v725 = vunpack.c.l.b16 %v88
  %v726 = vunpack.c.h.b16 %v88
  %v727 = vunpack.c.l.b16 %v89
  %v728 = vunpack.c.h.b16 %v89
  %v729 = vunpack.c.l.b16 %v90
  %v730 = vunpack.c.h.b16 %v90
  %v731 = vunpack.c.l.b16 %v91
  %v732 = vunpack.c.h.b16 %v91
  %v733 = vunpack.c.l.b16 %v92
  %v734 = vunpack.c.h.b16 %v92
  %v735 = vunpack.c.l.b16 %v93
  %v736 = vunpack.c.h.b16 %v93
  %v737 = vunpack.c.l.b16 %v94
  %v738 = vunpack.c.h.b16 %v94
  %v739 = vunpack.c.l.b16 %v95
  %v740 = vunpack.c.h.b16 %v95
  %v741 = vunpack.c.l.b16 %v96
  %v742 = vunpack.c.h.b16 %v96
  %v743 = vunpack.c.l.b16 %v97
  %v744 = vunpack.c.h.b16 %v97
  %v745 = vunpack.c.l.b16 %v98
  %v746 = vunpack.c.h.b16 %v98
  %v747 = vunpack.c.l.b16 %v99
  %v748 = vunpack.c.h.b16 %v99
  %v749 = vunpack.c.l.b16 %v100
  %v750 = vunpack.c.h.b16 %v100
  %v751 = vunpack.c.l.b16 %v101
  %v752 = vunpack.c.h.b16 %v101
  %v753 = vunpack.c.l.b16 %v102
  %v754 = vunpack.c.h.b16 %v102
  %v755 = vunpack.c.l.b16 %v103
  %v756 = vunpack.c.h.b16 %v103
  %v757 = vunpack.c.l.b16 %v104
  %v758 = vunpack.c.h.b16 %v104
  %v759 = vunpack.c.l.b16 %v105
  %v760 = vunpack.c.h.b16 %v105
  %v761 = vunpack.c.l.b16 %v106
  %v762 = vunpack.c.h.b16 %v106
  %v763 = vunpack.c.l.b16 %v107
  %v764 = vunpack.c.h.b16 %v107
  %v765 = vunpack.c.l.b16 %v108
  %v766 = vunpack.c.h.b16 %v108
  %v767 = vunpack.c.l.b16 %v109
  %v768 = vunpack.c.h.b16 %v109
  %v769 = vunpack.c.l.b16 %v110
  %v770 = vunpack.c.h.b16 %v110
  %v771 = vunpack.c.l.b16 %v111
  %v772 = vunpack.c.h.b16 %v111
  %v773 = vunpack.c.l.b16 %v112
  %v774 = vunpack.c.h.b16 %v112
  %v775 = vunpack.c.l.b16 %v113
  %v776 = vunpack.c.h.b16 %v113
  %v777 = vunpack.c.l.b16 %v114
  %v778 = vunpack.c.h.b16 %v114
  %v779 = vunpack.c.l.b16 %v115
  %v780 = vunpack.c.h.b16 %v115
  %v781 = vunpack.c.l.b16 %v116
  %v782 = vunpack.c.h.b16 %v116
  %v783 = vunpack.c.l.b16 %v117
  %v784 = vunpack.c.h.b16 %v117
  %v785 = vunpack.c.l.b16 %v118
  %v786 = vunpack.c.h.b16 %v118
  %v787 = vunpack.c.l.b16 %v119
  %v788 = vunpack.c.h.b16 %v119
  %v789 = vunpack.c.l.b16 %v120
  %v790 = vunpack.c.h.b16 %v120
  %v791 = vunpack.c.l.b16 %v121
  %v792 = vunpack.c.h.b16 %v121
  %v793 = vunpack.c.l.b16 %v122
  %v794 = vunpack.c.h.b16 %v122
  %v795 = vunpack.c.l.b16 %v123
  %v796 = vunpack.c.h.b16 %v123
  %v797 = vunpack.c.l.b16 %v124
  %v798 = vunpack.c.h.b16 %v124
  %v799 = vunpack.c.l.b16 %v125
  %v800 = vunpack.c.h.b16 %v125
  %v801 = vunpack.c.l.b16 %v126
  %v802 = vunpack.c.h.b16 %v126
  %v803 = vunpack.c.l.b16 %v127
  %v804 = vunpack.c.h.b16 %v127
  %v805 = vunpack.c.l.b16 %v128
  %v806 = vunpack.c.h.b16 %v128
  %v807 = vunpack.c.l.b16 %v129
  %v808 = vunpack.c.h.b16 %v129
  %v809 = vunpack.c.l.b16 %v130
  %v810 = vunpack.c.h.b16 %v130
  %v811 = vunpack.c.l.b16 %v131
  %v812 = vunpack.c.h.b16 %v131
  %v813 = vunpack.c.l.b16 %v132
  %v814 = vunpack.c.h.b16 %v132
  %v815 = vunpack.c.l.b16 %v133
  %v816 = vunpack.c.h.b16 %v133
  %v817 = vunpack.c.l.b16 %v134
  %v818 = vunpack.c.h.b16 %v134
  %v819 = vunpack.c.l.b16 %v135
  %v820 = vunpack.c.h.b16 %v135
  %v821 = vunpack.c.l.b16 %v136
  %v822 = vunpack.c.h.b16 %v136
  %v823 = vunpack.c.l.b16 %v137
  %v824 = vunpack.c.h.b16 %v137
  %v825 = vunpack.c.l.b16 %v138
  %v826 = vunpack.c.h.b16 %v138
  %v827 = vunpack.c.l.b16 %v139
  %v828 = vunpack.c.h.b16 %v139
  %v829 = vunpack.c.l.b16 %v140
  %v830 = vunpack.c.h.b16 %v140
  %v831 = vunpack.c.l.b16 %v141
  %v832 = vunpack.c.h.b16 %v141
  %v833 = vunpack.c.l.b16 %v142
  %v834 = vunpack.c.h.b16 %v142
  %v835 = vunpack.c.l.b16 %v143
  %v836 = vunpack.c.h.b16 %v143
  %v837 = vunpack.c.l.b16 %v144
  %v838 = vunpack.c.h.b16 %v144
  %v839 = vunpack.c.l.b16 %v145
  %v840 = vunpack.c.h.b16 %v145
  %v841 = vunpack.c.l.b16 %v146
  %v842 = vunpack.c.h.b16 %v146
  %v843 = vunpack.c.l.b16 %v147
  %v844 = vunpack.c.h.b16 %v147
  %v845 = vunpack.c.l.b16 %v148
  %v846 = vunpack.c.h.b16 %v148
  %v847 = vunpack.c.l.b16 %v149
  %v848 = vunpack.c.h.b16 %v149
  %v849 = vunpack.c.l.b16 %v150
  %v850 = vunpack.c.h.b16 %v150
  %v851 = vunpack.c.l.b16 %v151
  %v852 = vunpack.c.h.b16 %v151
  %v853 = vunpack.c.l.b16 %v152
  %v854 = vunpack.c.h.b16 %v152
  %v855 = vunpack.c.l.b16 %v153
  %v856 = vunpack.c.h.b16 %v153
  %v857 = vunpack.c.l.b16 %v154
  %v858 = vunpack.c.h.b16 %v154
  %v859 = vunpack.c.l.b16 %v155
  %v860 = vunpack.c.h.b16 %v155
  %v861 = vunpack.c.l.b16 %v156
  %v862 = vunpack.c.h.b16 %v156
  %v863 = vunpack.c.l.b16 %v157
  %v864 = vunpack.c.h.b16 %v157
  %v865 = vunpack.c.l.b16 %v158
  %v866 = vunpack.c.h.b16 %v158
  %v867 = vunpack.c.l.b16 %v159
  %v868 = vunpack.c.h.b16 %v159
  %v869 = vunpack.c.l.b16 %v160
  %v870 = vunpack.c.h.b16 %v160
  %v871 = vunpack.c.l.b16 %v161
  %v872 = vunpack.c.h.b16 %v161
  %v873 = vunpack.c.l.b16 %v162
  %v874 = vunpack.c.h.b16 %v162
  %v875 = vunpack.c.l.b16 %v163
  %v876 = vunpack.c.h.b16 %v163
  %v877 = vunpack.c.l.b16 %v164
  %v878 = vunpack.c.h.b16 %v164
  %v879 = vunpack.c.l.b16 %v165
  %v880 = vunpack.c.h.b16 %v165
  %v881 = vunpack.c.l.b16 %v166
  %v882 = vunpack.c.h.b16 %v166
  %v883 = vunpack.c.l.b16 %v167
  %v884 = vunpack.c.h.b16 %v167
  %v885 = vunpack.c.l.b16 %v168
  %v886 = vunpack.c.h.b16 %v168
  %v887 = vunpack.c.l.b16 %v169
  %v888 = vunpack.c.h.b16 %v169
  %v889 = vunpack.c.l.b16 %v170
  %v890 = vunpack.c.h.b16 %v170
  %v891 = vunpack.c.l.b16 %v171
  %v892 = vunpack.c.h.b16 %v171
  %v893 = vunpack.c.l.b16 %v172
  %v894 = vunpack.c.h.b16 %v172
  %v895 = vunpack.c.l.b16 %v173
  %v896 = vunpack.c.h.b16 %v173
  %v897 = vunpack.c.l.b16 %v174
  %v898 = vunpack.c.h.b16 %v174
  %v899 = vunpack.c.l.b16 %v175
  %v900 = vunpack.c.h.b16 %v175
  %v901 = vunpack.c.l.b16 %v176
  %v902 = vunpack.c.h.b16 %v176
  %v903 = vunpack.c.l.b16 %v177
  %v904 = vunpack.c.h.b16 %v177
  %v905 = vunpack.c.l.b16 %v178
  %v906 = vunpack.c.h.b16 %v178
  %v907 = vunpack.c.l.b16 %v179
  %v908 = vunpack.c.h.b16 %v179
  %v909 = vunpack.c.l.b16 %v180
  %v910 = vunpack.c.h.b16 %v180
  %v911 = vunpack.c.l.b16 %v181
  %v912 = vunpack.c.h.b16 %v181
  %v913 = vunpack.c.l.b16 %v182
  %v914 = vunpack.c.h.b16 %v182
  %v915 = vunpack.c.l.b16 %v183
  %v916 = vunpack.c.h.b16 %v183
  %v917 = vunpack.c.l.b16 %v184
  %v918 = vunpack.c.h.b16 %v184
  %v919 = vunpack.c.l.b16 %v185
  %v920 = vunpack.c.h.b16 %v185
  %v921 = vunpack.c.l.b16 %v186
  %v922 = vunpack.c.h.b16 %v186
  %v923 = vunpack.c.l.b16 %v187
  %v924 = vunpack.c.h.b16 %v187
  %v925 = vunpack.c.l.b16 %v188
  %v926 = vunpack.c.h.b16 %v188
  %v927 = vunpack.c.l.b16 %v189
  %v928 = vunpack.c.h.b16 %v189
  %v929 = vunpack.c.l.b16 %v190
  %v930 = vunpack.c.h.b16 %v190
  %v931 = vunpack.c.l.b16 %v191
  %v932 = vunpack.c.h.b16 %v191
  %v933 = vunpack.c.l.b16 %v192
  %v934 = vunpack.c.h.b16 %v192
  %v935 = vunpack.c.l.b16 %v193
  %v936 = vunpack.c.h.b16 %v193
  %v937 = vunpack.c.l.b16 %v194
  %v938 = vunpack.c.h.b16 %v194
  %v939 = vunpack.c.l.b16 %v195
  %v940 = vunpack.c.h.b16 %v195
  %v941 = vunpack.c.l.b16 %v196
  %v942 = vunpack.c.h.b16 %v196
  %v943 = vunpack.c.l.b16 %v197
  %v944 = vunpack.c.h.b16 %v197
  %v945 = vunpack.c.l.b16 %v198
  %v946 = vunpack.c.h.b16 %v198
  %v947 = vunpack.c.l.b16 %v199
  %v948 = vunpack.c.h.b16 %v199
  %v949 = vunpack.c.l.b16 %v200
  %v950 = vunpack.c.h.b16 %v200
  %v951 = vunpack.c.l.b16 %v201
  %v952 = vunpack.c.h.b16 %v201
  %v953 = vunpack.c.l.b16 %v202
  %v954 = vunpack.c.h.b16 %v202
  %v955 = vunpack.c.l.b16 %v203
  %v956 = vunpack.c.h.b16 %v203
  %v957 = vunpack.c.l.b16 %v204
  %v958 = vunpack.c.h.b16 %v204
  %v959 = vunpack.c.l.b16 %v205
  %v960 = vunpack.c.h.b16 %v205
  %v961 = vunpack.c.l.b16 %v206
  %v962 = vunpack.c.h.b16 %v206
  %v963 = vunpack.c.l.b16 %v207
  %v964 = vunpack.c.h.b16 %v207
  %v965 = vunpack.c.l.b16 %v208
  %v966 = vunpack.c.h.b16 %v208
  %v967 = vunpack.c.l.b16 %v209
  %v968 = vunpack.c.h.b16 %v209
  %v969 = vunpack.c.l.b16 %v210
  %v970 = vunpack.c.h.b16 %v210
  %v971 = vunpack.c.l.b16 %v211
  %v972 = vunpack.c.h.b16 %v211
  %v973 = vunpack.c.l.b16 %v212
  %v974 = vunpack.c.h.b16 %v212
  %v975 = vunpack.c.l.b16 %v213
  %v976 = vunpack.c.h.b16 %v213
  %v977 = vunpack.c.l.b16 %v214
  %v978 = vunpack.c.h.b16 %v214
  %v979 = vunpack.c.l.b16 %v215
  %v980 = vunpack.c.h.b16 %v215
  %v981 = vunpack.c.l.b16 %v216
  %v982 = vunpack.c.h.b16 %v216
  %v983 = vunpack.c.l.b16 %v217
  %v984 = vunpack.c.h.b16 %v217
  %v985 = vunpack.c.l.b16 %v218
  %v986 = vunpack.c.h.b16 %v218
  %v987 = vunpack.c.l.b16 %v219
  %v988 = vunpack.c.h.b16 %v219
  %v989 = vunpack.c.l.b16 %v220
  %v990 = vunpack.c.h.b16 %v220
  %v991 = vunpack.c.l.b16 %v221
  %v992 = vunpack.c.h.b16 %v221
  %v993 = vunpack.c.l.b16 %v222
  %v994 = vunpack.c.h.b16 %v222
  %v995 = vunpack.c.l.b16 %v223
  %v996 = vunpack.c.h.b16 %v223
  %v997 = vunpack.c.l.b16 %v224
  %v998 = vunpack.c.h.b16 %v224
  %v999 = vunpack.c.l.b16 %v225
  %v1000 = vunpack.c.h.b16 %v225
  %v1001 = vunpack.c.l.b16 %v226
  %v1002 = vunpack.c.h.b16 %v226
  %v1003 = vunpack.c.l.b16 %v227
  %v1004 = vunpack.c.h.b16 %v227
  %v1005 = vunpack.c.l.b16 %v228
  %v1006 = vunpack.c.h.b16 %v228
  %v1007 = vunpack.c.l.b16 %v229
  %v1008 = vunpack.c.h.b16 %v229
  %v1009 = vunpack.c.l.b16 %v230
  %v1010 = vunpack.c.h.b16 %v230
  %v1011 = vunpack.c.l.b16 %v231
  %v1012 = vunpack.c.h.b16 %v231
  %v1013 = vunpack.c.l.b16 %v232
  %v1014 = vunpack.c.h.b16 %v232
  %v1015 = vunpack.c.l.b16 %v233
  %v1016 = vunpack.c.h.b16 %v233
  %v1017 = vunpack.c.l.b16 %v234
  %v1018 = vunpack.c.h.b16 %v234
  %v1019 = vunpack.c.l.b16 %v235
  %v1020 = vunpack.c.h.b16 %v235
  %v1021 = vunpack.c.l.b16 %v236
  %v1022 = vunpack.c.h.b16 %v236
  %v1023 = vunpack.c.l.b16 %v237
  %v1024 = vunpack.c.h.b16 %v237
  %v1025 = vunpack.c.l.b16 %v238
  %v1026 = vunpack.c.h.b16 %v238
  %v1027 = vunpack.c.l.b16 %v239
  %v1028 = vunpack.c.h.b16 %v239
  %v1029 = vunpack.c.l.b16 %v240
  %v1030 = vunpack.c.h.b16 %v240
  %v1031 = vunpack.c.l.b16 %v241
  %v1032 = vunpack.c.h.b16 %v241
  %v1033 = vunpack.c.l.b16 %v242
  %v1034 = vunpack.c.h.b16 %v242
  %v1035 = vunpack.c.l.b16 %v243
  %v1036 = vunpack.c.h.b16 %v243
  %v1037 = vunpack.c.l.b16 %v244
  %v1038 = vunpack.c.h.b16 %v244
  %v1039 = vunpack.c.l.b16 %v245
  %v1040 = vunpack.c.h.b16 %v245
  %v1041 = vunpack.c.l.b16 %v246
  %v1042 = vunpack.c.h.b16 %v246
  %v1043 = vunpack.c.l.b16 %v247
  %v1044 = vunpack.c.h.b16 %v247
  %v1045 = vunpack.c.l.b16 %v248
  %v1046 = vunpack.c.h.b16 %v248
  %v1047 = vunpack.c.l.b16 %v249
  %v1048 = vunpack.c.h.b16 %v249
  %v1049 = vunpack.c.l.b16 %v250
  %v1050 = vunpack.c.h.b16 %v250
  %v1051 = vunpack.c.l.b16 %v251
  %v1052 = vunpack.c.h.b16 %v251
  %v1053 = vunpack.c.l.b16 %v252
  %v1054 = vunpack.c.h.b16 %v252
  %v1055 = vunpack.c.l.b16 %v253
  %v1056 = vunpack.c.h.b16 %v253
  %v1057 = vunpack.c.l.b16 %v254
  %v1058 = vunpack.c.h.b16 %v254
  %v1059 = vunpack.c.l.b16 %v255
  %v1060 = vunpack.c.h.b16 %v255
  %v1061 = vunpack.c.l.b16 %v256
  %v1062 = vunpack.c.h.b16 %v256
  %v1063 = vunpack.c.l.b16 %v257
  %v1064 = vunpack.c.h.b16 %v257
  %v1065 = vunpack.c.l.b16 %v258
  %v1066 = vunpack.c.h.b16 %v258
  %v1067 = vunpack.c.l.b16 %v259
  %v1068 = vunpack.c.h.b16 %v259
  %v1069 = vunpack.c.l.b16 %v260
  %v1070 = vunpack.c.h.b16 %v260
  %v1071 = vunpack.c.l.b16 %v261
  %v1072 = vunpack.c.h.b16 %v261
  %v1073 = vunpack.c.l.b16 %v262
  %v1074 = vunpack.c.h.b16 %v262
  %v1075 = vunpack.c.l.b16 %v263
  %v1076 = vunpack.c.h.b16 %v263
  %v1077 = vunpack.c.l.b16 %v264
  %v1078 = vunpack.c.h.b16 %v264
  %v1079 = vunpack.c.l.b16 %v265
  %v1080 = vunpack.c.h.b16 %v265
  %v1081 = vunpack.c.l.b16 %v266
  %v1082 = vunpack.c.h.b16 %v266
  %v1083 = vunpack.c.l.b16 %v267
  %v1084 = vunpack.c.h.b16 %v267
  %v1085 = vunpack.c.l.b16 %v268
  %v1086 = vunpack.c.h.b16 %v268
  %v1087 = vunpack.c.l.b16 %v269
  %v1088 = vunpack.c.h.b16 %v269
  %v1089 = vunpack.c.l.b16 %v270
  %v1090 = vunpack.c.h.b16 %v270
  %v1091 = vunpack.c.l.b16 %v271
  %v1092 = vunpack.c.h.b16 %v271
  %v1093 = vunpack.c.l.b16 %v272
  %v1094 = vunpack.c.h.b16 %v272
  %v1095 = vunpack.c.l.b16 %v273
  %v1096 = vunpack.c.h.b16 %v273
  %v1097 = vunpack.c.l.b16 %v274
  %v1098 = vunpack.c.h.b16 %v274
  %v1099 = vunpack.c.l.b16 %v275
  %v1100 = vunpack.c.h.b16 %v275
  %v1101 = vunpack.c.l.b16 %v276
  %v1102 = vunpack.c.h.b16 %v276
  %v1103 = vunpack.c.l.b16 %v277
  %v1104 = vunpack.c.h.b16 %v277
  %v1105 = vunpack.c.l.b16 %v278
  %v1106 = vunpack.c.h.b16 %v278
  %v1107 = vunpack.c.l.b16 %v279
  %v1108 = vunpack.c.h.b16 %v279
  %v1109 = vunpack.c.l.b16 %v280
  %v1110 = vunpack.c.h.b16 %v280
  %v1111 = vunpack.c.l.b16 %v281
  %v1112 = vunpack.c.h.b16 %v281
  %v1113 = vunpack.c.l.b16 %v282
  %v1114 = vunpack.c.h.b16 %v282
  %v1115 = vunpack.c.l.b16 %v283
  %v1116 = vunpack.c.h.b16 %v283
  %v1117 = vunpack.c.l.b16 %v284
  %v1118 = vunpack.c.h.b16 %v284
  %v1119 = vunpack.c.l.b16 %v285
  %v1120 = vunpack.c.h.b16 %v285
  %v1121 = vunpack.c.l.b16 %v286
  %v1122 = vunpack.c.h.b16 %v286
  %v1123 = vunpack.c.l.b16 %v287
  %v1124 = vunpack.c.h.b16 %v287
  %v1125 = vunpack.c.l.b16 %v288
  %v1126 = vunpack.c.h.b16 %v288
  %v1127 = vunpack.c.l.b16 %v289
  %v1128 = vunpack.c.h.b16 %v289
  %v1129 = vunpack.c.l.b16 %v290
  %v1130 = vunpack.c.h.b16 %v290
  %v1131 = vunpack.c.l.b16 %v291
  %v1132 = vunpack.c.h.b16 %v291
  %v1133 = vunpack.c.l.b16 %v292
  %v1134 = vunpack.c.h.b16 %v292
  %v1135 = vunpack.c.l.b16 %v293
  %v1136 = vunpack.c.h.b16 %v293
  %v1137 = vunpack.c.l.b16 %v294
  %v1138 = vunpack.c.h.b16 %v294
  %v1139 = vunpack.c.l.b16 %v295
  %v1140 = vunpack.c.h.b16 %v295
  %v1141 = vunpack.c.l.b16 %v296
  %v1142 = vunpack.c.h.b16 %v296
  %v1143 = vunpack.c.l.b16 %v297
  %v1144 = vunpack.c.h.b16 %v297
  %v1145 = vunpack.c.l.b16 %v298
  %v1146 = vunpack.c.h.b16 %v298
  %v1147 = vunpack.c.l.b16 %v299
  %v1148 = vunpack.c.h.b16 %v299
  %v1149 = vunpack.c.l.b16 %v300
  %v1150 = vunpack.c.h.b16 %v300
  %v1151 = vunpack.c.l.b16 %v301
  %v1152 = vunpack.c.h.b16 %v301
  %v1153 = vunpack.c.l.b16 %v302
  %v1154 = vunpack.c.h.b16 %v302
  %v1155 = vunpack.c.l.b16 %v303
  %v1156 = vunpack.c.h.b16 %v303
  %v1157 = vunpack.c.l.b16 %v304
  %v1158 = vunpack.c.h.b16 %v304
  %v1159 = vunpack.c.l.b16 %v305
  %v1160 = vunpack.c.h.b16 %v305
  %v1161 = vunpack.c.l.b16 %v306
  %v1162 = vunpack.c.h.b16 %v306
  %v1163 = vunpack.c.l.b16 %v307
  %v1164 = vunpack.c.h.b16 %v307
  %v1165 = vunpack.c.l.b16 %v308
  %v1166 = vunpack.c.h.b16 %v308
  %v1167 = vunpack.c.l.b16 %v309
  %v1168 = vunpack.c.h.b16 %v309
  %v1169 = vunpack.c.l.b16 %v310
  %v1170 = vunpack.c.h.b16 %v310
  %v1171 = vunpack.c.l.b16 %v311
  %v1172 = vunpack.c.h.b16 %v311
  %v1173 = vunpack.c.l.b16 %v312
  %v1174 = vunpack.c.h.b16 %v312
  %v1175 = vunpack.c.l.b16 %v313
  %v1176 = vunpack.c.h.b16 %v313
  %v1177 = vunpack.c.l.b16 %v314
  %v1178 = vunpack.c.h.b16 %v314
  %v1179 = vunpack.c.l.b16 %v315
  %v1180 = vunpack.c.h.b16 %v315
  %v1181 = vunpack.c.l.b16 %v316
  %v1182 = vunpack.c.h.b16 %v316
  %v1183 = vunpack.c.l.b16 %v317
  %v1184 = vunpack.c.h.b16 %v317
  %v1185 = vunpack.c.l.b16 %v318
  %v1186 = vunpack.c.h.b16 %v318
  %v1187 = vunpack.c.l.b16 %v319
  %v1188 = vunpack.c.h.b16 %v319
  %v1189 = vunpack.c.l.b16 %v320
  %v1190 = vunpack.c.h.b16 %v320
  %v1191 = vunpack.c.l.b16 %v321
  %v1192 = vunpack.c.h.b16 %v321
  %v1193 = vunpack.c.l.b16 %v322
  %v1194 = vunpack.c.h.b16 %v322
  %v1195 = vunpack.c.l.b16 %v323
  %v1196 = vunpack.c.h.b16 %v323
  %v1197 = vunpack.c.l.b16 %v324
  %v1198 = vunpack.c.h.b16 %v324
  %v1199 = vunpack.c.l.b16 %v325
  %v1200 = vunpack.c.h.b16 %v325
  %v1201 = vunpack.c.l.b16 %v326
  %v1202 = vunpack.c.h.b16 %v326
  %v1203 = vunpack.c.l.b16 %v327
  %v1204 = vunpack.c.h.b16 %v327
  %v1205 = vunpack.c.l.b16 %v328
  %v1206 = vunpack.c.h.b16 %v328
  %v1207 = vpack.c.b16 %v637, %v631
  %v1208 = vpack.c.b16 %v638, %v632
  %v1209 = vpack.c.b16 %v639, %v633
  %v1210 = vpack.c.b16 %v640, %v634
  %v1211 = vpack.c.b16 %v641, %v635
  %v1212 = vpack.c.b16 %v642, %v636
  %v1213 = vpack.c.b16 %v649, %v643
  %v1214 = vpack.c.b16 %v650, %v644
  %v1215 = vpack.c.b16 %v651, %v645
  %v1216 = vpack.c.b16 %v652, %v646
  %v1217 = vpack.c.b16 %v653, %v647
  %v1218 = vpack.c.b16 %v654, %v648
  %v1219 = vpack.c.b16 %v661, %v655
  %v1220 = vpack.c.b16 %v662, %v656
  %v1221 = vpack.c.b16 %v663, %v657
  %v1222 = vpack.c.b16 %v664, %v658
  %v1223 = vpack.c.b16 %v665, %v659
  %v1224 = vpack.c.b16 %v666, %v660
  %v1225 = vpack.c.b16 %v673, %v667
  %v1226 = vpack.c.b16 %v674, %v668
  %v1227 = vpack.c.b16 %v675, %v669
  %v1228 = vpack.c.b16 %v676, %v670
  %v1229 = vpack.c.b16 %v677, %v671
  %v1230 = vpack.c.b16 %v678, %v672
  %v1231 = vpack.c.b16 %v685, %v679
  %v1232 = vpack.c.b16 %v686, %v680
  %v1233 = vpack.c.b16 %v687, %v681
  %v1234 = vpack.c.b16 %v688, %v682
  %v1235 = vpack.c.b16 %v689, %v683
  %v1236 = vpack.c.b16 %v690, %v684
  %v1237 = vpack.c.b16 %v697, %v691
  %v1238 = vpack.c.b16 %v698, %v692
  %v1239 = vpack.c.b16 %v699, %v693
  %v1240 = vpack.c.b16 %v700, %v694
  %v1241 = vpack.c.b16 %v701, %v695
  %v1242 = vpack.c.b16 %v702, %v696
  %v1243 = vpack.c.b16 %v709, %v703
  %v1244 = vpack.c.b16 %v710, %v704
  %v1245 = vpack.c.b16 %v711, %v705
  %v1246 = vpack.c.b16 %v712, %v706
  %v1247 = vpack.c.b16 %v713, %v707
  %v1248 = vpack.c.b16 %v714, %v708
  %v1249 = vpack.c.b16 %v721, %v715
  %v1250 = vpack.c.b16 %v722, %v716
  %v1251 = vpack.c.b16 %v723, %v717
  %v1252 = vpack.c.b16 %v724, %v718
  %v1253 = vpack.c.b16 %v725, %v719
  %v1254 = vpack.c.b16 %v726, %v720
  %v1255 = vpack.c.b16 %v733, %v727
  %v1256 = vpack.c.b16 %v734, %v728
  %v1257 = vpack.c.b16 %v735, %v729
  %v1258 = vpack.c.b16 %v736, %v730
  %v1259 = vpack.c.b16 %v737, %v731
  %v1260 = vpack.c.b16 %v738, %v732
  %v1261 = vpack.c.b16 %v745, %v739
  %v1262 = vpack.c.b16 %v746, %v740
  %v1263 = vpack.c.b16 %v747, %v741
  %v1264 = vpack.c.b16 %v748, %v742
  %v1265 = vpack.c.b16 %v749, %v743
  %v1266 = vpack.c.b16 %v750, %v744
  %v1267 = vpack.c.b16 %v757, %v751
  %v1268 = vpack.c.b16 %v758, %v752
  %v1269 = vpack.c.b16 %v759, %v753
  %v1270 = vpack.c.b16 %v760, %v754
  %v1271 = vpack.c.b16 %v761, %v755
  %v1272 = vpack.c.b16 %v762, %v756
  %v1273 = vpack.c.b16 %v769, %v763
  %v1274 = vpack.c.b16 %v770, %v764
  %v1275 = vpack.c.b16 %v771, %v765
  %v1276 = vpack.c.b16 %v772, %v766
  %v1277 = vpack.c.b16 %v773, %v767
  %v1278 = vpack.c.b16 %v774, %v768
  %v1279 = vpack.c.b16 %v781, %v775
  %v1280 = vpack.c.b16 %v782, %v776
  %v1281 = vpack.c.b16 %v783, %v777
  %v1282 = vpack.c.b16 %v784, %v778
  %v1283 = vpack.c.b16 %v785, %v779
  %v1284 = vpack.c.b16 %v786, %v780
  %v1285 = vpack.c.b16 %v793, %v787
  %v1286 = vpack.c.b16 %v794, %v788
  %v1287 = vpack.c.b16 %v795, %v789
  %v1288 = vpack.c.b16 %v796, %v790
  %v1289 = vpack.c.b16 %v797, %v791
  %v1290 = vpack.c.b16 %v798, %v792
  %v1291 = vpack.c.b16 %v805, %v799
  %v1292 = vpack.c.b16 %v806, %v800
  %v1293 = vpack.c.b16 %v807, %v801
  %v1294 = vpack.c.b16 %v808, %v802
  %v1295 = vpack.c.b16 %v809, %v803
  %v1296 = vpack.c.b16 %v810, %v804
  %v1297 = vpack.c.b16 %v817, %v811
  %v1298 = vpack.c.b16 %v818, %v812
  %v1299 = vpack.c.b16 %v819, %v813
  %v1300 = vpack.c.b16 %v820, %v814
  %v1301 = vpack.c.b16 %v821, %v815
  %v1302 = vpack.c.b16 %v822, %v816
  %v1303 = vpack.c.b16 %v829, %v823
  %v1304 = vpack.c.b16 %v830, %v824
  %v1305 = vpack.c.b16 %v831, %v825
  %v1306 = vpack.c.b16 %v832, %v826
  %v1307 = vpack.c.b16 %v833, %v827
  %v1308 = vpack.c.b16 %v834, %v828
  %v1309 = vpack.c.b16 %v841, %v835
  %v1310 = vpack.c.b16 %v842, %v836
  %v1311 = vpack.c.b16 %v843, %v837
  %v1312 = vpack.c.b16 %v844, %v838
  %v1313 = vpack.c.b16 %v845, %v839
  %v1314 = vpack.c.b16 %v846, %v840
  %v1315 = vpack.c.b16 %v853, %v847
  %v1316 = vpack.c.b16 %v854, %v848
  %v1317 = vpack.c.b16 %v855, %v849
  %v1318 = vpack.c.b16 %v856, %v850
  %v1319 = vpack.c.b16 %v857, %v851
  %v1320 = vpack.c.b16 %v858, %v852
  %v1321 = vpack.c.b16 %v865, %v859
  %v1322 = vpack.c.b16 %v866, %v860
  %v1323 = vpack.c.b16 %v867, %v861
  %v1324 = vpack.c.b16 %v868, %v862
  %v1325 = vpack.c.b16 %v869, %v863
  %v1326 = vpack.c.b16 %v870, %v864
  %v1327 = vpack.c.b16 %v877, %v871
  %v1328 = vpack.c.b16 %v878, %v872
  %v1329 = vpack.c.b16 %v879, %v873
  %v1330 = vpack.c.b16 %v880, %v874
  %v1331 = vpack.c.b16 %v881, %v875
  %v1332 = vpack.c.b16 %v882, %v876
  %v1333 = vpack.c.b16 %v889, %v883
  %v1334 = vpack.c.b16 %v890, %v884
  %v1335 = vpack.c.b16 %v891, %v885
  %v1336 = vpack.c.b16 %v892, %v886
  %v1337 = vpack.c.b16 %v893, %v887
  %v1338 = vpack.c.b16 %v894, %v888
  %v1339 = vpack.c.b16 %v901, %v895
  %v1340 = vpack.c.b16 %v902, %v896
  %v1341 = vpack.c.b16 %v903, %v897
  %v1342 = vpack.c.b16 %v904, %v898
  %v1343 = vpack.c.b16 %v905, %v899
  %v1344 = vpack.c.b16 %v906, %v900
  %v1345 = vpack.c.b16 %v913, %v907
  %v1346 = vpack.c.b16 %v914, %v908
  %v1347 = vpack.c.b16 %v915, %v909
  %v1348 = vpack.c.b16 %v916, %v910
  %v1349 = vpack.c.b16 %v917, %v911
  %v1350 = vpack.c.b16 %v918, %v912
  %v1351 = vpack.c.b16 %v925, %v919
  %v1352 = vpack.c.b16 %v926, %v920
  %v1353 = vpack.c.b16 %v927, %v921
  %v1354 = vpack.c.b16 %v928, %v922
  %v1355 = vpack.c.b16 %v929, %v923
  %v1356 = vpack.c.b16 %v930, %v924
  %v1357 = vpack.c.b16 %v937, %v931
  %v1358 = vpack.c.b16 %v938, %v932
  %v1359 = vpack.c.b16 %v939, %v933
  %v1360 = vpack.c.b16 %v940, %v934
  %v1361 = vpack.c.b16 %v941, %v935
  %v1362 = vpack.c.b16 %v942, %v936
  %v1363 = vpack.c.b16 %v949, %v943
  %v1364 = vpack.c.b16 %v950, %v944
  %v1365 = vpack.c.b16 %v951, %v945
  %v1366 = vpack.c.b16 %v952, %v946
  %v1367 = vpack.c.b16 %v953, %v947
  %v1368 = vpack.c.b16 %v954, %v948
  %v1369 = vpack.c.b16 %v961, %v955
  %v1370 = vpack.c.b16 %v962, %v956
  %v1371 = vpack.c.b16 %v963, %v957
  %v1372 = vpack.c.b16 %v964, %v958
  %v1373 = vpack.c.b16 %v965, %v959
  %v1374 = vpack.c.b16 %v966, %v960
  %v1375 = vpack.c.b16 %v973, %v967
  %v1376 = vpack.c.b16 %v974, %v968
  %v1377 = vpack.c.b16 %v975, %v969
  %v1378 = vpack.c.b16 %v976, %v970
  %v1379 = vpack.c.b16 %v977, %v971
  %v1380 = vpack.c.b16 %v978, %v972
  %v1381 = vpack.c.b16 %v985, %v979
  %v1382 = vpack.c.b16 %v986, %v980
  %v1383 = vpack.c.b16 %v987, %v981
  %v1384 = vpack.c.b16 %v988, %v982
  %v1385 = vpack.c.b16 %v989, %v983
  %v1386 = vpack.c.b16 %v990, %v984
  %v1387 = vpack.c.b16 %v997, %v991
  %v1388 = vpack.c.b16 %v998, %v992
  %v1389 = vpack.c.b16 %v999, %v993
  %v1390 = vpack.c.b16 %v1000, %v994
  %v1391 = vpack.c.b16 %v1001, %v995
  %v1392 = vpack.c.b16 %v1002, %v996
  %v1393 = vpack.c.b16 %v1009, %v1003
  %v1394 = vpack.c.b16 %v1010, %v1004
  %v1395 = vpack.c.b16 %v1011, %v1005
  %v1396 = vpack.c.b16 %v1012, %v1006
  %v1397 = vpack.c.b16 %v1013, %v1007
  %v1398 = vpack.c.b16 %v1014, %v1008
  %v1399 = vpack.c.b16 %v1021, %v1015
  %v1400 = vpack.c.b16 %v1022, %v1016
  %v1401 = vpack.c.b16 %v1023, %v1017
  %v1402 = vpack.c.b16 %v1024, %v1018
  %v1403 = vpack.c.b16 %v1025, %v1019
  %v1404 = vpack.c.b16 %v1026, %v1020
  %v1405 = vpack.c.b16 %v1033, %v1027
  %v1406 = vpack.c.b16 %v1034, %v1028
  %v1407 = vpack.c.b16 %v1035, %v1029
  %v1408 = vpack.c.b16 %v1036, %v1030
  %v1409 = vpack.c.b16 %v1037, %v1031
  %v1410 = vpack.c.b16 %v1038, %v1032
  %v1411 = vpack.c.b16 %v1045, %v1039
  %v1412 = vpack.c.b16 %v1046, %v1040
  %v1413 = vpack.c.b16 %v1047, %v1041
  %v1414 = vpack.c.b16 %v1048, %v1042
  %v1415 = vpack.c.b16 %v1049, %v1043
  %v1416 = vpack.c.b16 %v1050, %v1044
  %v1417 = vpack.c.b16 %v1057, %v1051
  %v1418 = vpack.c.b16 %v1058, %v1052
  %v1419 = vpack.c.b16 %v1059, %v1053
  %v1420 = vpack.c.b16 %v1060, %v1054
  %v1421 = vpack.c.b16 %v1061, %v1055
  %v1422 = vpack.c.b16 %v1062, %v1056
  %v1423 = vpack.c.b16 %v1069, %v1063
  %v1424 = vpack.c.b16 %v1070, %v1064
  %v1425 = vpack.c.b16 %v1071, %v1065
  %v1426 = vpack.c.b16 %v1072, %v1066
  %v1427 = vpack.c.b16 %v1073, %v1067
  %v1428 = vpack.c.b16 %v1074, %v1068
  %v1429 = vpack.c.b16 %v1081, %v1075
  %v1430 = vpack.c.b16 %v1082, %v1076
  %v1431 = vpack.c.b16 %v1083, %v1077
  %v1432 = vpack.c.b16 %v1084, %v1078
  %v1433 = vpack.c.b16 %v1085, %v1079
  %v1434 = vpack.c.b16 %v1086, %v1080
  %v1435 = vpack.c.b16 %v1093, %v1087
  %v1436 = vpack.c.b16 %v1094, %v1088
  %v1437 = vpack.c.b16 %v1095, %v1089
  %v1438 = vpack.c.b16 %v1096, %v1090
  %v1439 = vpack.c.b16 %v1097, %v1091
  %v1440 = vpack.c.b16 %v1098, %v1092
  %v1441 = vpack.c.b16 %v1105, %v1099
  %v1442 = vpack.c.b16 %v1106, %v1100
  %v1443 = vpack.c.b16 %v1107, %v1101
  %v1444 = vpack.c.b16 %v1108, %v1102
  %v1445 = vpack.c.b16 %v1109, %v1103
  %v1446 = vpack.c.b16 %v1110, %v1104
  %v1447 = vpack.c.b16 %v1117, %v1111
  %v1448 = vpack.c.b16 %v1118, %v1112
  %v1449 = vpack.c.b16 %v1119, %v1113
  %v1450 = vpack.c.b16 %v1120, %v1114
  %v1451 = vpack.c.b16 %v1121, %v1115
  %v1452 = vpack.c.b16 %v1122, %v1116
  %v1453 = vpack.c.b16 %v1129, %v1123
  %v1454 = vpack.c.b16 %v1130, %v1124
  %v1455 = vpack.c.b16 %v1131, %v1125
  %v1456 = vpack.c.b16 %v1132, %v1126
  %v1457 = vpack.c.b16 %v1133, %v1127
  %v1458 = vpack.c.b16 %v1134, %v1128
  %v1459 = vpack.c.b16 %v1141, %v1135
  %v1460 = vpack.c.b16 %v1142, %v1136
  %v1461 = vpack.c.b16 %v1143, %v1137
  %v1462 = vpack.c.b16 %v1144, %v1138
  %v1463 = vpack.c.b16 %v1145, %v1139
  %v1464 = vpack.c.b16 %v1146, %v1140
  %v1465 = vpack.c.b16 %v1153, %v1147
  %v1466 = vpack.c.b16 %v1154, %v1148
  %v1467 = vpack.c.b16 %v1155, %v1149
  %v1468 = vpack.c.b16 %v1156, %v1150
  %v1469 = vpack.c.b16 %v1157, %v1151
  %v1470 = vpack.c.b16 %v1158, %v1152
  %v1471 = vpack.c.b16 %v1165, %v1159
  %v1472 = vpack.c.b16 %v1166, %v1160
  %v1473 = vpack.c.b16 %v1167, %v1161
  %v1474 = vpack.c.b16 %v1168, %v1162
  %v1475 = vpack.c.b16 %v1169, %v1163
  %v1476 = vpack.c.b16 %v1170, %v1164
  %v1477 = vpack.c.b16 %v1177, %v1171
  %v1478 = vpack.c.b16 %v1178, %v1172
  %v1479 = vpack.c.b16 %v1179, %v1173
  %v1480 = vpack.c.b16 %v1180, %v1174
  %v1481 = vpack.c.b16 %v1181, %v1175
  %v1482 = vpack.c.b16 %v1182, %v1176
  %v1483 = vpack.c.b16 %v1189, %v1183
  %v1484 = vpack.c.b16 %v1190, %v1184
  %v1485 = vpack.c.b16 %v1191, %v1185
  %v1486 = vpack.c.b16 %v1192, %v1186
  %v1487 = vpack.c.b16 %v1193, %v1187
  %v1488 = vpack.c.b16 %v1194, %v1188
  %v1489 = vpack.c.b16 %v1201, %v1195
  %v1490 = vpack.c.b16 %v1202, %v1196
  %v1491 = vpack.c.b16 %v1203, %v1197
  %v1492 = vpack.c.b16 %v1204, %v1198
  %v1493 = vpack.c.b16 %v1205, %v1199
  %v1494 = vpack.c.b16 %v1206, %v1200
  %1783 = vmatpush.bf16.msra.mxu0 %v1249
  %1784 = vmatpush.bf16.msra.mxu0 %v1243
  %1785 = vmatpush.bf16.msra.mxu0 %v1237
  %1786 = vmatpush.bf16.msra.mxu0 %v1231
  %1787 = vmatpush.bf16.msra.mxu0 %v1225
  %1788 = vmatpush.bf16.msra.mxu0 %v1219
  %1789 = vmatpush.bf16.msra.mxu0 %v1213
  %1790 = vmatpush.bf16.msra.mxu0 %v1207
  %1791 = vmatmul.bf16.gmra.mxu0 %v35
  %v1792 = vpop.f32.mrf.mxu0
  %v1793 = vadd.f32 %v331, %v1792
  %v1794 = vpop.f32.mrf.mxu0
  %1795 = vdwg.mxu0
  %1796 = vmatpush.bf16.msra.mxu0 %v1297
  %1797 = vmatpush.bf16.msra.mxu0 %v1291
  %1798 = vmatpush.bf16.msra.mxu0 %v1285
  %1799 = vmatpush.bf16.msra.mxu0 %v1279
  %1800 = vmatpush.bf16.msra.mxu0 %v1273
  %1801 = vmatpush.bf16.msra.mxu0 %v1267
  %1802 = vmatpush.bf16.msra.mxu0 %v1261
  %1803 = vmatpush.bf16.msra.mxu0 %v1255
  %1804 = vmatmul.bf16.gmra.mxu0 %v36
  %v1805 = vpop.f32.mrf.mxu0
  %v1806 = vadd.f32 %v1793, %v1805
  %v1807 = vpop.f32.mrf.mxu0
  %1808 = vdwg.mxu0
  %1809 = vmatpush.bf16.msra.mxu0 %v1345
  %1810 = vmatpush.bf16.msra.mxu0 %v1339
  %1811 = vmatpush.bf16.msra.mxu0 %v1333
  %1812 = vmatpush.bf16.msra.mxu0 %v1327
  %1813 = vmatpush.bf16.msra.mxu0 %v1321
  %1814 = vmatpush.bf16.msra.mxu0 %v1315
  %1815 = vmatpush.bf16.msra.mxu0 %v1309
  %1816 = vmatpush.bf16.msra.mxu0 %v1303
  %1817 = vmatmul.bf16.gmra.mxu0 %v37
  %v1818 = vpop.f32.mrf.mxu0
  %v1819 = vadd.f32 %v1806, %v1818
  %v1820 = vpop.f32.mrf.mxu0
  %1821 = vdwg.mxu0
  %1822 = vmatpush.bf16.msra.mxu0 %v1393
  %1823 = vmatpush.bf16.msra.mxu0 %v1387
  %1824 = vmatpush.bf16.msra.mxu0 %v1381
  %1825 = vmatpush.bf16.msra.mxu0 %v1375
  %1826 = vmatpush.bf16.msra.mxu0 %v1369
  %1827 = vmatpush.bf16.msra.mxu0 %v1363
  %1828 = vmatpush.bf16.msra.mxu0 %v1357
  %1829 = vmatpush.bf16.msra.mxu0 %v1351
  %1830 = vmatmul.bf16.gmra.mxu0 %v38
  %v1831 = vpop.f32.mrf.mxu0
  %v1832 = vadd.f32 %v1819, %v1831
  %v1833 = vpop.f32.mrf.mxu0
  %1834 = vdwg.mxu0
  %1835 = vmatpush.bf16.msra.mxu0 %v1441
  %1836 = vmatpush.bf16.msra.mxu0 %v1435
  %1837 = vmatpush.bf16.msra.mxu0 %v1429
  %1838 = vmatpush.bf16.msra.mxu0 %v1423
  %1839 = vmatpush.bf16.msra.mxu0 %v1417
  %1840 = vmatpush.bf16.msra.mxu0 %v1411
  %1841 = vmatpush.bf16.msra.mxu0 %v1405
  %1842 = vmatpush.bf16.msra.mxu0 %v1399
  %1843 = vmatmul.bf16.gmra.mxu0 %v39
  %v1844 = vpop.f32.mrf.mxu0
  %v1845 = vadd.f32 %v1832, %v1844
  %v1846 = vpop.f32.mrf.mxu0
  %1847 = vdwg.mxu0
  %1848 = vmatpush.bf16.msra.mxu0 %v1489
  %1849 = vmatpush.bf16.msra.mxu0 %v1483
  %1850 = vmatpush.bf16.msra.mxu0 %v1477
  %1851 = vmatpush.bf16.msra.mxu0 %v1471
  %1852 = vmatpush.bf16.msra.mxu0 %v1465
  %1853 = vmatpush.bf16.msra.mxu0 %v1459
  %1854 = vmatpush.bf16.msra.mxu0 %v1453
  %1855 = vmatpush.bf16.msra.mxu0 %v1447
  %1856 = vmatmul.bf16.gmra.mxu0 %v40
  %v1857 = vpop.f32.mrf.mxu0
  %v1858 = vadd.f32 %v1845, %v1857
  %v1859 = vpop.f32.mrf.mxu0
  %1860 = vdwg.mxu0
  %1861 = vmatpush.bf16.msra.mxu0 %v1250
  %1862 = vmatpush.bf16.msra.mxu0 %v1244
  %1863 = vmatpush.bf16.msra.mxu0 %v1238
  %1864 = vmatpush.bf16.msra.mxu0 %v1232
  %1865 = vmatpush.bf16.msra.mxu0 %v1226
  %1866 = vmatpush.bf16.msra.mxu0 %v1220
  %1867 = vmatpush.bf16.msra.mxu0 %v1214
  %1868 = vmatpush.bf16.msra.mxu0 %v1208
  %1869 = vmatmul.bf16.gmra.mxu0 %v35
  %v1870 = vpop.f32.mrf.mxu0
  %v1871 = vadd.f32 %v332, %v1870
  %v1872 = vpop.f32.mrf.mxu0
  %1873 = vdwg.mxu0
  %1874 = vmatpush.bf16.msra.mxu0 %v1298
  %1875 = vmatpush.bf16.msra.mxu0 %v1292
  %1876 = vmatpush.bf16.msra.mxu0 %v1286
  %1877 = vmatpush.bf16.msra.mxu0 %v1280
  %1878 = vmatpush.bf16.msra.mxu0 %v1274
  %1879 = vmatpush.bf16.msra.mxu0 %v1268
  %1880 = vmatpush.bf16.msra.mxu0 %v1262
  %1881 = vmatpush.bf16.msra.mxu0 %v1256
  %1882 = vmatmul.bf16.gmra.mxu0 %v36
  %v1883 = vpop.f32.mrf.mxu0
  %v1884 = vadd.f32 %v1871, %v1883
  %v1885 = vpop.f32.mrf.mxu0
  %1886 = vdwg.mxu0
  %1887 = vmatpush.bf16.msra.mxu0 %v1346
  %1888 = vmatpush.bf16.msra.mxu0 %v1340
  %1889 = vmatpush.bf16.msra.mxu0 %v1334
  %1890 = vmatpush.bf16.msra.mxu0 %v1328
  %1891 = vmatpush.bf16.msra.mxu0 %v1322
  %1892 = vmatpush.bf16.msra.mxu0 %v1316
  %1893 = vmatpush.bf16.msra.mxu0 %v1310
  %1894 = vmatpush.bf16.msra.mxu0 %v1304
  %1895 = vmatmul.bf16.gmra.mxu0 %v37
  %v1896 = vpop.f32.mrf.mxu0
  %v1897 = vadd.f32 %v1884, %v1896
  %v1898 = vpop.f32.mrf.mxu0
  %1899 = vdwg.mxu0
  %1900 = vmatpush.bf16.msra.mxu0 %v1394
  %1901 = vmatpush.bf16.msra.mxu0 %v1388
  %1902 = vmatpush.bf16.msra.mxu0 %v1382
  %1903 = vmatpush.bf16.msra.mxu0 %v1376
  %1904 = vmatpush.bf16.msra.mxu0 %v1370
  %1905 = vmatpush.bf16.msra.mxu0 %v1364
  %1906 = vmatpush.bf16.msra.mxu0 %v1358
  %1907 = vmatpush.bf16.msra.mxu0 %v1352
  %1908 = vmatmul.bf16.gmra.mxu0 %v38
  %v1909 = vpop.f32.mrf.mxu0
  %v1910 = vadd.f32 %v1897, %v1909
  %v1911 = vpop.f32.mrf.mxu0
  %1912 = vdwg.mxu0
  %1913 = vmatpush.bf16.msra.mxu0 %v1442
  %1914 = vmatpush.bf16.msra.mxu0 %v1436
  %1915 = vmatpush.bf16.msra.mxu0 %v1430
  %1916 = vmatpush.bf16.msra.mxu0 %v1424
  %1917 = vmatpush.bf16.msra.mxu0 %v1418
  %1918 = vmatpush.bf16.msra.mxu0 %v1412
  %1919 = vmatpush.bf16.msra.mxu0 %v1406
  %1920 = vmatpush.bf16.msra.mxu0 %v1400
  %1921 = vmatmul.bf16.gmra.mxu0 %v39
  %v1922 = vpop.f32.mrf.mxu0
  %v1923 = vadd.f32 %v1910, %v1922
  %v1924 = vpop.f32.mrf.mxu0
  %1925 = vdwg.mxu0
  %1926 = vmatpush.bf16.msra.mxu0 %v1490
  %1927 = vmatpush.bf16.msra.mxu0 %v1484
  %1928 = vmatpush.bf16.msra.mxu0 %v1478
  %1929 = vmatpush.bf16.msra.mxu0 %v1472
  %1930 = vmatpush.bf16.msra.mxu0 %v1466
  %1931 = vmatpush.bf16.msra.mxu0 %v1460
  %1932 = vmatpush.bf16.msra.mxu0 %v1454
  %1933 = vmatpush.bf16.msra.mxu0 %v1448
  %1934 = vmatmul.bf16.gmra.mxu0 %v40
  %v1935 = vpop.f32.mrf.mxu0
  %v1936 = vadd.f32 %v1923, %v1935
  %v1937 = vpop.f32.mrf.mxu0
  %1938 = vdwg.mxu0
  %1939 = vmatpush.bf16.msra.mxu0 %v1251
  %1940 = vmatpush.bf16.msra.mxu0 %v1245
  %1941 = vmatpush.bf16.msra.mxu0 %v1239
  %1942 = vmatpush.bf16.msra.mxu0 %v1233
  %1943 = vmatpush.bf16.msra.mxu0 %v1227
  %1944 = vmatpush.bf16.msra.mxu0 %v1221
  %1945 = vmatpush.bf16.msra.mxu0 %v1215
  %1946 = vmatpush.bf16.msra.mxu0 %v1209
  %1947 = vmatmul.bf16.gmra.mxu0 %v35
  %v1948 = vpop.f32.mrf.mxu0
  %v1949 = vadd.f32 %v333, %v1948
  %v1950 = vpop.f32.mrf.mxu0
  %1951 = vdwg.mxu0
  %1952 = vmatpush.bf16.msra.mxu0 %v1299
  %1953 = vmatpush.bf16.msra.mxu0 %v1293
  %1954 = vmatpush.bf16.msra.mxu0 %v1287
  %1955 = vmatpush.bf16.msra.mxu0 %v1281
  %1956 = vmatpush.bf16.msra.mxu0 %v1275
  %1957 = vmatpush.bf16.msra.mxu0 %v1269
  %1958 = vmatpush.bf16.msra.mxu0 %v1263
  %1959 = vmatpush.bf16.msra.mxu0 %v1257
  %1960 = vmatmul.bf16.gmra.mxu0 %v36
  %v1961 = vpop.f32.mrf.mxu0
  %v1962 = vadd.f32 %v1949, %v1961
  %v1963 = vpop.f32.mrf.mxu0
  %1964 = vdwg.mxu0
  %1965 = vmatpush.bf16.msra.mxu0 %v1347
  %1966 = vmatpush.bf16.msra.mxu0 %v1341
  %1967 = vmatpush.bf16.msra.mxu0 %v1335
  %1968 = vmatpush.bf16.msra.mxu0 %v1329
  %1969 = vmatpush.bf16.msra.mxu0 %v1323
  %1970 = vmatpush.bf16.msra.mxu0 %v1317
  %1971 = vmatpush.bf16.msra.mxu0 %v1311
  %1972 = vmatpush.bf16.msra.mxu0 %v1305
  %1973 = vmatmul.bf16.gmra.mxu0 %v37
  %v1974 = vpop.f32.mrf.mxu0
  %v1975 = vadd.f32 %v1962, %v1974
  %v1976 = vpop.f32.mrf.mxu0
  %1977 = vdwg.mxu0
  %1978 = vmatpush.bf16.msra.mxu0 %v1395
  %1979 = vmatpush.bf16.msra.mxu0 %v1389
  %1980 = vmatpush.bf16.msra.mxu0 %v1383
  %1981 = vmatpush.bf16.msra.mxu0 %v1377
  %1982 = vmatpush.bf16.msra.mxu0 %v1371
  %1983 = vmatpush.bf16.msra.mxu0 %v1365
  %1984 = vmatpush.bf16.msra.mxu0 %v1359
  %1985 = vmatpush.bf16.msra.mxu0 %v1353
  %1986 = vmatmul.bf16.gmra.mxu0 %v38
  %v1987 = vpop.f32.mrf.mxu0
  %v1988 = vadd.f32 %v1975, %v1987
  %v1989 = vpop.f32.mrf.mxu0
  %1990 = vdwg.mxu0
  %1991 = vmatpush.bf16.msra.mxu0 %v1443
  %1992 = vmatpush.bf16.msra.mxu0 %v1437
  %1993 = vmatpush.bf16.msra.mxu0 %v1431
  %1994 = vmatpush.bf16.msra.mxu0 %v1425
  %1995 = vmatpush.bf16.msra.mxu0 %v1419
  %1996 = vmatpush.bf16.msra.mxu0 %v1413
  %1997 = vmatpush.bf16.msra.mxu0 %v1407
  %1998 = vmatpush.bf16.msra.mxu0 %v1401
  %1999 = vmatmul.bf16.gmra.mxu0 %v39
  %v2000 = vpop.f32.mrf.mxu0
  %v2001 = vadd.f32 %v1988, %v2000
  %v2002 = vpop.f32.mrf.mxu0
  %2003 = vdwg.mxu0
  %2004 = vmatpush.bf16.msra.mxu0 %v1491
  %2005 = vmatpush.bf16.msra.mxu0 %v1485
  %2006 = vmatpush.bf16.msra.mxu0 %v1479
  %2007 = vmatpush.bf16.msra.mxu0 %v1473
  %2008 = vmatpush.bf16.msra.mxu0 %v1467
  %2009 = vmatpush.bf16.msra.mxu0 %v1461
  %2010 = vmatpush.bf16.msra.mxu0 %v1455
  %2011 = vmatpush.bf16.msra.mxu0 %v1449
  %2012 = vmatmul.bf16.gmra.mxu0 %v40
  %v2013 = vpop.f32.mrf.mxu0
  %v2014 = vadd.f32 %v2001, %v2013
  %v2015 = vpop.f32.mrf.mxu0
  %2016 = vdwg.mxu0
  %2017 = vmatpush.bf16.msra.mxu0 %v1252
  %2018 = vmatpush.bf16.msra.mxu0 %v1246
  %2019 = vmatpush.bf16.msra.mxu0 %v1240
  %2020 = vmatpush.bf16.msra.mxu0 %v1234
  %2021 = vmatpush.bf16.msra.mxu0 %v1228
  %2022 = vmatpush.bf16.msra.mxu0 %v1222
  %2023 = vmatpush.bf16.msra.mxu0 %v1216
  %2024 = vmatpush.bf16.msra.mxu0 %v1210
  %2025 = vmatmul.bf16.gmra.mxu0 %v35
  %v2026 = vpop.f32.mrf.mxu0
  %v2027 = vadd.f32 %v334, %v2026
  %v2028 = vpop.f32.mrf.mxu0
  %2029 = vdwg.mxu0
  %2030 = vmatpush.bf16.msra.mxu0 %v1300
  %2031 = vmatpush.bf16.msra.mxu0 %v1294
  %2032 = vmatpush.bf16.msra.mxu0 %v1288
  %2033 = vmatpush.bf16.msra.mxu0 %v1282
  %2034 = vmatpush.bf16.msra.mxu0 %v1276
  %2035 = vmatpush.bf16.msra.mxu0 %v1270
  %2036 = vmatpush.bf16.msra.mxu0 %v1264
  %2037 = vmatpush.bf16.msra.mxu0 %v1258
  %2038 = vmatmul.bf16.gmra.mxu0 %v36
  %v2039 = vpop.f32.mrf.mxu0
  %v2040 = vadd.f32 %v2027, %v2039
  %v2041 = vpop.f32.mrf.mxu0
  %2042 = vdwg.mxu0
  %2043 = vmatpush.bf16.msra.mxu0 %v1348
  %2044 = vmatpush.bf16.msra.mxu0 %v1342
  %2045 = vmatpush.bf16.msra.mxu0 %v1336
  %2046 = vmatpush.bf16.msra.mxu0 %v1330
  %2047 = vmatpush.bf16.msra.mxu0 %v1324
  %2048 = vmatpush.bf16.msra.mxu0 %v1318
  %2049 = vmatpush.bf16.msra.mxu0 %v1312
  %2050 = vmatpush.bf16.msra.mxu0 %v1306
  %2051 = vmatmul.bf16.gmra.mxu0 %v37
  %v2052 = vpop.f32.mrf.mxu0
  %v2053 = vadd.f32 %v2040, %v2052
  %v2054 = vpop.f32.mrf.mxu0
  %2055 = vdwg.mxu0
  %2056 = vmatpush.bf16.msra.mxu0 %v1396
  %2057 = vmatpush.bf16.msra.mxu0 %v1390
  %2058 = vmatpush.bf16.msra.mxu0 %v1384
  %2059 = vmatpush.bf16.msra.mxu0 %v1378
  %2060 = vmatpush.bf16.msra.mxu0 %v1372
  %2061 = vmatpush.bf16.msra.mxu0 %v1366
  %2062 = vmatpush.bf16.msra.mxu0 %v1360
  %2063 = vmatpush.bf16.msra.mxu0 %v1354
  %2064 = vmatmul.bf16.gmra.mxu0 %v38
  %v2065 = vpop.f32.mrf.mxu0
  %v2066 = vadd.f32 %v2053, %v2065
  %v2067 = vpop.f32.mrf.mxu0
  %2068 = vdwg.mxu0
  %2069 = vmatpush.bf16.msra.mxu0 %v1444
  %2070 = vmatpush.bf16.msra.mxu0 %v1438
  %2071 = vmatpush.bf16.msra.mxu0 %v1432
  %2072 = vmatpush.bf16.msra.mxu0 %v1426
  %2073 = vmatpush.bf16.msra.mxu0 %v1420
  %2074 = vmatpush.bf16.msra.mxu0 %v1414
  %2075 = vmatpush.bf16.msra.mxu0 %v1408
  %2076 = vmatpush.bf16.msra.mxu0 %v1402
  %2077 = vmatmul.bf16.gmra.mxu0 %v39
  %v2078 = vpop.f32.mrf.mxu0
  %v2079 = vadd.f32 %v2066, %v2078
  %v2080 = vpop.f32.mrf.mxu0
  %2081 = vdwg.mxu0
  %2082 = vmatpush.bf16.msra.mxu0 %v1492
  %2083 = vmatpush.bf16.msra.mxu0 %v1486
  %2084 = vmatpush.bf16.msra.mxu0 %v1480
  %2085 = vmatpush.bf16.msra.mxu0 %v1474
  %2086 = vmatpush.bf16.msra.mxu0 %v1468
  %2087 = vmatpush.bf16.msra.mxu0 %v1462
  %2088 = vmatpush.bf16.msra.mxu0 %v1456
  %2089 = vmatpush.bf16.msra.mxu0 %v1450
  %2090 = vmatmul.bf16.gmra.mxu0 %v40
  %v2091 = vpop.f32.mrf.mxu0
  %v2092 = vadd.f32 %v2079, %v2091
  %v2093 = vpop.f32.mrf.mxu0
  %2094 = vdwg.mxu0
  %2095 = vmatpush.bf16.msra.mxu0 %v1253
  %2096 = vmatpush.bf16.msra.mxu0 %v1247
  %2097 = vmatpush.bf16.msra.mxu0 %v1241
  %2098 = vmatpush.bf16.msra.mxu0 %v1235
  %2099 = vmatpush.bf16.msra.mxu0 %v1229
  %2100 = vmatpush.bf16.msra.mxu0 %v1223
  %2101 = vmatpush.bf16.msra.mxu0 %v1217
  %2102 = vmatpush.bf16.msra.mxu0 %v1211
  %2103 = vmatmul.bf16.gmra.mxu0 %v35
  %v2104 = vpop.f32.mrf.mxu0
  %v2105 = vadd.f32 %v335, %v2104
  %v2106 = vpop.f32.mrf.mxu0
  %2107 = vdwg.mxu0
  %2108 = vmatpush.bf16.msra.mxu0 %v1301
  %2109 = vmatpush.bf16.msra.mxu0 %v1295
  %2110 = vmatpush.bf16.msra.mxu0 %v1289
  %2111 = vmatpush.bf16.msra.mxu0 %v1283
  %2112 = vmatpush.bf16.msra.mxu0 %v1277
  %2113 = vmatpush.bf16.msra.mxu0 %v1271
  %2114 = vmatpush.bf16.msra.mxu0 %v1265
  %2115 = vmatpush.bf16.msra.mxu0 %v1259
  %2116 = vmatmul.bf16.gmra.mxu0 %v36
  %v2117 = vpop.f32.mrf.mxu0
  %v2118 = vadd.f32 %v2105, %v2117
  %v2119 = vpop.f32.mrf.mxu0
  %2120 = vdwg.mxu0
  %2121 = vmatpush.bf16.msra.mxu0 %v1349
  %2122 = vmatpush.bf16.msra.mxu0 %v1343
  %2123 = vmatpush.bf16.msra.mxu0 %v1337
  %2124 = vmatpush.bf16.msra.mxu0 %v1331
  %2125 = vmatpush.bf16.msra.mxu0 %v1325
  %2126 = vmatpush.bf16.msra.mxu0 %v1319
  %2127 = vmatpush.bf16.msra.mxu0 %v1313
  %2128 = vmatpush.bf16.msra.mxu0 %v1307
  %2129 = vmatmul.bf16.gmra.mxu0 %v37
  %v2130 = vpop.f32.mrf.mxu0
  %v2131 = vadd.f32 %v2118, %v2130
  %v2132 = vpop.f32.mrf.mxu0
  %2133 = vdwg.mxu0
  %2134 = vmatpush.bf16.msra.mxu0 %v1397
  %2135 = vmatpush.bf16.msra.mxu0 %v1391
  %2136 = vmatpush.bf16.msra.mxu0 %v1385
  %2137 = vmatpush.bf16.msra.mxu0 %v1379
  %2138 = vmatpush.bf16.msra.mxu0 %v1373
  %2139 = vmatpush.bf16.msra.mxu0 %v1367
  %2140 = vmatpush.bf16.msra.mxu0 %v1361
  %2141 = vmatpush.bf16.msra.mxu0 %v1355
  %2142 = vmatmul.bf16.gmra.mxu0 %v38
  %v2143 = vpop.f32.mrf.mxu0
  %v2144 = vadd.f32 %v2131, %v2143
  %v2145 = vpop.f32.mrf.mxu0
  %2146 = vdwg.mxu0
  %2147 = vmatpush.bf16.msra.mxu0 %v1445
  %2148 = vmatpush.bf16.msra.mxu0 %v1439
  %2149 = vmatpush.bf16.msra.mxu0 %v1433
  %2150 = vmatpush.bf16.msra.mxu0 %v1427
  %2151 = vmatpush.bf16.msra.mxu0 %v1421
  %2152 = vmatpush.bf16.msra.mxu0 %v1415
  %2153 = vmatpush.bf16.msra.mxu0 %v1409
  %2154 = vmatpush.bf16.msra.mxu0 %v1403
  %2155 = vmatmul.bf16.gmra.mxu0 %v39
  %v2156 = vpop.f32.mrf.mxu0
  %v2157 = vadd.f32 %v2144, %v2156
  %v2158 = vpop.f32.mrf.mxu0
  %2159 = vdwg.mxu0
  %2160 = vmatpush.bf16.msra.mxu0 %v1493
  %2161 = vmatpush.bf16.msra.mxu0 %v1487
  %2162 = vmatpush.bf16.msra.mxu0 %v1481
  %2163 = vmatpush.bf16.msra.mxu0 %v1475
  %2164 = vmatpush.bf16.msra.mxu0 %v1469
  %2165 = vmatpush.bf16.msra.mxu0 %v1463
  %2166 = vmatpush.bf16.msra.mxu0 %v1457
  %2167 = vmatpush.bf16.msra.mxu0 %v1451
  %2168 = vmatmul.bf16.gmra.mxu0 %v40
  %v2169 = vpop.f32.mrf.mxu0
  %v2170 = vadd.f32 %v2157, %v2169
  %v2171 = vpop.f32.mrf.mxu0
  %2172 = vdwg.mxu0
  %2173 = vmatpush.bf16.msra.mxu0 %v1254
  %2174 = vmatpush.bf16.msra.mxu0 %v1248
  %2175 = vmatpush.bf16.msra.mxu0 %v1242
  %2176 = vmatpush.bf16.msra.mxu0 %v1236
  %2177 = vmatpush.bf16.msra.mxu0 %v1230
  %2178 = vmatpush.bf16.msra.mxu0 %v1224
  %2179 = vmatpush.bf16.msra.mxu0 %v1218
  %2180 = vmatpush.bf16.msra.mxu0 %v1212
  %2181 = vmatmul.bf16.gmra.mxu0 %v35
  %v2182 = vpop.f32.mrf.mxu0
  %v2183 = vadd.f32 %v336, %v2182
  %v2184 = vpop.f32.mrf.mxu0
  %2185 = vdwg.mxu0
  %2186 = vmatpush.bf16.msra.mxu0 %v1302
  %2187 = vmatpush.bf16.msra.mxu0 %v1296
  %2188 = vmatpush.bf16.msra.mxu0 %v1290
  %2189 = vmatpush.bf16.msra.mxu0 %v1284
  %2190 = vmatpush.bf16.msra.mxu0 %v1278
  %2191 = vmatpush.bf16.msra.mxu0 %v1272
  %2192 = vmatpush.bf16.msra.mxu0 %v1266
  %2193 = vmatpush.bf16.msra.mxu0 %v1260
  %2194 = vmatmul.bf16.gmra.mxu0 %v36
  %v2195 = vpop.f32.mrf.mxu0
  %v2196 = vadd.f32 %v2183, %v2195
  %v2197 = vpop.f32.mrf.mxu0
  %2198 = vdwg.mxu0
  %2199 = vmatpush.bf16.msra.mxu0 %v1350
  %2200 = vmatpush.bf16.msra.mxu0 %v1344
  %2201 = vmatpush.bf16.msra.mxu0 %v1338
  %2202 = vmatpush.bf16.msra.mxu0 %v1332
  %2203 = vmatpush.bf16.msra.mxu0 %v1326
  %2204 = vmatpush.bf16.msra.mxu0 %v1320
  %2205 = vmatpush.bf16.msra.mxu0 %v1314
  %2206 = vmatpush.bf16.msra.mxu0 %v1308
  %2207 = vmatmul.bf16.gmra.mxu0 %v37
  %v2208 = vpop.f32.mrf.mxu0
  %v2209 = vadd.f32 %v2196, %v2208
  %v2210 = vpop.f32.mrf.mxu0
  %2211 = vdwg.mxu0
  %2212 = vmatpush.bf16.msra.mxu0 %v1398
  %2213 = vmatpush.bf16.msra.mxu0 %v1392
  %2214 = vmatpush.bf16.msra.mxu0 %v1386
  %2215 = vmatpush.bf16.msra.mxu0 %v1380
  %2216 = vmatpush.bf16.msra.mxu0 %v1374
  %2217 = vmatpush.bf16.msra.mxu0 %v1368
  %2218 = vmatpush.bf16.msra.mxu0 %v1362
  %2219 = vmatpush.bf16.msra.mxu0 %v1356
  %2220 = vmatmul.bf16.gmra.mxu0 %v38
  %v2221 = vpop.f32.mrf.mxu0
  %v2222 = vadd.f32 %v2209, %v2221
  %v2223 = vpop.f32.mrf.mxu0
  %2224 = vdwg.mxu0
  %2225 = vmatpush.bf16.msra.mxu0 %v1446
  %2226 = vmatpush.bf16.msra.mxu0 %v1440
  %2227 = vmatpush.bf16.msra.mxu0 %v1434
  %2228 = vmatpush.bf16.msra.mxu0 %v1428
  %2229 = vmatpush.bf16.msra.mxu0 %v1422
  %2230 = vmatpush.bf16.msra.mxu0 %v1416
  %2231 = vmatpush.bf16.msra.mxu0 %v1410
  %2232 = vmatpush.bf16.msra.mxu0 %v1404
  %2233 = vmatmul.bf16.gmra.mxu0 %v39
  %v2234 = vpop.f32.mrf.mxu0
  %v2235 = vadd.f32 %v2222, %v2234
  %v2236 = vpop.f32.mrf.mxu0
  %2237 = vdwg.mxu0
  %2238 = vmatpush.bf16.msra.mxu0 %v1494
  %2239 = vmatpush.bf16.msra.mxu0 %v1488
  %2240 = vmatpush.bf16.msra.mxu0 %v1482
  %2241 = vmatpush.bf16.msra.mxu0 %v1476
  %2242 = vmatpush.bf16.msra.mxu0 %v1470
  %2243 = vmatpush.bf16.msra.mxu0 %v1464
  %2244 = vmatpush.bf16.msra.mxu0 %v1458
  %2245 = vmatpush.bf16.msra.mxu0 %v1452
  %2246 = vmatmul.bf16.gmra.mxu0 %v40
  %v2247 = vpop.f32.mrf.mxu0
  %v2248 = vadd.f32 %v2235, %v2247
  %v2249 = vpop.f32.mrf.mxu0
  %2250 = vdwg.mxu0
  %v2251 = vmax.f32 %v1858, 0.0
  %v2252 = vmax.f32 %v1936, 0.0
  %v2253 = vmax.f32 %v2014, 0.0
  %v2254 = vmax.f32 %v2092, 0.0
  %v2255 = vmax.f32 %v2170, 0.0
  %v2256 = vmax.f32 %v2248, 0.0
  %v2257 = vpack.c.bf16 %v2251, %v2251
  %v2258 = vpack.c.bf16 %v2252, %v2252
  %v2259 = vpack.c.bf16 %v2253, %v2253
  %v2260 = vpack.c.bf16 %v2254, %v2254
  %v2261 = vpack.c.bf16 %v2255, %v2255
  %v2262 = vpack.c.bf16 %v2256, %v2256
  %v2263 = vld [vmem:[%s3] sm:$0xff]
  %v2264 = vld [vmem:[%s3 + $0x8] sm:$0xff]
  %v2265 = vld [vmem:[%s3 + $0x10] sm:$0xff]
  %v2266 = vld [vmem:[%s3 + $0x18] sm:$0xff]
  %v2267 = vld [vmem:[%s3 + $0x20] sm:$0xff]
  %v2268 = vld [vmem:[%s3 + $0x28] sm:$0xff]
  %v2269 = vld [vmem:[%s3 + $0x30] sm:$0xff]
  %v2270 = vld [vmem:[%s3 + $0x38] sm:$0xff]
  %v2271 = vld [vmem:[%s3 + $0x40] sm:$0xff]
  %v2272 = vld [vmem:[%s3 + $0x48] sm:$0xff]
  %v2273 = vld [vmem:[%s3 + $0x50] sm:$0xff]
  %v2274 = vld [vmem:[%s3 + $0x58] sm:$0xff]
  %v2275 = vld [vmem:[%s3 + $0x60] sm:$0xff]
  %v2276 = vld [vmem:[%s3 + $0x68] sm:$0xff]
  %v2277 = vld [vmem:[%s3 + $0x70] sm:$0xff]
  %v2278 = vld [vmem:[%s3 + $0x78] sm:$0xff]
  %v2279 = vld [vmem:[%s3 + $0x80] sm:$0xff]
  %v2280 = vld [vmem:[%s3 + $0x88] sm:$0xff]
  %v2281 = vld [vmem:[%s3 + $0x90] sm:$0xff]
  %v2282 = vld [vmem:[%s3 + $0x98] sm:$0xff]
  %v2283 = vld [vmem:[%s3 + $0xa0] sm:$0xff]
  %v2284 = vld [vmem:[%s3 + $0xa8] sm:$0xff]
  %v2285 = vld [vmem:[%s3 + $0xb0] sm:$0xff]
  %v2286 = vld [vmem:[%s3 + $0xb8] sm:$0xff]
  %v2287 = vld [vmem:[%s3 + $0xc0] sm:$0xff]
  %v2288 = vld [vmem:[%s3 + $0xc8] sm:$0xff]
  %v2289 = vld [vmem:[%s3 + $0xd0] sm:$0xff]
  %v2290 = vld [vmem:[%s3 + $0xd8] sm:$0xff]
  %v2291 = vld [vmem:[%s3 + $0xe0] sm:$0xff]
  %v2292 = vld [vmem:[%s3 + $0xe8] sm:$0xff]
  %v2293 = vld [vmem:[%s3 + $0xf0] sm:$0xff]
  %v2294 = vld [vmem:[%s3 + $0xf8] sm:$0xff]
  %v2295 = vld [vmem:[%s3 + $0x100] sm:$0xff]
  %v2296 = vld [vmem:[%s3 + $0x108] sm:$0xff]
  %v2297 = vld [vmem:[%s3 + $0x110] sm:$0xff]
  %v2298 = vld [vmem:[%s3 + $0x118] sm:$0xff]
  %v2299 = vld [vmem:[%s3 + $0x120] sm:$0xff]
  %v2300 = vld [vmem:[%s3 + $0x128] sm:$0xff]
  %v2301 = vld [vmem:[%s3 + $0x130] sm:$0xff]
  %v2302 = vld [vmem:[%s3 + $0x138] sm:$0xff]
  %v2303 = vld [vmem:[%s3 + $0x140] sm:$0xff]
  %v2304 = vld [vmem:[%s3 + $0x148] sm:$0xff]
  %v2305 = vld [vmem:[%s3 + $0x150] sm:$0xff]
  %v2306 = vld [vmem:[%s3 + $0x158] sm:$0xff]
  %v2307 = vld [vmem:[%s3 + $0x160] sm:$0xff]
  %v2308 = vld [vmem:[%s3 + $0x168] sm:$0xff]
  %v2309 = vld [vmem:[%s3 + $0x170] sm:$0xff]
  %v2310 = vld [vmem:[%s3 + $0x178] sm:$0xff]
  %v2311 = vld [vmem:[%s3 + $0x180] sm:$0xff]
  %v2312 = vld [vmem:[%s3 + $0x188] sm:$0xff]
  %v2313 = vld [vmem:[%s3 + $0x190] sm:$0xff]
  %v2314 = vld [vmem:[%s3 + $0x198] sm:$0xff]
  %v2315 = vld [vmem:[%s3 + $0x1a0] sm:$0xff]
  %v2316 = vld [vmem:[%s3 + $0x1a8] sm:$0xff]
  %v2317 = vld [vmem:[%s3 + $0x1b0] sm:$0xff]
  %v2318 = vld [vmem:[%s3 + $0x1b8] sm:$0xff]
  %v2319 = vld [vmem:[%s3 + $0x1c0] sm:$0xff]
  %v2320 = vld [vmem:[%s3 + $0x1c8] sm:$0xff]
  %v2321 = vld [vmem:[%s3 + $0x1d0] sm:$0xff]
  %v2322 = vld [vmem:[%s3 + $0x1d8] sm:$0xff]
  %v2323 = vld [vmem:[%s3 + $0x1e0] sm:$0xff]
  %v2324 = vld [vmem:[%s3 + $0x1e8] sm:$0xff]
  %v2325 = vld [vmem:[%s3 + $0x1f0] sm:$0xff]
  %v2326 = vld [vmem:[%s3 + $0x1f8] sm:$0xff]
  %v2327 = vld [vmem:[%s3 + $0x200] sm:$0xff]
  %v2328 = vld [vmem:[%s3 + $0x208] sm:$0xff]
  %v2329 = vld [vmem:[%s3 + $0x210] sm:$0xff]
  %v2330 = vld [vmem:[%s3 + $0x218] sm:$0xff]
  %v2331 = vld [vmem:[%s3 + $0x220] sm:$0xff]
  %v2332 = vld [vmem:[%s3 + $0x228] sm:$0xff]
  %v2333 = vld [vmem:[%s3 + $0x230] sm:$0xff]
  %v2334 = vld [vmem:[%s3 + $0x238] sm:$0xff]
  %v2335 = vld [vmem:[%s3 + $0x240] sm:$0xff]
  %v2336 = vld [vmem:[%s3 + $0x248] sm:$0xff]
  %v2337 = vld [vmem:[%s3 + $0x250] sm:$0xff]
  %v2338 = vld [vmem:[%s3 + $0x258] sm:$0xff]
  %v2339 = vld [vmem:[%s3 + $0x260] sm:$0xff]
  %v2340 = vld [vmem:[%s3 + $0x268] sm:$0xff]
  %v2341 = vld [vmem:[%s3 + $0x270] sm:$0xff]
  %v2342 = vld [vmem:[%s3 + $0x278] sm:$0xff]
  %v2343 = vld [vmem:[%s3 + $0x280] sm:$0xff]
  %v2344 = vld [vmem:[%s3 + $0x288] sm:$0xff]
  %v2345 = vld [vmem:[%s3 + $0x290] sm:$0xff]
  %v2346 = vld [vmem:[%s3 + $0x298] sm:$0xff]
  %v2347 = vld [vmem:[%s3 + $0x2a0] sm:$0xff]
  %v2348 = vld [vmem:[%s3 + $0x2a8] sm:$0xff]
  %v2349 = vld [vmem:[%s3 + $0x2b0] sm:$0xff]
  %v2350 = vld [vmem:[%s3 + $0x2b8] sm:$0xff]
  %v2351 = vld [vmem:[%s3 + $0x2c0] sm:$0xff]
  %v2352 = vld [vmem:[%s3 + $0x2c8] sm:$0xff]
  %v2353 = vld [vmem:[%s3 + $0x2d0] sm:$0xff]
  %v2354 = vld [vmem:[%s3 + $0x2d8] sm:$0xff]
  %v2355 = vld [vmem:[%s3 + $0x2e0] sm:$0xff]
  %v2356 = vld [vmem:[%s3 + $0x2e8] sm:$0xff]
  %v2357 = vld [vmem:[%s3 + $0x2f0] sm:$0xff]
  %v2358 = vld [vmem:[%s3 + $0x2f8] sm:$0xff]
  %v2359 = vld [vmem:[%s3 + $0x300] sm:$0xff]
  %v2360 = vld [vmem:[%s3 + $0x308] sm:$0xff]
  %v2361 = vld [vmem:[%s3 + $0x310] sm:$0xff]
  %v2362 = vld [vmem:[%s3 + $0x318] sm:$0xff]
  %v2363 = vld [vmem:[%s3 + $0x320] sm:$0xff]
  %v2364 = vld [vmem:[%s3 + $0x328] sm:$0xff]
  %v2365 = vld [vmem:[%s3 + $0x330] sm:$0xff]
  %v2366 = vld [vmem:[%s3 + $0x338] sm:$0xff]
  %v2367 = vld [vmem:[%s3 + $0x340] sm:$0xff]
  %v2368 = vld [vmem:[%s3 + $0x348] sm:$0xff]
  %v2369 = vld [vmem:[%s3 + $0x350] sm:$0xff]
  %v2370 = vld [vmem:[%s3 + $0x358] sm:$0xff]
  %v2371 = vld [vmem:[%s3 + $0x360] sm:$0xff]
  %v2372 = vld [vmem:[%s3 + $0x368] sm:$0xff]
  %v2373 = vld [vmem:[%s3 + $0x370] sm:$0xff]
  %v2374 = vld [vmem:[%s3 + $0x378] sm:$0xff]
  %v2375 = vld [vmem:[%s3 + $0x380] sm:$0xff]
  %v2376 = vld [vmem:[%s3 + $0x388] sm:$0xff]
  %v2377 = vld [vmem:[%s3 + $0x390] sm:$0xff]
  %v2378 = vld [vmem:[%s3 + $0x398] sm:$0xff]
  %v2379 = vld [vmem:[%s3 + $0x3a0] sm:$0xff]
  %v2380 = vld [vmem:[%s3 + $0x3a8] sm:$0xff]
  %v2381 = vld [vmem:[%s3 + $0x3b0] sm:$0xff]
  %v2382 = vld [vmem:[%s3 + $0x3b8] sm:$0xff]
  %v2383 = vld [vmem:[%s3 + $0x3c0] sm:$0xff]
  %v2384 = vld [vmem:[%s3 + $0x3c8] sm:$0xff]
  %v2385 = vld [vmem:[%s3 + $0x3d0] sm:$0xff]
  %v2386 = vld [vmem:[%s3 + $0x3d8] sm:$0xff]
  %v2387 = vld [vmem:[%s3 + $0x3e0] sm:$0xff]
  %v2388 = vld [vmem:[%s3 + $0x3e8] sm:$0xff]
  %v2389 = vld [vmem:[%s3 + $0x3f0] sm:$0xff]
  %v2390 = vld [vmem:[%s3 + $0x3f8] sm:$0xff]
  %v2391 = vld [vmem:[%s3 + $0x400] sm:$0xff]
  %v2392 = vld [vmem:[%s3 + $0x408] sm:$0xff]
  %v2393 = vld [vmem:[%s3 + $0x410] sm:$0xff]
  %v2394 = vld [vmem:[%s3 + $0x418] sm:$0xff]
  %v2395 = vld [vmem:[%s3 + $0x420] sm:$0xff]
  %v2396 = vld [vmem:[%s3 + $0x428] sm:$0xff]
  %v2397 = vld [vmem:[%s3 + $0x430] sm:$0xff]
  %v2398 = vld [vmem:[%s3 + $0x438] sm:$0xff]
  %v2399 = vld [vmem:[%s3 + $0x440] sm:$0xff]
  %v2400 = vld [vmem:[%s3 + $0x448] sm:$0xff]
  %v2401 = vld [vmem:[%s3 + $0x450] sm:$0xff]
  %v2402 = vld [vmem:[%s3 + $0x458] sm:$0xff]
  %v2403 = vld [vmem:[%s3 + $0x460] sm:$0xff]
  %v2404 = vld [vmem:[%s3 + $0x468] sm:$0xff]
  %v2405 = vld [vmem:[%s3 + $0x470] sm:$0xff]
  %v2406 = vld [vmem:[%s3 + $0x478] sm:$0xff]
  %v2407 = vld [vmem:[%s3 + $0x480] sm:$0xff]
  %v2408 = vld [vmem:[%s3 + $0x488] sm:$0xff]
  %v2409 = vld [vmem:[%s3 + $0x490] sm:$0xff]
  %v2410 = vld [vmem:[%s3 + $0x498] sm:$0xff]
  %v2411 = vld [vmem:[%s3 + $0x4a0] sm:$0xff]
  %v2412 = vld [vmem:[%s3 + $0x4a8] sm:$0xff]
  %v2413 = vld [vmem:[%s3 + $0x4b0] sm:$0xff]
  %v2414 = vld [vmem:[%s3 + $0x4b8] sm:$0xff]
  %v2415 = vld [vmem:[%s3 + $0x4c0] sm:$0xff]
  %v2416 = vld [vmem:[%s3 + $0x4c8] sm:$0xff]
  %v2417 = vld [vmem:[%s3 + $0x4d0] sm:$0xff]
  %v2418 = vld [vmem:[%s3 + $0x4d8] sm:$0xff]
  %v2419 = vld [vmem:[%s3 + $0x4e0] sm:$0xff]
  %v2420 = vld [vmem:[%s3 + $0x4e8] sm:$0xff]
  %v2421 = vld [vmem:[%s3 + $0x4f0] sm:$0xff]
  %v2422 = vld [vmem:[%s3 + $0x4f8] sm:$0xff]
  %v2423 = vld [vmem:[%s3 + $0x500] sm:$0xff]
  %v2424 = vld [vmem:[%s3 + $0x508] sm:$0xff]
  %v2425 = vld [vmem:[%s3 + $0x510] sm:$0xff]
  %v2426 = vld [vmem:[%s3 + $0x518] sm:$0xff]
  %v2427 = vld [vmem:[%s3 + $0x520] sm:$0xff]
  %v2428 = vld [vmem:[%s3 + $0x528] sm:$0xff]
  %v2429 = vld [vmem:[%s3 + $0x530] sm:$0xff]
  %v2430 = vld [vmem:[%s3 + $0x538] sm:$0xff]
  %v2431 = vld [vmem:[%s3 + $0x540] sm:$0xff]
  %v2432 = vld [vmem:[%s3 + $0x548] sm:$0xff]
  %v2433 = vld [vmem:[%s3 + $0x550] sm:$0xff]
  %v2434 = vld [vmem:[%s3 + $0x558] sm:$0xff]
  %v2435 = vld [vmem:[%s3 + $0x560] sm:$0xff]
  %v2436 = vld [vmem:[%s3 + $0x568] sm:$0xff]
  %v2437 = vld [vmem:[%s3 + $0x570] sm:$0xff]
  %v2438 = vld [vmem:[%s3 + $0x578] sm:$0xff]
  %v2439 = vld [vmem:[%s3 + $0x580] sm:$0xff]
  %v2440 = vld [vmem:[%s3 + $0x588] sm:$0xff]
  %v2441 = vld [vmem:[%s3 + $0x590] sm:$0xff]
  %v2442 = vld [vmem:[%s3 + $0x598] sm:$0xff]
  %v2443 = vld [vmem:[%s3 + $0x5a0] sm:$0xff]
  %v2444 = vld [vmem:[%s3 + $0x5a8] sm:$0xff]
  %v2445 = vld [vmem:[%s3 + $0x5b0] sm:$0xff]
  %v2446 = vld [vmem:[%s3 + $0x5b8] sm:$0xff]
  %v2447 = vld [vmem:[%s3 + $0x5c0] sm:$0xff]
  %v2448 = vld [vmem:[%s3 + $0x5c8] sm:$0xff]
  %v2449 = vld [vmem:[%s3 + $0x5d0] sm:$0xff]
  %v2450 = vld [vmem:[%s3 + $0x5d8] sm:$0xff]
  %v2451 = vld [vmem:[%s3 + $0x5e0] sm:$0xff]
  %v2452 = vld [vmem:[%s3 + $0x5e8] sm:$0xff]
  %v2453 = vld [vmem:[%s3 + $0x5f0] sm:$0xff]
  %v2454 = vld [vmem:[%s3 + $0x5f8] sm:$0xff]
  %v2455 = vld [vmem:[%s3 + $0x600] sm:$0xff]
  %v2456 = vld [vmem:[%s3 + $0x608] sm:$0xff]
  %v2457 = vld [vmem:[%s3 + $0x610] sm:$0xff]
  %v2458 = vld [vmem:[%s3 + $0x618] sm:$0xff]
  %v2459 = vld [vmem:[%s3 + $0x620] sm:$0xff]
  %v2460 = vld [vmem:[%s3 + $0x628] sm:$0xff]
  %v2461 = vld [vmem:[%s3 + $0x630] sm:$0xff]
  %v2462 = vld [vmem:[%s3 + $0x638] sm:$0xff]
  %v2463 = vld [vmem:[%s3 + $0x640] sm:$0xff]
  %v2464 = vld [vmem:[%s3 + $0x648] sm:$0xff]
  %v2465 = vld [vmem:[%s3 + $0x650] sm:$0xff]
  %v2466 = vld [vmem:[%s3 + $0x658] sm:$0xff]
  %v2467 = vld [vmem:[%s3 + $0x660] sm:$0xff]
  %v2468 = vld [vmem:[%s3 + $0x668] sm:$0xff]
  %v2469 = vld [vmem:[%s3 + $0x670] sm:$0xff]
  %v2470 = vld [vmem:[%s3 + $0x678] sm:$0xff]
  %v2471 = vld [vmem:[%s3 + $0x680] sm:$0xff]
  %v2472 = vld [vmem:[%s3 + $0x688] sm:$0xff]
  %v2473 = vld [vmem:[%s3 + $0x690] sm:$0xff]
  %v2474 = vld [vmem:[%s3 + $0x698] sm:$0xff]
  %v2475 = vld [vmem:[%s3 + $0x6a0] sm:$0xff]
  %v2476 = vld [vmem:[%s3 + $0x6a8] sm:$0xff]
  %v2477 = vld [vmem:[%s3 + $0x6b0] sm:$0xff]
  %v2478 = vld [vmem:[%s3 + $0x6b8] sm:$0xff]
  %v2479 = vld [vmem:[%s3 + $0x6c0] sm:$0xff]
  %v2480 = vld [vmem:[%s3 + $0x6c8] sm:$0xff]
  %v2481 = vld [vmem:[%s3 + $0x6d0] sm:$0xff]
  %v2482 = vld [vmem:[%s3 + $0x6d8] sm:$0xff]
  %v2483 = vld [vmem:[%s3 + $0x6e0] sm:$0xff]
  %v2484 = vld [vmem:[%s3 + $0x6e8] sm:$0xff]
  %v2485 = vld [vmem:[%s3 + $0x6f0] sm:$0xff]
  %v2486 = vld [vmem:[%s3 + $0x6f8] sm:$0xff]
  %v2487 = vld [vmem:[%s3 + $0x700] sm:$0xff]
  %v2488 = vld [vmem:[%s3 + $0x708] sm:$0xff]
  %v2489 = vld [vmem:[%s3 + $0x710] sm:$0xff]
  %v2490 = vld [vmem:[%s3 + $0x718] sm:$0xff]
  %v2491 = vld [vmem:[%s3 + $0x720] sm:$0xff]
  %v2492 = vld [vmem:[%s3 + $0x728] sm:$0xff]
  %v2493 = vld [vmem:[%s3 + $0x730] sm:$0xff]
  %v2494 = vld [vmem:[%s3 + $0x738] sm:$0xff]
  %v2495 = vld [vmem:[%s3 + $0x740] sm:$0xff]
  %v2496 = vld [vmem:[%s3 + $0x748] sm:$0xff]
  %v2497 = vld [vmem:[%s3 + $0x750] sm:$0xff]
  %v2498 = vld [vmem:[%s3 + $0x758] sm:$0xff]
  %v2499 = vld [vmem:[%s3 + $0x760] sm:$0xff]
  %v2500 = vld [vmem:[%s3 + $0x768] sm:$0xff]
  %v2501 = vld [vmem:[%s3 + $0x770] sm:$0xff]
  %v2502 = vld [vmem:[%s3 + $0x778] sm:$0xff]
  %v2503 = vld [vmem:[%s3 + $0x780] sm:$0xff]
  %v2504 = vld [vmem:[%s3 + $0x788] sm:$0xff]
  %v2505 = vld [vmem:[%s3 + $0x790] sm:$0xff]
  %v2506 = vld [vmem:[%s3 + $0x798] sm:$0xff]
  %v2507 = vld [vmem:[%s3 + $0x7a0] sm:$0xff]
  %v2508 = vld [vmem:[%s3 + $0x7a8] sm:$0xff]
  %v2509 = vld [vmem:[%s3 + $0x7b0] sm:$0xff]
  %v2510 = vld [vmem:[%s3 + $0x7b8] sm:$0xff]
  %v2511 = vld [vmem:[%s3 + $0x7c0] sm:$0xff]
  %v2512 = vld [vmem:[%s3 + $0x7c8] sm:$0xff]
  %v2513 = vld [vmem:[%s3 + $0x7d0] sm:$0xff]
  %v2514 = vld [vmem:[%s3 + $0x7d8] sm:$0xff]
  %v2515 = vld [vmem:[%s3 + $0x7e0] sm:$0xff]
  %v2516 = vld [vmem:[%s3 + $0x7e8] sm:$0xff]
  %v2517 = vld [vmem:[%s3 + $0x7f0] sm:$0xff]
  %v2518 = vld [vmem:[%s3 + $0x7f8] sm:$0xff]
  %v2519 = vld [vmem:[%s3 + $0x800] sm:$0xff]
  %v2520 = vld [vmem:[%s3 + $0x808] sm:$0xff]
  %v2521 = vld [vmem:[%s3 + $0x810] sm:$0xff]
  %v2522 = vld [vmem:[%s3 + $0x818] sm:$0xff]
  %v2523 = vld [vmem:[%s3 + $0x820] sm:$0xff]
  %v2524 = vld [vmem:[%s3 + $0x828] sm:$0xff]
  %v2525 = vld [vmem:[%s3 + $0x830] sm:$0xff]
  %v2526 = vld [vmem:[%s3 + $0x838] sm:$0xff]
  %v2527 = vld [vmem:[%s3 + $0x840] sm:$0xff]
  %v2528 = vld [vmem:[%s3 + $0x848] sm:$0xff]
  %v2529 = vld [vmem:[%s3 + $0x850] sm:$0xff]
  %v2530 = vld [vmem:[%s3 + $0x858] sm:$0xff]
  %v2531 = vld [vmem:[%s3 + $0x860] sm:$0xff]
  %v2532 = vld [vmem:[%s3 + $0x868] sm:$0xff]
  %v2533 = vld [vmem:[%s3 + $0x870] sm:$0xff]
  %v2534 = vld [vmem:[%s3 + $0x878] sm:$0xff]
  %v2535 = vld [vmem:[%s3 + $0x880] sm:$0xff]
  %v2536 = vld [vmem:[%s3 + $0x888] sm:$0xff]
  %v2537 = vld [vmem:[%s3 + $0x890] sm:$0xff]
  %v2538 = vld [vmem:[%s3 + $0x898] sm:$0xff]
  %v2539 = vld [vmem:[%s3 + $0x8a0] sm:$0xff]
  %v2540 = vld [vmem:[%s3 + $0x8a8] sm:$0xff]
  %v2541 = vld [vmem:[%s3 + $0x8b0] sm:$0xff]
  %v2542 = vld [vmem:[%s3 + $0x8b8] sm:$0xff]
  %v2543 = vld [vmem:[%s3 + $0x8c0] sm:$0xff]
  %v2544 = vld [vmem:[%s3 + $0x8c8] sm:$0xff]
  %v2545 = vld [vmem:[%s3 + $0x8d0] sm:$0xff]
  %v2546 = vld [vmem:[%s3 + $0x8d8] sm:$0xff]
  %v2547 = vld [vmem:[%s3 + $0x8e0] sm:$0xff]
  %v2548 = vld [vmem:[%s3 + $0x8e8] sm:$0xff]
  %v2549 = vld [vmem:[%s3 + $0x8f0] sm:$0xff]
  %v2550 = vld [vmem:[%s3 + $0x8f8] sm:$0xff]
  %v2551 = vld [vmem:[%s3 + $0x900] sm:$0xff]
  %v2552 = vld [vmem:[%s3 + $0x908] sm:$0xff]
  %v2553 = vld [vmem:[%s3 + $0x910] sm:$0xff]
  %v2554 = vld [vmem:[%s3 + $0x918] sm:$0xff]
  %v2555 = vld [vmem:[%s3 + $0x920] sm:$0xff]
  %v2556 = vld [vmem:[%s3 + $0x928] sm:$0xff]
  %v2557 = vld [vmem:[%s3 + $0x930] sm:$0xff]
  %v2558 = vld [vmem:[%s3 + $0x938] sm:$0xff]
  %v2559 = vld [vmem:[%s3 + $0x940] sm:$0xff]
  %v2560 = vld [vmem:[%s3 + $0x948] sm:$0xff]
  %v2561 = vld [vmem:[%s3 + $0x950] sm:$0xff]
  %v2562 = vld [vmem:[%s3 + $0x958] sm:$0xff]
  %v2563 = vld [vmem:[%s3 + $0x960] sm:$0xff]
  %v2564 = vld [vmem:[%s3 + $0x968] sm:$0xff]
  %v2565 = vld [vmem:[%s3 + $0x970] sm:$0xff]
  %v2566 = vld [vmem:[%s3 + $0x978] sm:$0xff]
  %v2567 = vld [vmem:[%s3 + $0x980] sm:$0xff]
  %v2568 = vld [vmem:[%s3 + $0x988] sm:$0xff]
  %v2569 = vld [vmem:[%s3 + $0x990] sm:$0xff]
  %v2570 = vld [vmem:[%s3 + $0x998] sm:$0xff]
  %v2571 = vld [vmem:[%s3 + $0x9a0] sm:$0xff]
  %v2572 = vld [vmem:[%s3 + $0x9a8] sm:$0xff]
  %v2573 = vld [vmem:[%s3 + $0x9b0] sm:$0xff]
  %v2574 = vld [vmem:[%s3 + $0x9b8] sm:$0xff]
  %v2575 = vld [vmem:[%s3 + $0x9c0] sm:$0xff]
  %v2576 = vld [vmem:[%s3 + $0x9c8] sm:$0xff]
  %v2577 = vld [vmem:[%s3 + $0x9d0] sm:$0xff]
  %v2578 = vld [vmem:[%s3 + $0x9d8] sm:$0xff]
  %v2579 = vld [vmem:[%s3 + $0x9e0] sm:$0xff]
  %v2580 = vld [vmem:[%s3 + $0x9e8] sm:$0xff]
  %v2581 = vld [vmem:[%s3 + $0x9f0] sm:$0xff]
  %v2582 = vld [vmem:[%s3 + $0x9f8] sm:$0xff]
  %v2583 = vld [vmem:[%s3 + $0xa00] sm:$0xff]
  %v2584 = vld [vmem:[%s3 + $0xa08] sm:$0xff]
  %v2585 = vld [vmem:[%s3 + $0xa10] sm:$0xff]
  %v2586 = vld [vmem:[%s3 + $0xa18] sm:$0xff]
  %v2587 = vld [vmem:[%s3 + $0xa20] sm:$0xff]
  %v2588 = vld [vmem:[%s3 + $0xa28] sm:$0xff]
  %v2589 = vld [vmem:[%s3 + $0xa30] sm:$0xff]
  %v2590 = vld [vmem:[%s3 + $0xa38] sm:$0xff]
  %v2591 = vld [vmem:[%s3 + $0xa40] sm:$0xff]
  %v2592 = vld [vmem:[%s3 + $0xa48] sm:$0xff]
  %v2593 = vld [vmem:[%s3 + $0xa50] sm:$0xff]
  %v2594 = vld [vmem:[%s3 + $0xa58] sm:$0xff]
  %v2595 = vld [vmem:[%s3 + $0xa60] sm:$0xff]
  %v2596 = vld [vmem:[%s3 + $0xa68] sm:$0xff]
  %v2597 = vld [vmem:[%s3 + $0xa70] sm:$0xff]
  %v2598 = vld [vmem:[%s3 + $0xa78] sm:$0xff]
  %v2599 = vld [vmem:[%s3 + $0xa80] sm:$0xff]
  %v2600 = vld [vmem:[%s3 + $0xa88] sm:$0xff]
  %v2601 = vld [vmem:[%s3 + $0xa90] sm:$0xff]
  %v2602 = vld [vmem:[%s3 + $0xa98] sm:$0xff]
  %v2603 = vld [vmem:[%s3 + $0xaa0] sm:$0xff]
  %v2604 = vld [vmem:[%s3 + $0xaa8] sm:$0xff]
  %v2605 = vld [vmem:[%s3 + $0xab0] sm:$0xff]
  %v2606 = vld [vmem:[%s3 + $0xab8] sm:$0xff]
  %v2607 = vld [vmem:[%s3 + $0xac0] sm:$0xff]
  %v2608 = vld [vmem:[%s3 + $0xac8] sm:$0xff]
  %v2609 = vld [vmem:[%s3 + $0xad0] sm:$0xff]
  %v2610 = vld [vmem:[%s3 + $0xad8] sm:$0xff]
  %v2611 = vld [vmem:[%s3 + $0xae0] sm:$0xff]
  %v2612 = vld [vmem:[%s3 + $0xae8] sm:$0xff]
  %v2613 = vld [vmem:[%s3 + $0xaf0] sm:$0xff]
  %v2614 = vld [vmem:[%s3 + $0xaf8] sm:$0xff]
  %v2615 = vld [vmem:[%s3 + $0xb00] sm:$0xff]
  %v2616 = vld [vmem:[%s3 + $0xb08] sm:$0xff]
  %v2617 = vld [vmem:[%s3 + $0xb10] sm:$0xff]
  %v2618 = vld [vmem:[%s3 + $0xb18] sm:$0xff]
  %v2619 = vld [vmem:[%s3 + $0xb20] sm:$0xff]
  %v2620 = vld [vmem:[%s3 + $0xb28] sm:$0xff]
  %v2621 = vld [vmem:[%s3 + $0xb30] sm:$0xff]
  %v2622 = vld [vmem:[%s3 + $0xb38] sm:$0xff]
  %v2623 = vld [vmem:[%s3 + $0xb40] sm:$0xff]
  %v2624 = vld [vmem:[%s3 + $0xb48] sm:$0xff]
  %v2625 = vld [vmem:[%s3 + $0xb50] sm:$0xff]
  %v2626 = vld [vmem:[%s3 + $0xb58] sm:$0xff]
  %v2627 = vld [vmem:[%s3 + $0xb60] sm:$0xff]
  %v2628 = vld [vmem:[%s3 + $0xb68] sm:$0xff]
  %v2629 = vld [vmem:[%s3 + $0xb70] sm:$0xff]
  %v2630 = vld [vmem:[%s3 + $0xb78] sm:$0xff]
  %v2631 = vld [vmem:[%s3 + $0xb80] sm:$0xff]
  %v2632 = vld [vmem:[%s3 + $0xb88] sm:$0xff]
  %v2633 = vld [vmem:[%s3 + $0xb90] sm:$0xff]
  %v2634 = vld [vmem:[%s3 + $0xb98] sm:$0xff]
  %v2635 = vld [vmem:[%s3 + $0xba0] sm:$0xff]
  %v2636 = vld [vmem:[%s3 + $0xba8] sm:$0xff]
  %v2637 = vld [vmem:[%s3 + $0xbb0] sm:$0xff]
  %v2638 = vld [vmem:[%s3 + $0xbb8] sm:$0xff]
  %v2639 = vld [vmem:[%s3 + $0xbc0] sm:$0xff]
  %v2640 = vld [vmem:[%s3 + $0xbc8] sm:$0xff]
  %v2641 = vld [vmem:[%s3 + $0xbd0] sm:$0xff]
  %v2642 = vld [vmem:[%s3 + $0xbd8] sm:$0xff]
  %v2643 = vld [vmem:[%s3 + $0xbe0] sm:$0xff]
  %v2644 = vld [vmem:[%s3 + $0xbe8] sm:$0xff]
  %v2645 = vld [vmem:[%s3 + $0xbf0] sm:$0xff]
  %v2646 = vld [vmem:[%s3 + $0xbf8] sm:$0xff]
  %v2647 = vld [vmem:[%s4] sm:$0xff]
  %v2649 = vperm.slane %v2647, 0
  %v2650 = vperm.slane %v2647, 1
  %v2651 = vperm.slane %v2647, 2
  %v2652 = vperm.slane %v2647, 3
  %v2653 = vperm.slane %v2647, 4
  %v2654 = vperm.slane %v2647, 5
  %v2655 = vperm.slane %v2647, 6
  %v2656 = vperm.slane %v2647, 7
  %v3049 = vunpack.c.l.b16 %v2263
  %v3050 = vunpack.c.h.b16 %v2263
  %v3051 = vunpack.c.l.b16 %v2264
  %v3052 = vunpack.c.h.b16 %v2264
  %v3053 = vunpack.c.l.b16 %v2265
  %v3054 = vunpack.c.h.b16 %v2265
  %v3055 = vunpack.c.l.b16 %v2266
  %v3056 = vunpack.c.h.b16 %v2266
  %v3057 = vunpack.c.l.b16 %v2267
  %v3058 = vunpack.c.h.b16 %v2267
  %v3059 = vunpack.c.l.b16 %v2268
  %v3060 = vunpack.c.h.b16 %v2268
  %v3061 = vunpack.c.l.b16 %v2269
  %v3062 = vunpack.c.h.b16 %v2269
  %v3063 = vunpack.c.l.b16 %v2270
  %v3064 = vunpack.c.h.b16 %v2270
  %v3065 = vunpack.c.l.b16 %v2271
  %v3066 = vunpack.c.h.b16 %v2271
  %v3067 = vunpack.c.l.b16 %v2272
  %v3068 = vunpack.c.h.b16 %v2272
  %v3069 = vunpack.c.l.b16 %v2273
  %v3070 = vunpack.c.h.b16 %v2273
  %v3071 = vunpack.c.l.b16 %v2274
  %v3072 = vunpack.c.h.b16 %v2274
  %v3073 = vunpack.c.l.b16 %v2275
  %v3074 = vunpack.c.h.b16 %v2275
  %v3075 = vunpack.c.l.b16 %v2276
  %v3076 = vunpack.c.h.b16 %v2276
  %v3077 = vunpack.c.l.b16 %v2277
  %v3078 = vunpack.c.h.b16 %v2277
  %v3079 = vunpack.c.l.b16 %v2278
  %v3080 = vunpack.c.h.b16 %v2278
  %v3081 = vunpack.c.l.b16 %v2279
  %v3082 = vunpack.c.h.b16 %v2279
  %v3083 = vunpack.c.l.b16 %v2280
  %v3084 = vunpack.c.h.b16 %v2280
  %v3085 = vunpack.c.l.b16 %v2281
  %v3086 = vunpack.c.h.b16 %v2281
  %v3087 = vunpack.c.l.b16 %v2282
  %v3088 = vunpack.c.h.b16 %v2282
  %v3089 = vunpack.c.l.b16 %v2283
  %v3090 = vunpack.c.h.b16 %v2283
  %v3091 = vunpack.c.l.b16 %v2284
  %v3092 = vunpack.c.h.b16 %v2284
  %v3093 = vunpack.c.l.b16 %v2285
  %v3094 = vunpack.c.h.b16 %v2285
  %v3095 = vunpack.c.l.b16 %v2286
  %v3096 = vunpack.c.h.b16 %v2286
  %v3097 = vunpack.c.l.b16 %v2287
  %v3098 = vunpack.c.h.b16 %v2287
  %v3099 = vunpack.c.l.b16 %v2288
  %v3100 = vunpack.c.h.b16 %v2288
  %v3101 = vunpack.c.l.b16 %v2289
  %v3102 = vunpack.c.h.b16 %v2289
  %v3103 = vunpack.c.l.b16 %v2290
  %v3104 = vunpack.c.h.b16 %v2290
  %v3105 = vunpack.c.l.b16 %v2291
  %v3106 = vunpack.c.h.b16 %v2291
  %v3107 = vunpack.c.l.b16 %v2292
  %v3108 = vunpack.c.h.b16 %v2292
  %v3109 = vunpack.c.l.b16 %v2293
  %v3110 = vunpack.c.h.b16 %v2293
  %v3111 = vunpack.c.l.b16 %v2294
  %v3112 = vunpack.c.h.b16 %v2294
  %v3113 = vunpack.c.l.b16 %v2295
  %v3114 = vunpack.c.h.b16 %v2295
  %v3115 = vunpack.c.l.b16 %v2296
  %v3116 = vunpack.c.h.b16 %v2296
  %v3117 = vunpack.c.l.b16 %v2297
  %v3118 = vunpack.c.h.b16 %v2297
  %v3119 = vunpack.c.l.b16 %v2298
  %v3120 = vunpack.c.h.b16 %v2298
  %v3121 = vunpack.c.l.b16 %v2299
  %v3122 = vunpack.c.h.b16 %v2299
  %v3123 = vunpack.c.l.b16 %v2300
  %v3124 = vunpack.c.h.b16 %v2300
  %v3125 = vunpack.c.l.b16 %v2301
  %v3126 = vunpack.c.h.b16 %v2301
  %v3127 = vunpack.c.l.b16 %v2302
  %v3128 = vunpack.c.h.b16 %v2302
  %v3129 = vunpack.c.l.b16 %v2303
  %v3130 = vunpack.c.h.b16 %v2303
  %v3131 = vunpack.c.l.b16 %v2304
  %v3132 = vunpack.c.h.b16 %v2304
  %v3133 = vunpack.c.l.b16 %v2305
  %v3134 = vunpack.c.h.b16 %v2305
  %v3135 = vunpack.c.l.b16 %v2306
  %v3136 = vunpack.c.h.b16 %v2306
  %v3137 = vunpack.c.l.b16 %v2307
  %v3138 = vunpack.c.h.b16 %v2307
  %v3139 = vunpack.c.l.b16 %v2308
  %v3140 = vunpack.c.h.b16 %v2308
  %v3141 = vunpack.c.l.b16 %v2309
  %v3142 = vunpack.c.h.b16 %v2309
  %v3143 = vunpack.c.l.b16 %v2310
  %v3144 = vunpack.c.h.b16 %v2310
  %v3145 = vunpack.c.l.b16 %v2311
  %v3146 = vunpack.c.h.b16 %v2311
  %v3147 = vunpack.c.l.b16 %v2312
  %v3148 = vunpack.c.h.b16 %v2312
  %v3149 = vunpack.c.l.b16 %v2313
  %v3150 = vunpack.c.h.b16 %v2313
  %v3151 = vunpack.c.l.b16 %v2314
  %v3152 = vunpack.c.h.b16 %v2314
  %v3153 = vunpack.c.l.b16 %v2315
  %v3154 = vunpack.c.h.b16 %v2315
  %v3155 = vunpack.c.l.b16 %v2316
  %v3156 = vunpack.c.h.b16 %v2316
  %v3157 = vunpack.c.l.b16 %v2317
  %v3158 = vunpack.c.h.b16 %v2317
  %v3159 = vunpack.c.l.b16 %v2318
  %v3160 = vunpack.c.h.b16 %v2318
  %v3161 = vunpack.c.l.b16 %v2319
  %v3162 = vunpack.c.h.b16 %v2319
  %v3163 = vunpack.c.l.b16 %v2320
  %v3164 = vunpack.c.h.b16 %v2320
  %v3165 = vunpack.c.l.b16 %v2321
  %v3166 = vunpack.c.h.b16 %v2321
  %v3167 = vunpack.c.l.b16 %v2322
  %v3168 = vunpack.c.h.b16 %v2322
  %v3169 = vunpack.c.l.b16 %v2323
  %v3170 = vunpack.c.h.b16 %v2323
  %v3171 = vunpack.c.l.b16 %v2324
  %v3172 = vunpack.c.h.b16 %v2324
  %v3173 = vunpack.c.l.b16 %v2325
  %v3174 = vunpack.c.h.b16 %v2325
  %v3175 = vunpack.c.l.b16 %v2326
  %v3176 = vunpack.c.h.b16 %v2326
  %v3177 = vunpack.c.l.b16 %v2327
  %v3178 = vunpack.c.h.b16 %v2327
  %v3179 = vunpack.c.l.b16 %v2328
  %v3180 = vunpack.c.h.b16 %v2328
  %v3181 = vunpack.c.l.b16 %v2329
  %v3182 = vunpack.c.h.b16 %v2329
  %v3183 = vunpack.c.l.b16 %v2330
  %v3184 = vunpack.c.h.b16 %v2330
  %v3185 = vunpack.c.l.b16 %v2331
  %v3186 = vunpack.c.h.b16 %v2331
  %v3187 = vunpack.c.l.b16 %v2332
  %v3188 = vunpack.c.h.b16 %v2332
  %v3189 = vunpack.c.l.b16 %v2333
  %v3190 = vunpack.c.h.b16 %v2333
  %v3191 = vunpack.c.l.b16 %v2334
  %v3192 = vunpack.c.h.b16 %v2334
  %v3193 = vunpack.c.l.b16 %v2335
  %v3194 = vunpack.c.h.b16 %v2335
  %v3195 = vunpack.c.l.b16 %v2336
  %v3196 = vunpack.c.h.b16 %v2336
  %v3197 = vunpack.c.l.b16 %v2337
  %v3198 = vunpack.c.h.b16 %v2337
  %v3199 = vunpack.c.l.b16 %v2338
  %v3200 = vunpack.c.h.b16 %v2338
  %v3201 = vunpack.c.l.b16 %v2339
  %v3202 = vunpack.c.h.b16 %v2339
  %v3203 = vunpack.c.l.b16 %v2340
  %v3204 = vunpack.c.h.b16 %v2340
  %v3205 = vunpack.c.l.b16 %v2341
  %v3206 = vunpack.c.h.b16 %v2341
  %v3207 = vunpack.c.l.b16 %v2342
  %v3208 = vunpack.c.h.b16 %v2342
  %v3209 = vunpack.c.l.b16 %v2343
  %v3210 = vunpack.c.h.b16 %v2343
  %v3211 = vunpack.c.l.b16 %v2344
  %v3212 = vunpack.c.h.b16 %v2344
  %v3213 = vunpack.c.l.b16 %v2345
  %v3214 = vunpack.c.h.b16 %v2345
  %v3215 = vunpack.c.l.b16 %v2346
  %v3216 = vunpack.c.h.b16 %v2346
  %v3217 = vunpack.c.l.b16 %v2347
  %v3218 = vunpack.c.h.b16 %v2347
  %v3219 = vunpack.c.l.b16 %v2348
  %v3220 = vunpack.c.h.b16 %v2348
  %v3221 = vunpack.c.l.b16 %v2349
  %v3222 = vunpack.c.h.b16 %v2349
  %v3223 = vunpack.c.l.b16 %v2350
  %v3224 = vunpack.c.h.b16 %v2350
  %v3225 = vunpack.c.l.b16 %v2351
  %v3226 = vunpack.c.h.b16 %v2351
  %v3227 = vunpack.c.l.b16 %v2352
  %v3228 = vunpack.c.h.b16 %v2352
  %v3229 = vunpack.c.l.b16 %v2353
  %v3230 = vunpack.c.h.b16 %v2353
  %v3231 = vunpack.c.l.b16 %v2354
  %v3232 = vunpack.c.h.b16 %v2354
  %v3233 = vunpack.c.l.b16 %v2355
  %v3234 = vunpack.c.h.b16 %v2355
  %v3235 = vunpack.c.l.b16 %v2356
  %v3236 = vunpack.c.h.b16 %v2356
  %v3237 = vunpack.c.l.b16 %v2357
  %v3238 = vunpack.c.h.b16 %v2357
  %v3239 = vunpack.c.l.b16 %v2358
  %v3240 = vunpack.c.h.b16 %v2358
  %v3241 = vunpack.c.l.b16 %v2359
  %v3242 = vunpack.c.h.b16 %v2359
  %v3243 = vunpack.c.l.b16 %v2360
  %v3244 = vunpack.c.h.b16 %v2360
  %v3245 = vunpack.c.l.b16 %v2361
  %v3246 = vunpack.c.h.b16 %v2361
  %v3247 = vunpack.c.l.b16 %v2362
  %v3248 = vunpack.c.h.b16 %v2362
  %v3249 = vunpack.c.l.b16 %v2363
  %v3250 = vunpack.c.h.b16 %v2363
  %v3251 = vunpack.c.l.b16 %v2364
  %v3252 = vunpack.c.h.b16 %v2364
  %v3253 = vunpack.c.l.b16 %v2365
  %v3254 = vunpack.c.h.b16 %v2365
  %v3255 = vunpack.c.l.b16 %v2366
  %v3256 = vunpack.c.h.b16 %v2366
  %v3257 = vunpack.c.l.b16 %v2367
  %v3258 = vunpack.c.h.b16 %v2367
  %v3259 = vunpack.c.l.b16 %v2368
  %v3260 = vunpack.c.h.b16 %v2368
  %v3261 = vunpack.c.l.b16 %v2369
  %v3262 = vunpack.c.h.b16 %v2369
  %v3263 = vunpack.c.l.b16 %v2370
  %v3264 = vunpack.c.h.b16 %v2370
  %v3265 = vunpack.c.l.b16 %v2371
  %v3266 = vunpack.c.h.b16 %v2371
  %v3267 = vunpack.c.l.b16 %v2372
  %v3268 = vunpack.c.h.b16 %v2372
  %v3269 = vunpack.c.l.b16 %v2373
  %v3270 = vunpack.c.h.b16 %v2373
  %v3271 = vunpack.c.l.b16 %v2374
  %v3272 = vunpack.c.h.b16 %v2374
  %v3273 = vunpack.c.l.b16 %v2375
  %v3274 = vunpack.c.h.b16 %v2375
  %v3275 = vunpack.c.l.b16 %v2376
  %v3276 = vunpack.c.h.b16 %v2376
  %v3277 = vunpack.c.l.b16 %v2377
  %v3278 = vunpack.c.h.b16 %v2377
  %v3279 = vunpack.c.l.b16 %v2378
  %v3280 = vunpack.c.h.b16 %v2378
  %v3281 = vunpack.c.l.b16 %v2379
  %v3282 = vunpack.c.h.b16 %v2379
  %v3283 = vunpack.c.l.b16 %v2380
  %v3284 = vunpack.c.h.b16 %v2380
  %v3285 = vunpack.c.l.b16 %v2381
  %v3286 = vunpack.c.h.b16 %v2381
  %v3287 = vunpack.c.l.b16 %v2382
  %v3288 = vunpack.c.h.b16 %v2382
  %v3289 = vunpack.c.l.b16 %v2383
  %v3290 = vunpack.c.h.b16 %v2383
  %v3291 = vunpack.c.l.b16 %v2384
  %v3292 = vunpack.c.h.b16 %v2384
  %v3293 = vunpack.c.l.b16 %v2385
  %v3294 = vunpack.c.h.b16 %v2385
  %v3295 = vunpack.c.l.b16 %v2386
  %v3296 = vunpack.c.h.b16 %v2386
  %v3297 = vunpack.c.l.b16 %v2387
  %v3298 = vunpack.c.h.b16 %v2387
  %v3299 = vunpack.c.l.b16 %v2388
  %v3300 = vunpack.c.h.b16 %v2388
  %v3301 = vunpack.c.l.b16 %v2389
  %v3302 = vunpack.c.h.b16 %v2389
  %v3303 = vunpack.c.l.b16 %v2390
  %v3304 = vunpack.c.h.b16 %v2390
  %v3305 = vunpack.c.l.b16 %v2391
  %v3306 = vunpack.c.h.b16 %v2391
  %v3307 = vunpack.c.l.b16 %v2392
  %v3308 = vunpack.c.h.b16 %v2392
  %v3309 = vunpack.c.l.b16 %v2393
  %v3310 = vunpack.c.h.b16 %v2393
  %v3311 = vunpack.c.l.b16 %v2394
  %v3312 = vunpack.c.h.b16 %v2394
  %v3313 = vunpack.c.l.b16 %v2395
  %v3314 = vunpack.c.h.b16 %v2395
  %v3315 = vunpack.c.l.b16 %v2396
  %v3316 = vunpack.c.h.b16 %v2396
  %v3317 = vunpack.c.l.b16 %v2397
  %v3318 = vunpack.c.h.b16 %v2397
  %v3319 = vunpack.c.l.b16 %v2398
  %v3320 = vunpack.c.h.b16 %v2398
  %v3321 = vunpack.c.l.b16 %v2399
  %v3322 = vunpack.c.h.b16 %v2399
  %v3323 = vunpack.c.l.b16 %v2400
  %v3324 = vunpack.c.h.b16 %v2400
  %v3325 = vunpack.c.l.b16 %v2401
  %v3326 = vunpack.c.h.b16 %v2401
  %v3327 = vunpack.c.l.b16 %v2402
  %v3328 = vunpack.c.h.b16 %v2402
  %v3329 = vunpack.c.l.b16 %v2403
  %v3330 = vunpack.c.h.b16 %v2403
  %v3331 = vunpack.c.l.b16 %v2404
  %v3332 = vunpack.c.h.b16 %v2404
  %v3333 = vunpack.c.l.b16 %v2405
  %v3334 = vunpack.c.h.b16 %v2405
  %v3335 = vunpack.c.l.b16 %v2406
  %v3336 = vunpack.c.h.b16 %v2406
  %v3337 = vunpack.c.l.b16 %v2407
  %v3338 = vunpack.c.h.b16 %v2407
  %v3339 = vunpack.c.l.b16 %v2408
  %v3340 = vunpack.c.h.b16 %v2408
  %v3341 = vunpack.c.l.b16 %v2409
  %v3342 = vunpack.c.h.b16 %v2409
  %v3343 = vunpack.c.l.b16 %v2410
  %v3344 = vunpack.c.h.b16 %v2410
  %v3345 = vunpack.c.l.b16 %v2411
  %v3346 = vunpack.c.h.b16 %v2411
  %v3347 = vunpack.c.l.b16 %v2412
  %v3348 = vunpack.c.h.b16 %v2412
  %v3349 = vunpack.c.l.b16 %v2413
  %v3350 = vunpack.c.h.b16 %v2413
  %v3351 = vunpack.c.l.b16 %v2414
  %v3352 = vunpack.c.h.b16 %v2414
  %v3353 = vunpack.c.l.b16 %v2415
  %v3354 = vunpack.c.h.b16 %v2415
  %v3355 = vunpack.c.l.b16 %v2416
  %v3356 = vunpack.c.h.b16 %v2416
  %v3357 = vunpack.c.l.b16 %v2417
  %v3358 = vunpack.c.h.b16 %v2417
  %v3359 = vunpack.c.l.b16 %v2418
  %v3360 = vunpack.c.h.b16 %v2418
  %v3361 = vunpack.c.l.b16 %v2419
  %v3362 = vunpack.c.h.b16 %v2419
  %v3363 = vunpack.c.l.b16 %v2420
  %v3364 = vunpack.c.h.b16 %v2420
  %v3365 = vunpack.c.l.b16 %v2421
  %v3366 = vunpack.c.h.b16 %v2421
  %v3367 = vunpack.c.l.b16 %v2422
  %v3368 = vunpack.c.h.b16 %v2422
  %v3369 = vunpack.c.l.b16 %v2423
  %v3370 = vunpack.c.h.b16 %v2423
  %v3371 = vunpack.c.l.b16 %v2424
  %v3372 = vunpack.c.h.b16 %v2424
  %v3373 = vunpack.c.l.b16 %v2425
  %v3374 = vunpack.c.h.b16 %v2425
  %v3375 = vunpack.c.l.b16 %v2426
  %v3376 = vunpack.c.h.b16 %v2426
  %v3377 = vunpack.c.l.b16 %v2427
  %v3378 = vunpack.c.h.b16 %v2427
  %v3379 = vunpack.c.l.b16 %v2428
  %v3380 = vunpack.c.h.b16 %v2428
  %v3381 = vunpack.c.l.b16 %v2429
  %v3382 = vunpack.c.h.b16 %v2429
  %v3383 = vunpack.c.l.b16 %v2430
  %v3384 = vunpack.c.h.b16 %v2430
  %v3385 = vunpack.c.l.b16 %v2431
  %v3386 = vunpack.c.h.b16 %v2431
  %v3387 = vunpack.c.l.b16 %v2432
  %v3388 = vunpack.c.h.b16 %v2432
  %v3389 = vunpack.c.l.b16 %v2433
  %v3390 = vunpack.c.h.b16 %v2433
  %v3391 = vunpack.c.l.b16 %v2434
  %v3392 = vunpack.c.h.b16 %v2434
  %v3393 = vunpack.c.l.b16 %v2435
  %v3394 = vunpack.c.h.b16 %v2435
  %v3395 = vunpack.c.l.b16 %v2436
  %v3396 = vunpack.c.h.b16 %v2436
  %v3397 = vunpack.c.l.b16 %v2437
  %v3398 = vunpack.c.h.b16 %v2437
  %v3399 = vunpack.c.l.b16 %v2438
  %v3400 = vunpack.c.h.b16 %v2438
  %v3401 = vunpack.c.l.b16 %v2439
  %v3402 = vunpack.c.h.b16 %v2439
  %v3403 = vunpack.c.l.b16 %v2440
  %v3404 = vunpack.c.h.b16 %v2440
  %v3405 = vunpack.c.l.b16 %v2441
  %v3406 = vunpack.c.h.b16 %v2441
  %v3407 = vunpack.c.l.b16 %v2442
  %v3408 = vunpack.c.h.b16 %v2442
  %v3409 = vunpack.c.l.b16 %v2443
  %v3410 = vunpack.c.h.b16 %v2443
  %v3411 = vunpack.c.l.b16 %v2444
  %v3412 = vunpack.c.h.b16 %v2444
  %v3413 = vunpack.c.l.b16 %v2445
  %v3414 = vunpack.c.h.b16 %v2445
  %v3415 = vunpack.c.l.b16 %v2446
  %v3416 = vunpack.c.h.b16 %v2446
  %v3417 = vunpack.c.l.b16 %v2447
  %v3418 = vunpack.c.h.b16 %v2447
  %v3419 = vunpack.c.l.b16 %v2448
  %v3420 = vunpack.c.h.b16 %v2448
  %v3421 = vunpack.c.l.b16 %v2449
  %v3422 = vunpack.c.h.b16 %v2449
  %v3423 = vunpack.c.l.b16 %v2450
  %v3424 = vunpack.c.h.b16 %v2450
  %v3425 = vunpack.c.l.b16 %v2451
  %v3426 = vunpack.c.h.b16 %v2451
  %v3427 = vunpack.c.l.b16 %v2452
  %v3428 = vunpack.c.h.b16 %v2452
  %v3429 = vunpack.c.l.b16 %v2453
  %v3430 = vunpack.c.h.b16 %v2453
  %v3431 = vunpack.c.l.b16 %v2454
  %v3432 = vunpack.c.h.b16 %v2454
  %v3433 = vunpack.c.l.b16 %v2455
  %v3434 = vunpack.c.h.b16 %v2455
  %v3435 = vunpack.c.l.b16 %v2456
  %v3436 = vunpack.c.h.b16 %v2456
  %v3437 = vunpack.c.l.b16 %v2457
  %v3438 = vunpack.c.h.b16 %v2457
  %v3439 = vunpack.c.l.b16 %v2458
  %v3440 = vunpack.c.h.b16 %v2458
  %v3441 = vunpack.c.l.b16 %v2459
  %v3442 = vunpack.c.h.b16 %v2459
  %v3443 = vunpack.c.l.b16 %v2460
  %v3444 = vunpack.c.h.b16 %v2460
  %v3445 = vunpack.c.l.b16 %v2461
  %v3446 = vunpack.c.h.b16 %v2461
  %v3447 = vunpack.c.l.b16 %v2462
  %v3448 = vunpack.c.h.b16 %v2462
  %v3449 = vunpack.c.l.b16 %v2463
  %v3450 = vunpack.c.h.b16 %v2463
  %v3451 = vunpack.c.l.b16 %v2464
  %v3452 = vunpack.c.h.b16 %v2464
  %v3453 = vunpack.c.l.b16 %v2465
  %v3454 = vunpack.c.h.b16 %v2465
  %v3455 = vunpack.c.l.b16 %v2466
  %v3456 = vunpack.c.h.b16 %v2466
  %v3457 = vunpack.c.l.b16 %v2467
  %v3458 = vunpack.c.h.b16 %v2467
  %v3459 = vunpack.c.l.b16 %v2468
  %v3460 = vunpack.c.h.b16 %v2468
  %v3461 = vunpack.c.l.b16 %v2469
  %v3462 = vunpack.c.h.b16 %v2469
  %v3463 = vunpack.c.l.b16 %v2470
  %v3464 = vunpack.c.h.b16 %v2470
  %v3465 = vunpack.c.l.b16 %v2471
  %v3466 = vunpack.c.h.b16 %v2471
  %v3467 = vunpack.c.l.b16 %v2472
  %v3468 = vunpack.c.h.b16 %v2472
  %v3469 = vunpack.c.l.b16 %v2473
  %v3470 = vunpack.c.h.b16 %v2473
  %v3471 = vunpack.c.l.b16 %v2474
  %v3472 = vunpack.c.h.b16 %v2474
  %v3473 = vunpack.c.l.b16 %v2475
  %v3474 = vunpack.c.h.b16 %v2475
  %v3475 = vunpack.c.l.b16 %v2476
  %v3476 = vunpack.c.h.b16 %v2476
  %v3477 = vunpack.c.l.b16 %v2477
  %v3478 = vunpack.c.h.b16 %v2477
  %v3479 = vunpack.c.l.b16 %v2478
  %v3480 = vunpack.c.h.b16 %v2478
  %v3481 = vunpack.c.l.b16 %v2479
  %v3482 = vunpack.c.h.b16 %v2479
  %v3483 = vunpack.c.l.b16 %v2480
  %v3484 = vunpack.c.h.b16 %v2480
  %v3485 = vunpack.c.l.b16 %v2481
  %v3486 = vunpack.c.h.b16 %v2481
  %v3487 = vunpack.c.l.b16 %v2482
  %v3488 = vunpack.c.h.b16 %v2482
  %v3489 = vunpack.c.l.b16 %v2483
  %v3490 = vunpack.c.h.b16 %v2483
  %v3491 = vunpack.c.l.b16 %v2484
  %v3492 = vunpack.c.h.b16 %v2484
  %v3493 = vunpack.c.l.b16 %v2485
  %v3494 = vunpack.c.h.b16 %v2485
  %v3495 = vunpack.c.l.b16 %v2486
  %v3496 = vunpack.c.h.b16 %v2486
  %v3497 = vunpack.c.l.b16 %v2487
  %v3498 = vunpack.c.h.b16 %v2487
  %v3499 = vunpack.c.l.b16 %v2488
  %v3500 = vunpack.c.h.b16 %v2488
  %v3501 = vunpack.c.l.b16 %v2489
  %v3502 = vunpack.c.h.b16 %v2489
  %v3503 = vunpack.c.l.b16 %v2490
  %v3504 = vunpack.c.h.b16 %v2490
  %v3505 = vunpack.c.l.b16 %v2491
  %v3506 = vunpack.c.h.b16 %v2491
  %v3507 = vunpack.c.l.b16 %v2492
  %v3508 = vunpack.c.h.b16 %v2492
  %v3509 = vunpack.c.l.b16 %v2493
  %v3510 = vunpack.c.h.b16 %v2493
  %v3511 = vunpack.c.l.b16 %v2494
  %v3512 = vunpack.c.h.b16 %v2494
  %v3513 = vunpack.c.l.b16 %v2495
  %v3514 = vunpack.c.h.b16 %v2495
  %v3515 = vunpack.c.l.b16 %v2496
  %v3516 = vunpack.c.h.b16 %v2496
  %v3517 = vunpack.c.l.b16 %v2497
  %v3518 = vunpack.c.h.b16 %v2497
  %v3519 = vunpack.c.l.b16 %v2498
  %v3520 = vunpack.c.h.b16 %v2498
  %v3521 = vunpack.c.l.b16 %v2499
  %v3522 = vunpack.c.h.b16 %v2499
  %v3523 = vunpack.c.l.b16 %v2500
  %v3524 = vunpack.c.h.b16 %v2500
  %v3525 = vunpack.c.l.b16 %v2501
  %v3526 = vunpack.c.h.b16 %v2501
  %v3527 = vunpack.c.l.b16 %v2502
  %v3528 = vunpack.c.h.b16 %v2502
  %v3529 = vunpack.c.l.b16 %v2503
  %v3530 = vunpack.c.h.b16 %v2503
  %v3531 = vunpack.c.l.b16 %v2504
  %v3532 = vunpack.c.h.b16 %v2504
  %v3533 = vunpack.c.l.b16 %v2505
  %v3534 = vunpack.c.h.b16 %v2505
  %v3535 = vunpack.c.l.b16 %v2506
  %v3536 = vunpack.c.h.b16 %v2506
  %v3537 = vunpack.c.l.b16 %v2507
  %v3538 = vunpack.c.h.b16 %v2507
  %v3539 = vunpack.c.l.b16 %v2508
  %v3540 = vunpack.c.h.b16 %v2508
  %v3541 = vunpack.c.l.b16 %v2509
  %v3542 = vunpack.c.h.b16 %v2509
  %v3543 = vunpack.c.l.b16 %v2510
  %v3544 = vunpack.c.h.b16 %v2510
  %v3545 = vunpack.c.l.b16 %v2511
  %v3546 = vunpack.c.h.b16 %v2511
  %v3547 = vunpack.c.l.b16 %v2512
  %v3548 = vunpack.c.h.b16 %v2512
  %v3549 = vunpack.c.l.b16 %v2513
  %v3550 = vunpack.c.h.b16 %v2513
  %v3551 = vunpack.c.l.b16 %v2514
  %v3552 = vunpack.c.h.b16 %v2514
  %v3553 = vunpack.c.l.b16 %v2515
  %v3554 = vunpack.c.h.b16 %v2515
  %v3555 = vunpack.c.l.b16 %v2516
  %v3556 = vunpack.c.h.b16 %v2516
  %v3557 = vunpack.c.l.b16 %v2517
  %v3558 = vunpack.c.h.b16 %v2517
  %v3559 = vunpack.c.l.b16 %v2518
  %v3560 = vunpack.c.h.b16 %v2518
  %v3561 = vunpack.c.l.b16 %v2519
  %v3562 = vunpack.c.h.b16 %v2519
  %v3563 = vunpack.c.l.b16 %v2520
  %v3564 = vunpack.c.h.b16 %v2520
  %v3565 = vunpack.c.l.b16 %v2521
  %v3566 = vunpack.c.h.b16 %v2521
  %v3567 = vunpack.c.l.b16 %v2522
  %v3568 = vunpack.c.h.b16 %v2522
  %v3569 = vunpack.c.l.b16 %v2523
  %v3570 = vunpack.c.h.b16 %v2523
  %v3571 = vunpack.c.l.b16 %v2524
  %v3572 = vunpack.c.h.b16 %v2524
  %v3573 = vunpack.c.l.b16 %v2525
  %v3574 = vunpack.c.h.b16 %v2525
  %v3575 = vunpack.c.l.b16 %v2526
  %v3576 = vunpack.c.h.b16 %v2526
  %v3577 = vunpack.c.l.b16 %v2527
  %v3578 = vunpack.c.h.b16 %v2527
  %v3579 = vunpack.c.l.b16 %v2528
  %v3580 = vunpack.c.h.b16 %v2528
  %v3581 = vunpack.c.l.b16 %v2529
  %v3582 = vunpack.c.h.b16 %v2529
  %v3583 = vunpack.c.l.b16 %v2530
  %v3584 = vunpack.c.h.b16 %v2530
  %v3585 = vunpack.c.l.b16 %v2531
  %v3586 = vunpack.c.h.b16 %v2531
  %v3587 = vunpack.c.l.b16 %v2532
  %v3588 = vunpack.c.h.b16 %v2532
  %v3589 = vunpack.c.l.b16 %v2533
  %v3590 = vunpack.c.h.b16 %v2533
  %v3591 = vunpack.c.l.b16 %v2534
  %v3592 = vunpack.c.h.b16 %v2534
  %v3593 = vunpack.c.l.b16 %v2535
  %v3594 = vunpack.c.h.b16 %v2535
  %v3595 = vunpack.c.l.b16 %v2536
  %v3596 = vunpack.c.h.b16 %v2536
  %v3597 = vunpack.c.l.b16 %v2537
  %v3598 = vunpack.c.h.b16 %v2537
  %v3599 = vunpack.c.l.b16 %v2538
  %v3600 = vunpack.c.h.b16 %v2538
  %v3601 = vunpack.c.l.b16 %v2539
  %v3602 = vunpack.c.h.b16 %v2539
  %v3603 = vunpack.c.l.b16 %v2540
  %v3604 = vunpack.c.h.b16 %v2540
  %v3605 = vunpack.c.l.b16 %v2541
  %v3606 = vunpack.c.h.b16 %v2541
  %v3607 = vunpack.c.l.b16 %v2542
  %v3608 = vunpack.c.h.b16 %v2542
  %v3609 = vunpack.c.l.b16 %v2543
  %v3610 = vunpack.c.h.b16 %v2543
  %v3611 = vunpack.c.l.b16 %v2544
  %v3612 = vunpack.c.h.b16 %v2544
  %v3613 = vunpack.c.l.b16 %v2545
  %v3614 = vunpack.c.h.b16 %v2545
  %v3615 = vunpack.c.l.b16 %v2546
  %v3616 = vunpack.c.h.b16 %v2546
  %v3617 = vunpack.c.l.b16 %v2547
  %v3618 = vunpack.c.h.b16 %v2547
  %v3619 = vunpack.c.l.b16 %v2548
  %v3620 = vunpack.c.h.b16 %v2548
  %v3621 = vunpack.c.l.b16 %v2549
  %v3622 = vunpack.c.h.b16 %v2549
  %v3623 = vunpack.c.l.b16 %v2550
  %v3624 = vunpack.c.h.b16 %v2550
  %v3625 = vunpack.c.l.b16 %v2551
  %v3626 = vunpack.c.h.b16 %v2551
  %v3627 = vunpack.c.l.b16 %v2552
  %v3628 = vunpack.c.h.b16 %v2552
  %v3629 = vunpack.c.l.b16 %v2553
  %v3630 = vunpack.c.h.b16 %v2553
  %v3631 = vunpack.c.l.b16 %v2554
  %v3632 = vunpack.c.h.b16 %v2554
  %v3633 = vunpack.c.l.b16 %v2555
  %v3634 = vunpack.c.h.b16 %v2555
  %v3635 = vunpack.c.l.b16 %v2556
  %v3636 = vunpack.c.h.b16 %v2556
  %v3637 = vunpack.c.l.b16 %v2557
  %v3638 = vunpack.c.h.b16 %v2557
  %v3639 = vunpack.c.l.b16 %v2558
  %v3640 = vunpack.c.h.b16 %v2558
  %v3641 = vunpack.c.l.b16 %v2559
  %v3642 = vunpack.c.h.b16 %v2559
  %v3643 = vunpack.c.l.b16 %v2560
  %v3644 = vunpack.c.h.b16 %v2560
  %v3645 = vunpack.c.l.b16 %v2561
  %v3646 = vunpack.c.h.b16 %v2561
  %v3647 = vunpack.c.l.b16 %v2562
  %v3648 = vunpack.c.h.b16 %v2562
  %v3649 = vunpack.c.l.b16 %v2563
  %v3650 = vunpack.c.h.b16 %v2563
  %v3651 = vunpack.c.l.b16 %v2564
  %v3652 = vunpack.c.h.b16 %v2564
  %v3653 = vunpack.c.l.b16 %v2565
  %v3654 = vunpack.c.h.b16 %v2565
  %v3655 = vunpack.c.l.b16 %v2566
  %v3656 = vunpack.c.h.b16 %v2566
  %v3657 = vunpack.c.l.b16 %v2567
  %v3658 = vunpack.c.h.b16 %v2567
  %v3659 = vunpack.c.l.b16 %v2568
  %v3660 = vunpack.c.h.b16 %v2568
  %v3661 = vunpack.c.l.b16 %v2569
  %v3662 = vunpack.c.h.b16 %v2569
  %v3663 = vunpack.c.l.b16 %v2570
  %v3664 = vunpack.c.h.b16 %v2570
  %v3665 = vunpack.c.l.b16 %v2571
  %v3666 = vunpack.c.h.b16 %v2571
  %v3667 = vunpack.c.l.b16 %v2572
  %v3668 = vunpack.c.h.b16 %v2572
  %v3669 = vunpack.c.l.b16 %v2573
  %v3670 = vunpack.c.h.b16 %v2573
  %v3671 = vunpack.c.l.b16 %v2574
  %v3672 = vunpack.c.h.b16 %v2574
  %v3673 = vunpack.c.l.b16 %v2575
  %v3674 = vunpack.c.h.b16 %v2575
  %v3675 = vunpack.c.l.b16 %v2576
  %v3676 = vunpack.c.h.b16 %v2576
  %v3677 = vunpack.c.l.b16 %v2577
  %v3678 = vunpack.c.h.b16 %v2577
  %v3679 = vunpack.c.l.b16 %v2578
  %v3680 = vunpack.c.h.b16 %v2578
  %v3681 = vunpack.c.l.b16 %v2579
  %v3682 = vunpack.c.h.b16 %v2579
  %v3683 = vunpack.c.l.b16 %v2580
  %v3684 = vunpack.c.h.b16 %v2580
  %v3685 = vunpack.c.l.b16 %v2581
  %v3686 = vunpack.c.h.b16 %v2581
  %v3687 = vunpack.c.l.b16 %v2582
  %v3688 = vunpack.c.h.b16 %v2582
  %v3689 = vunpack.c.l.b16 %v2583
  %v3690 = vunpack.c.h.b16 %v2583
  %v3691 = vunpack.c.l.b16 %v2584
  %v3692 = vunpack.c.h.b16 %v2584
  %v3693 = vunpack.c.l.b16 %v2585
  %v3694 = vunpack.c.h.b16 %v2585
  %v3695 = vunpack.c.l.b16 %v2586
  %v3696 = vunpack.c.h.b16 %v2586
  %v3697 = vunpack.c.l.b16 %v2587
  %v3698 = vunpack.c.h.b16 %v2587
  %v3699 = vunpack.c.l.b16 %v2588
  %v3700 = vunpack.c.h.b16 %v2588
  %v3701 = vunpack.c.l.b16 %v2589
  %v3702 = vunpack.c.h.b16 %v2589
  %v3703 = vunpack.c.l.b16 %v2590
  %v3704 = vunpack.c.h.b16 %v2590
  %v3705 = vunpack.c.l.b16 %v2591
  %v3706 = vunpack.c.h.b16 %v2591
  %v3707 = vunpack.c.l.b16 %v2592
  %v3708 = vunpack.c.h.b16 %v2592
  %v3709 = vunpack.c.l.b16 %v2593
  %v3710 = vunpack.c.h.b16 %v2593
  %v3711 = vunpack.c.l.b16 %v2594
  %v3712 = vunpack.c.h.b16 %v2594
  %v3713 = vunpack.c.l.b16 %v2595
  %v3714 = vunpack.c.h.b16 %v2595
  %v3715 = vunpack.c.l.b16 %v2596
  %v3716 = vunpack.c.h.b16 %v2596
  %v3717 = vunpack.c.l.b16 %v2597
  %v3718 = vunpack.c.h.b16 %v2597
  %v3719 = vunpack.c.l.b16 %v2598
  %v3720 = vunpack.c.h.b16 %v2598
  %v3721 = vunpack.c.l.b16 %v2599
  %v3722 = vunpack.c.h.b16 %v2599
  %v3723 = vunpack.c.l.b16 %v2600
  %v3724 = vunpack.c.h.b16 %v2600
  %v3725 = vunpack.c.l.b16 %v2601
  %v3726 = vunpack.c.h.b16 %v2601
  %v3727 = vunpack.c.l.b16 %v2602
  %v3728 = vunpack.c.h.b16 %v2602
  %v3729 = vunpack.c.l.b16 %v2603
  %v3730 = vunpack.c.h.b16 %v2603
  %v3731 = vunpack.c.l.b16 %v2604
  %v3732 = vunpack.c.h.b16 %v2604
  %v3733 = vunpack.c.l.b16 %v2605
  %v3734 = vunpack.c.h.b16 %v2605
  %v3735 = vunpack.c.l.b16 %v2606
  %v3736 = vunpack.c.h.b16 %v2606
  %v3737 = vunpack.c.l.b16 %v2607
  %v3738 = vunpack.c.h.b16 %v2607
  %v3739 = vunpack.c.l.b16 %v2608
  %v3740 = vunpack.c.h.b16 %v2608
  %v3741 = vunpack.c.l.b16 %v2609
  %v3742 = vunpack.c.h.b16 %v2609
  %v3743 = vunpack.c.l.b16 %v2610
  %v3744 = vunpack.c.h.b16 %v2610
  %v3745 = vunpack.c.l.b16 %v2611
  %v3746 = vunpack.c.h.b16 %v2611
  %v3747 = vunpack.c.l.b16 %v2612
  %v3748 = vunpack.c.h.b16 %v2612
  %v3749 = vunpack.c.l.b16 %v2613
  %v3750 = vunpack.c.h.b16 %v2613
  %v3751 = vunpack.c.l.b16 %v2614
  %v3752 = vunpack.c.h.b16 %v2614
  %v3753 = vunpack.c.l.b16 %v2615
  %v3754 = vunpack.c.h.b16 %v2615
  %v3755 = vunpack.c.l.b16 %v2616
  %v3756 = vunpack.c.h.b16 %v2616
  %v3757 = vunpack.c.l.b16 %v2617
  %v3758 = vunpack.c.h.b16 %v2617
  %v3759 = vunpack.c.l.b16 %v2618
  %v3760 = vunpack.c.h.b16 %v2618
  %v3761 = vunpack.c.l.b16 %v2619
  %v3762 = vunpack.c.h.b16 %v2619
  %v3763 = vunpack.c.l.b16 %v2620
  %v3764 = vunpack.c.h.b16 %v2620
  %v3765 = vunpack.c.l.b16 %v2621
  %v3766 = vunpack.c.h.b16 %v2621
  %v3767 = vunpack.c.l.b16 %v2622
  %v3768 = vunpack.c.h.b16 %v2622
  %v3769 = vunpack.c.l.b16 %v2623
  %v3770 = vunpack.c.h.b16 %v2623
  %v3771 = vunpack.c.l.b16 %v2624
  %v3772 = vunpack.c.h.b16 %v2624
  %v3773 = vunpack.c.l.b16 %v2625
  %v3774 = vunpack.c.h.b16 %v2625
  %v3775 = vunpack.c.l.b16 %v2626
  %v3776 = vunpack.c.h.b16 %v2626
  %v3777 = vunpack.c.l.b16 %v2627
  %v3778 = vunpack.c.h.b16 %v2627
  %v3779 = vunpack.c.l.b16 %v2628
  %v3780 = vunpack.c.h.b16 %v2628
  %v3781 = vunpack.c.l.b16 %v2629
  %v3782 = vunpack.c.h.b16 %v2629
  %v3783 = vunpack.c.l.b16 %v2630
  %v3784 = vunpack.c.h.b16 %v2630
  %v3785 = vunpack.c.l.b16 %v2631
  %v3786 = vunpack.c.h.b16 %v2631
  %v3787 = vunpack.c.l.b16 %v2632
  %v3788 = vunpack.c.h.b16 %v2632
  %v3789 = vunpack.c.l.b16 %v2633
  %v3790 = vunpack.c.h.b16 %v2633
  %v3791 = vunpack.c.l.b16 %v2634
  %v3792 = vunpack.c.h.b16 %v2634
  %v3793 = vunpack.c.l.b16 %v2635
  %v3794 = vunpack.c.h.b16 %v2635
  %v3795 = vunpack.c.l.b16 %v2636
  %v3796 = vunpack.c.h.b16 %v2636
  %v3797 = vunpack.c.l.b16 %v2637
  %v3798 = vunpack.c.h.b16 %v2637
  %v3799 = vunpack.c.l.b16 %v2638
  %v3800 = vunpack.c.h.b16 %v2638
  %v3801 = vunpack.c.l.b16 %v2639
  %v3802 = vunpack.c.h.b16 %v2639
  %v3803 = vunpack.c.l.b16 %v2640
  %v3804 = vunpack.c.h.b16 %v2640
  %v3805 = vunpack.c.l.b16 %v2641
  %v3806 = vunpack.c.h.b16 %v2641
  %v3807 = vunpack.c.l.b16 %v2642
  %v3808 = vunpack.c.h.b16 %v2642
  %v3809 = vunpack.c.l.b16 %v2643
  %v3810 = vunpack.c.h.b16 %v2643
  %v3811 = vunpack.c.l.b16 %v2644
  %v3812 = vunpack.c.h.b16 %v2644
  %v3813 = vunpack.c.l.b16 %v2645
  %v3814 = vunpack.c.h.b16 %v2645
  %v3815 = vunpack.c.l.b16 %v2646
  %v3816 = vunpack.c.h.b16 %v2646
  %v3817 = vpack.c.b16 %v3057, %v3049
  %v3818 = vpack.c.b16 %v3058, %v3050
  %v3819 = vpack.c.b16 %v3059, %v3051
  %v3820 = vpack.c.b16 %v3060, %v3052
  %v3821 = vpack.c.b16 %v3061, %v3053
  %v3822 = vpack.c.b16 %v3062, %v3054
  %v3823 = vpack.c.b16 %v3063, %v3055
  %v3824 = vpack.c.b16 %v3064, %v3056
  %v3825 = vpack.c.b16 %v3073, %v3065
  %v3826 = vpack.c.b16 %v3074, %v3066
  %v3827 = vpack.c.b16 %v3075, %v3067
  %v3828 = vpack.c.b16 %v3076, %v3068
  %v3829 = vpack.c.b16 %v3077, %v3069
  %v3830 = vpack.c.b16 %v3078, %v3070
  %v3831 = vpack.c.b16 %v3079, %v3071
  %v3832 = vpack.c.b16 %v3080, %v3072
  %v3833 = vpack.c.b16 %v3089, %v3081
  %v3834 = vpack.c.b16 %v3090, %v3082
  %v3835 = vpack.c.b16 %v3091, %v3083
  %v3836 = vpack.c.b16 %v3092, %v3084
  %v3837 = vpack.c.b16 %v3093, %v3085
  %v3838 = vpack.c.b16 %v3094, %v3086
  %v3839 = vpack.c.b16 %v3095, %v3087
  %v3840 = vpack.c.b16 %v3096, %v3088
  %v3841 = vpack.c.b16 %v3105, %v3097
  %v3842 = vpack.c.b16 %v3106, %v3098
  %v3843 = vpack.c.b16 %v3107, %v3099
  %v3844 = vpack.c.b16 %v3108, %v3100
  %v3845 = vpack.c.b16 %v3109, %v3101
  %v3846 = vpack.c.b16 %v3110, %v3102
  %v3847 = vpack.c.b16 %v3111, %v3103
  %v3848 = vpack.c.b16 %v3112, %v3104
  %v3849 = vpack.c.b16 %v3121, %v3113
  %v3850 = vpack.c.b16 %v3122, %v3114
  %v3851 = vpack.c.b16 %v3123, %v3115
  %v3852 = vpack.c.b16 %v3124, %v3116
  %v3853 = vpack.c.b16 %v3125, %v3117
  %v3854 = vpack.c.b16 %v3126, %v3118
  %v3855 = vpack.c.b16 %v3127, %v3119
  %v3856 = vpack.c.b16 %v3128, %v3120
  %v3857 = vpack.c.b16 %v3137, %v3129
  %v3858 = vpack.c.b16 %v3138, %v3130
  %v3859 = vpack.c.b16 %v3139, %v3131
  %v3860 = vpack.c.b16 %v3140, %v3132
  %v3861 = vpack.c.b16 %v3141, %v3133
  %v3862 = vpack.c.b16 %v3142, %v3134
  %v3863 = vpack.c.b16 %v3143, %v3135
  %v3864 = vpack.c.b16 %v3144, %v3136
  %v3865 = vpack.c.b16 %v3153, %v3145
  %v3866 = vpack.c.b16 %v3154, %v3146
  %v3867 = vpack.c.b16 %v3155, %v3147
  %v3868 = vpack.c.b16 %v3156, %v3148
  %v3869 = vpack.c.b16 %v3157, %v3149
  %v3870 = vpack.c.b16 %v3158, %v3150
  %v3871 = vpack.c.b16 %v3159, %v3151
  %v3872 = vpack.c.b16 %v3160, %v3152
  %v3873 = vpack.c.b16 %v3169, %v3161
  %v3874 = vpack.c.b16 %v3170, %v3162
  %v3875 = vpack.c.b16 %v3171, %v3163
  %v3876 = vpack.c.b16 %v3172, %v3164
  %v3877 = vpack.c.b16 %v3173, %v3165
  %v3878 = vpack.c.b16 %v3174, %v3166
  %v3879 = vpack.c.b16 %v3175, %v3167
  %v3880 = vpack.c.b16 %v3176, %v3168
  %v3881 = vpack.c.b16 %v3185, %v3177
  %v3882 = vpack.c.b16 %v3186, %v3178
  %v3883 = vpack.c.b16 %v3187, %v3179
  %v3884 = vpack.c.b16 %v3188, %v3180
  %v3885 = vpack.c.b16 %v3189, %v3181
  %v3886 = vpack.c.b16 %v3190, %v3182
  %v3887 = vpack.c.b16 %v3191, %v3183
  %v3888 = vpack.c.b16 %v3192, %v3184
  %v3889 = vpack.c.b16 %v3201, %v3193
  %v3890 = vpack.c.b16 %v3202, %v3194
  %v3891 = vpack.c.b16 %v3203, %v3195
  %v3892 = vpack.c.b16 %v3204, %v3196
  %v3893 = vpack.c.b16 %v3205, %v3197
  %v3894 = vpack.c.b16 %v3206, %v3198
  %v3895 = vpack.c.b16 %v3207, %v3199
  %v3896 = vpack.c.b16 %v3208, %v3200
  %v3897 = vpack.c.b16 %v3217, %v3209
  %v3898 = vpack.c.b16 %v3218, %v3210
  %v3899 = vpack.c.b16 %v3219, %v3211
  %v3900 = vpack.c.b16 %v3220, %v3212
  %v3901 = vpack.c.b16 %v3221, %v3213
  %v3902 = vpack.c.b16 %v3222, %v3214
  %v3903 = vpack.c.b16 %v3223, %v3215
  %v3904 = vpack.c.b16 %v3224, %v3216
  %v3905 = vpack.c.b16 %v3233, %v3225
  %v3906 = vpack.c.b16 %v3234, %v3226
  %v3907 = vpack.c.b16 %v3235, %v3227
  %v3908 = vpack.c.b16 %v3236, %v3228
  %v3909 = vpack.c.b16 %v3237, %v3229
  %v3910 = vpack.c.b16 %v3238, %v3230
  %v3911 = vpack.c.b16 %v3239, %v3231
  %v3912 = vpack.c.b16 %v3240, %v3232
  %v3913 = vpack.c.b16 %v3249, %v3241
  %v3914 = vpack.c.b16 %v3250, %v3242
  %v3915 = vpack.c.b16 %v3251, %v3243
  %v3916 = vpack.c.b16 %v3252, %v3244
  %v3917 = vpack.c.b16 %v3253, %v3245
  %v3918 = vpack.c.b16 %v3254, %v3246
  %v3919 = vpack.c.b16 %v3255, %v3247
  %v3920 = vpack.c.b16 %v3256, %v3248
  %v3921 = vpack.c.b16 %v3265, %v3257
  %v3922 = vpack.c.b16 %v3266, %v3258
  %v3923 = vpack.c.b16 %v3267, %v3259
  %v3924 = vpack.c.b16 %v3268, %v3260
  %v3925 = vpack.c.b16 %v3269, %v3261
  %v3926 = vpack.c.b16 %v3270, %v3262
  %v3927 = vpack.c.b16 %v3271, %v3263
  %v3928 = vpack.c.b16 %v3272, %v3264
  %v3929 = vpack.c.b16 %v3281, %v3273
  %v3930 = vpack.c.b16 %v3282, %v3274
  %v3931 = vpack.c.b16 %v3283, %v3275
  %v3932 = vpack.c.b16 %v3284, %v3276
  %v3933 = vpack.c.b16 %v3285, %v3277
  %v3934 = vpack.c.b16 %v3286, %v3278
  %v3935 = vpack.c.b16 %v3287, %v3279
  %v3936 = vpack.c.b16 %v3288, %v3280
  %v3937 = vpack.c.b16 %v3297, %v3289
  %v3938 = vpack.c.b16 %v3298, %v3290
  %v3939 = vpack.c.b16 %v3299, %v3291
  %v3940 = vpack.c.b16 %v3300, %v3292
  %v3941 = vpack.c.b16 %v3301, %v3293
  %v3942 = vpack.c.b16 %v3302, %v3294
  %v3943 = vpack.c.b16 %v3303, %v3295
  %v3944 = vpack.c.b16 %v3304, %v3296
  %v3945 = vpack.c.b16 %v3313, %v3305
  %v3946 = vpack.c.b16 %v3314, %v3306
  %v3947 = vpack.c.b16 %v3315, %v3307
  %v3948 = vpack.c.b16 %v3316, %v3308
  %v3949 = vpack.c.b16 %v3317, %v3309
  %v3950 = vpack.c.b16 %v3318, %v3310
  %v3951 = vpack.c.b16 %v3319, %v3311
  %v3952 = vpack.c.b16 %v3320, %v3312
  %v3953 = vpack.c.b16 %v3329, %v3321
  %v3954 = vpack.c.b16 %v3330, %v3322
  %v3955 = vpack.c.b16 %v3331, %v3323
  %v3956 = vpack.c.b16 %v3332, %v3324
  %v3957 = vpack.c.b16 %v3333, %v3325
  %v3958 = vpack.c.b16 %v3334, %v3326
  %v3959 = vpack.c.b16 %v3335, %v3327
  %v3960 = vpack.c.b16 %v3336, %v3328
  %v3961 = vpack.c.b16 %v3345, %v3337
  %v3962 = vpack.c.b16 %v3346, %v3338
  %v3963 = vpack.c.b16 %v3347, %v3339
  %v3964 = vpack.c.b16 %v3348, %v3340
  %v3965 = vpack.c.b16 %v3349, %v3341
  %v3966 = vpack.c.b16 %v3350, %v3342
  %v3967 = vpack.c.b16 %v3351, %v3343
  %v3968 = vpack.c.b16 %v3352, %v3344
  %v3969 = vpack.c.b16 %v3361, %v3353
  %v3970 = vpack.c.b16 %v3362, %v3354
  %v3971 = vpack.c.b16 %v3363, %v3355
  %v3972 = vpack.c.b16 %v3364, %v3356
  %v3973 = vpack.c.b16 %v3365, %v3357
  %v3974 = vpack.c.b16 %v3366, %v3358
  %v3975 = vpack.c.b16 %v3367, %v3359
  %v3976 = vpack.c.b16 %v3368, %v3360
  %v3977 = vpack.c.b16 %v3377, %v3369
  %v3978 = vpack.c.b16 %v3378, %v3370
  %v3979 = vpack.c.b16 %v3379, %v3371
  %v3980 = vpack.c.b16 %v3380, %v3372
  %v3981 = vpack.c.b16 %v3381, %v3373
  %v3982 = vpack.c.b16 %v3382, %v3374
  %v3983 = vpack.c.b16 %v3383, %v3375
  %v3984 = vpack.c.b16 %v3384, %v3376
  %v3985 = vpack.c.b16 %v3393, %v3385
  %v3986 = vpack.c.b16 %v3394, %v3386
  %v3987 = vpack.c.b16 %v3395, %v3387
  %v3988 = vpack.c.b16 %v3396, %v3388
  %v3989 = vpack.c.b16 %v3397, %v3389
  %v3990 = vpack.c.b16 %v3398, %v3390
  %v3991 = vpack.c.b16 %v3399, %v3391
  %v3992 = vpack.c.b16 %v3400, %v3392
  %v3993 = vpack.c.b16 %v3409, %v3401
  %v3994 = vpack.c.b16 %v3410, %v3402
  %v3995 = vpack.c.b16 %v3411, %v3403
  %v3996 = vpack.c.b16 %v3412, %v3404
  %v3997 = vpack.c.b16 %v3413, %v3405
  %v3998 = vpack.c.b16 %v3414, %v3406
  %v3999 = vpack.c.b16 %v3415, %v3407
  %v4000 = vpack.c.b16 %v3416, %v3408
  %v4001 = vpack.c.b16 %v3425, %v3417
  %v4002 = vpack.c.b16 %v3426, %v3418
  %v4003 = vpack.c.b16 %v3427, %v3419
  %v4004 = vpack.c.b16 %v3428, %v3420
  %v4005 = vpack.c.b16 %v3429, %v3421
  %v4006 = vpack.c.b16 %v3430, %v3422
  %v4007 = vpack.c.b16 %v3431, %v3423
  %v4008 = vpack.c.b16 %v3432, %v3424
  %v4009 = vpack.c.b16 %v3441, %v3433
  %v4010 = vpack.c.b16 %v3442, %v3434
  %v4011 = vpack.c.b16 %v3443, %v3435
  %v4012 = vpack.c.b16 %v3444, %v3436
  %v4013 = vpack.c.b16 %v3445, %v3437
  %v4014 = vpack.c.b16 %v3446, %v3438
  %v4015 = vpack.c.b16 %v3447, %v3439
  %v4016 = vpack.c.b16 %v3448, %v3440
  %v4017 = vpack.c.b16 %v3457, %v3449
  %v4018 = vpack.c.b16 %v3458, %v3450
  %v4019 = vpack.c.b16 %v3459, %v3451
  %v4020 = vpack.c.b16 %v3460, %v3452
  %v4021 = vpack.c.b16 %v3461, %v3453
  %v4022 = vpack.c.b16 %v3462, %v3454
  %v4023 = vpack.c.b16 %v3463, %v3455
  %v4024 = vpack.c.b16 %v3464, %v3456
  %v4025 = vpack.c.b16 %v3473, %v3465
  %v4026 = vpack.c.b16 %v3474, %v3466
  %v4027 = vpack.c.b16 %v3475, %v3467
  %v4028 = vpack.c.b16 %v3476, %v3468
  %v4029 = vpack.c.b16 %v3477, %v3469
  %v4030 = vpack.c.b16 %v3478, %v3470
  %v4031 = vpack.c.b16 %v3479, %v3471
  %v4032 = vpack.c.b16 %v3480, %v3472
  %v4033 = vpack.c.b16 %v3489, %v3481
  %v4034 = vpack.c.b16 %v3490, %v3482
  %v4035 = vpack.c.b16 %v3491, %v3483
  %v4036 = vpack.c.b16 %v3492, %v3484
  %v4037 = vpack.c.b16 %v3493, %v3485
  %v4038 = vpack.c.b16 %v3494, %v3486
  %v4039 = vpack.c.b16 %v3495, %v3487
  %v4040 = vpack.c.b16 %v3496, %v3488
  %v4041 = vpack.c.b16 %v3505, %v3497
  %v4042 = vpack.c.b16 %v3506, %v3498
  %v4043 = vpack.c.b16 %v3507, %v3499
  %v4044 = vpack.c.b16 %v3508, %v3500
  %v4045 = vpack.c.b16 %v3509, %v3501
  %v4046 = vpack.c.b16 %v3510, %v3502
  %v4047 = vpack.c.b16 %v3511, %v3503
  %v4048 = vpack.c.b16 %v3512, %v3504
  %v4049 = vpack.c.b16 %v3521, %v3513
  %v4050 = vpack.c.b16 %v3522, %v3514
  %v4051 = vpack.c.b16 %v3523, %v3515
  %v4052 = vpack.c.b16 %v3524, %v3516
  %v4053 = vpack.c.b16 %v3525, %v3517
  %v4054 = vpack.c.b16 %v3526, %v3518
  %v4055 = vpack.c.b16 %v3527, %v3519
  %v4056 = vpack.c.b16 %v3528, %v3520
  %v4057 = vpack.c.b16 %v3537, %v3529
  %v4058 = vpack.c.b16 %v3538, %v3530
  %v4059 = vpack.c.b16 %v3539, %v3531
  %v4060 = vpack.c.b16 %v3540, %v3532
  %v4061 = vpack.c.b16 %v3541, %v3533
  %v4062 = vpack.c.b16 %v3542, %v3534
  %v4063 = vpack.c.b16 %v3543, %v3535
  %v4064 = vpack.c.b16 %v3544, %v3536
  %v4065 = vpack.c.b16 %v3553, %v3545
  %v4066 = vpack.c.b16 %v3554, %v3546
  %v4067 = vpack.c.b16 %v3555, %v3547
  %v4068 = vpack.c.b16 %v3556, %v3548
  %v4069 = vpack.c.b16 %v3557, %v3549
  %v4070 = vpack.c.b16 %v3558, %v3550
  %v4071 = vpack.c.b16 %v3559, %v3551
  %v4072 = vpack.c.b16 %v3560, %v3552
  %v4073 = vpack.c.b16 %v3569, %v3561
  %v4074 = vpack.c.b16 %v3570, %v3562
  %v4075 = vpack.c.b16 %v3571, %v3563
  %v4076 = vpack.c.b16 %v3572, %v3564
  %v4077 = vpack.c.b16 %v3573, %v3565
  %v4078 = vpack.c.b16 %v3574, %v3566
  %v4079 = vpack.c.b16 %v3575, %v3567
  %v4080 = vpack.c.b16 %v3576, %v3568
  %v4081 = vpack.c.b16 %v3585, %v3577
  %v4082 = vpack.c.b16 %v3586, %v3578
  %v4083 = vpack.c.b16 %v3587, %v3579
  %v4084 = vpack.c.b16 %v3588, %v3580
  %v4085 = vpack.c.b16 %v3589, %v3581
  %v4086 = vpack.c.b16 %v3590, %v3582
  %v4087 = vpack.c.b16 %v3591, %v3583
  %v4088 = vpack.c.b16 %v3592, %v3584
  %v4089 = vpack.c.b16 %v3601, %v3593
  %v4090 = vpack.c.b16 %v3602, %v3594
  %v4091 = vpack.c.b16 %v3603, %v3595
  %v4092 = vpack.c.b16 %v3604, %v3596
  %v4093 = vpack.c.b16 %v3605, %v3597
  %v4094 = vpack.c.b16 %v3606, %v3598
  %v4095 = vpack.c.b16 %v3607, %v3599
  %v4096 = vpack.c.b16 %v3608, %v3600
  %v4097 = vpack.c.b16 %v3617, %v3609
  %v4098 = vpack.c.b16 %v3618, %v3610
  %v4099 = vpack.c.b16 %v3619, %v3611
  %v4100 = vpack.c.b16 %v3620, %v3612
  %v4101 = vpack.c.b16 %v3621, %v3613
  %v4102 = vpack.c.b16 %v3622, %v3614
  %v4103 = vpack.c.b16 %v3623, %v3615
  %v4104 = vpack.c.b16 %v3624, %v3616
  %v4105 = vpack.c.b16 %v3633, %v3625
  %v4106 = vpack.c.b16 %v3634, %v3626
  %v4107 = vpack.c.b16 %v3635, %v3627
  %v4108 = vpack.c.b16 %v3636, %v3628
  %v4109 = vpack.c.b16 %v3637, %v3629
  %v4110 = vpack.c.b16 %v3638, %v3630
  %v4111 = vpack.c.b16 %v3639, %v3631
  %v4112 = vpack.c.b16 %v3640, %v3632
  %v4113 = vpack.c.b16 %v3649, %v3641
  %v4114 = vpack.c.b16 %v3650, %v3642
  %v4115 = vpack.c.b16 %v3651, %v3643
  %v4116 = vpack.c.b16 %v3652, %v3644
  %v4117 = vpack.c.b16 %v3653, %v3645
  %v4118 = vpack.c.b16 %v3654, %v3646
  %v4119 = vpack.c.b16 %v3655, %v3647
  %v4120 = vpack.c.b16 %v3656, %v3648
  %v4121 = vpack.c.b16 %v3665, %v3657
  %v4122 = vpack.c.b16 %v3666, %v3658
  %v4123 = vpack.c.b16 %v3667, %v3659
  %v4124 = vpack.c.b16 %v3668, %v3660
  %v4125 = vpack.c.b16 %v3669, %v3661
  %v4126 = vpack.c.b16 %v3670, %v3662
  %v4127 = vpack.c.b16 %v3671, %v3663
  %v4128 = vpack.c.b16 %v3672, %v3664
  %v4129 = vpack.c.b16 %v3681, %v3673
  %v4130 = vpack.c.b16 %v3682, %v3674
  %v4131 = vpack.c.b16 %v3683, %v3675
  %v4132 = vpack.c.b16 %v3684, %v3676
  %v4133 = vpack.c.b16 %v3685, %v3677
  %v4134 = vpack.c.b16 %v3686, %v3678
  %v4135 = vpack.c.b16 %v3687, %v3679
  %v4136 = vpack.c.b16 %v3688, %v3680
  %v4137 = vpack.c.b16 %v3697, %v3689
  %v4138 = vpack.c.b16 %v3698, %v3690
  %v4139 = vpack.c.b16 %v3699, %v3691
  %v4140 = vpack.c.b16 %v3700, %v3692
  %v4141 = vpack.c.b16 %v3701, %v3693
  %v4142 = vpack.c.b16 %v3702, %v3694
  %v4143 = vpack.c.b16 %v3703, %v3695
  %v4144 = vpack.c.b16 %v3704, %v3696
  %v4145 = vpack.c.b16 %v3713, %v3705
  %v4146 = vpack.c.b16 %v3714, %v3706
  %v4147 = vpack.c.b16 %v3715, %v3707
  %v4148 = vpack.c.b16 %v3716, %v3708
  %v4149 = vpack.c.b16 %v3717, %v3709
  %v4150 = vpack.c.b16 %v3718, %v3710
  %v4151 = vpack.c.b16 %v3719, %v3711
  %v4152 = vpack.c.b16 %v3720, %v3712
  %v4153 = vpack.c.b16 %v3729, %v3721
  %v4154 = vpack.c.b16 %v3730, %v3722
  %v4155 = vpack.c.b16 %v3731, %v3723
  %v4156 = vpack.c.b16 %v3732, %v3724
  %v4157 = vpack.c.b16 %v3733, %v3725
  %v4158 = vpack.c.b16 %v3734, %v3726
  %v4159 = vpack.c.b16 %v3735, %v3727
  %v4160 = vpack.c.b16 %v3736, %v3728
  %v4161 = vpack.c.b16 %v3745, %v3737
  %v4162 = vpack.c.b16 %v3746, %v3738
  %v4163 = vpack.c.b16 %v3747, %v3739
  %v4164 = vpack.c.b16 %v3748, %v3740
  %v4165 = vpack.c.b16 %v3749, %v3741
  %v4166 = vpack.c.b16 %v3750, %v3742
  %v4167 = vpack.c.b16 %v3751, %v3743
  %v4168 = vpack.c.b16 %v3752, %v3744
  %v4169 = vpack.c.b16 %v3761, %v3753
  %v4170 = vpack.c.b16 %v3762, %v3754
  %v4171 = vpack.c.b16 %v3763, %v3755
  %v4172 = vpack.c.b16 %v3764, %v3756
  %v4173 = vpack.c.b16 %v3765, %v3757
  %v4174 = vpack.c.b16 %v3766, %v3758
  %v4175 = vpack.c.b16 %v3767, %v3759
  %v4176 = vpack.c.b16 %v3768, %v3760
  %v4177 = vpack.c.b16 %v3777, %v3769
  %v4178 = vpack.c.b16 %v3778, %v3770
  %v4179 = vpack.c.b16 %v3779, %v3771
  %v4180 = vpack.c.b16 %v3780, %v3772
  %v4181 = vpack.c.b16 %v3781, %v3773
  %v4182 = vpack.c.b16 %v3782, %v3774
  %v4183 = vpack.c.b16 %v3783, %v3775
  %v4184 = vpack.c.b16 %v3784, %v3776
  %v4185 = vpack.c.b16 %v3793, %v3785
  %v4186 = vpack.c.b16 %v3794, %v3786
  %v4187 = vpack.c.b16 %v3795, %v3787
  %v4188 = vpack.c.b16 %v3796, %v3788
  %v4189 = vpack.c.b16 %v3797, %v3789
  %v4190 = vpack.c.b16 %v3798, %v3790
  %v4191 = vpack.c.b16 %v3799, %v3791
  %v4192 = vpack.c.b16 %v3800, %v3792
  %v4193 = vpack.c.b16 %v3809, %v3801
  %v4194 = vpack.c.b16 %v3810, %v3802
  %v4195 = vpack.c.b16 %v3811, %v3803
  %v4196 = vpack.c.b16 %v3812, %v3804
  %v4197 = vpack.c.b16 %v3813, %v3805
  %v4198 = vpack.c.b16 %v3814, %v3806
  %v4199 = vpack.c.b16 %v3815, %v3807
  %v4200 = vpack.c.b16 %v3816, %v3808
  %4585 = vmatpush.bf16.msra.mxu0 %v3873
  %4586 = vmatpush.bf16.msra.mxu0 %v3865
  %4587 = vmatpush.bf16.msra.mxu0 %v3857
  %4588 = vmatpush.bf16.msra.mxu0 %v3849
  %4589 = vmatpush.bf16.msra.mxu0 %v3841
  %4590 = vmatpush.bf16.msra.mxu0 %v3833
  %4591 = vmatpush.bf16.msra.mxu0 %v3825
  %4592 = vmatpush.bf16.msra.mxu0 %v3817
  %4593 = vmatmul.bf16.gmra.mxu0 %v2257
  %v4594 = vpop.f32.mrf.mxu0
  %v4595 = vadd.f32 %v2649, %v4594
  %v4596 = vpop.f32.mrf.mxu0
  %4597 = vdwg.mxu0
  %4598 = vmatpush.bf16.msra.mxu0 %v3937
  %4599 = vmatpush.bf16.msra.mxu0 %v3929
  %4600 = vmatpush.bf16.msra.mxu0 %v3921
  %4601 = vmatpush.bf16.msra.mxu0 %v3913
  %4602 = vmatpush.bf16.msra.mxu0 %v3905
  %4603 = vmatpush.bf16.msra.mxu0 %v3897
  %4604 = vmatpush.bf16.msra.mxu0 %v3889
  %4605 = vmatpush.bf16.msra.mxu0 %v3881
  %4606 = vmatmul.bf16.gmra.mxu0 %v2258
  %v4607 = vpop.f32.mrf.mxu0
  %v4608 = vadd.f32 %v4595, %v4607
  %v4609 = vpop.f32.mrf.mxu0
  %4610 = vdwg.mxu0
  %4611 = vmatpush.bf16.msra.mxu0 %v4001
  %4612 = vmatpush.bf16.msra.mxu0 %v3993
  %4613 = vmatpush.bf16.msra.mxu0 %v3985
  %4614 = vmatpush.bf16.msra.mxu0 %v3977
  %4615 = vmatpush.bf16.msra.mxu0 %v3969
  %4616 = vmatpush.bf16.msra.mxu0 %v3961
  %4617 = vmatpush.bf16.msra.mxu0 %v3953
  %4618 = vmatpush.bf16.msra.mxu0 %v3945
  %4619 = vmatmul.bf16.gmra.mxu0 %v2259
  %v4620 = vpop.f32.mrf.mxu0
  %v4621 = vadd.f32 %v4608, %v4620
  %v4622 = vpop.f32.mrf.mxu0
  %4623 = vdwg.mxu0
  %4624 = vmatpush.bf16.msra.mxu0 %v4065
  %4625 = vmatpush.bf16.msra.mxu0 %v4057
  %4626 = vmatpush.bf16.msra.mxu0 %v4049
  %4627 = vmatpush.bf16.msra.mxu0 %v4041
  %4628 = vmatpush.bf16.msra.mxu0 %v4033
  %4629 = vmatpush.bf16.msra.mxu0 %v4025
  %4630 = vmatpush.bf16.msra.mxu0 %v4017
  %4631 = vmatpush.bf16.msra.mxu0 %v4009
  %4632 = vmatmul.bf16.gmra.mxu0 %v2260
  %v4633 = vpop.f32.mrf.mxu0
  %v4634 = vadd.f32 %v4621, %v4633
  %v4635 = vpop.f32.mrf.mxu0
  %4636 = vdwg.mxu0
  %4637 = vmatpush.bf16.msra.mxu0 %v4129
  %4638 = vmatpush.bf16.msra.mxu0 %v4121
  %4639 = vmatpush.bf16.msra.mxu0 %v4113
  %4640 = vmatpush.bf16.msra.mxu0 %v4105
  %4641 = vmatpush.bf16.msra.mxu0 %v4097
  %4642 = vmatpush.bf16.msra.mxu0 %v4089
  %4643 = vmatpush.bf16.msra.mxu0 %v4081
  %4644 = vmatpush.bf16.msra.mxu0 %v4073
  %4645 = vmatmul.bf16.gmra.mxu0 %v2261
  %v4646 = vpop.f32.mrf.mxu0
  %v4647 = vadd.f32 %v4634, %v4646
  %v4648 = vpop.f32.mrf.mxu0
  %4649 = vdwg.mxu0
  %4650 = vmatpush.bf16.msra.mxu0 %v4193
  %4651 = vmatpush.bf16.msra.mxu0 %v4185
  %4652 = vmatpush.bf16.msra.mxu0 %v4177
  %4653 = vmatpush.bf16.msra.mxu0 %v4169
  %4654 = vmatpush.bf16.msra.mxu0 %v4161
  %4655 = vmatpush.bf16.msra.mxu0 %v4153
  %4656 = vmatpush.bf16.msra.mxu0 %v4145
  %4657 = vmatpush.bf16.msra.mxu0 %v4137
  %4658 = vmatmul.bf16.gmra.mxu0 %v2262
  %v4659 = vpop.f32.mrf.mxu0
  %v4660 = vadd.f32 %v4647, %v4659
  %v4661 = vpop.f32.mrf.mxu0
  %4662 = vdwg.mxu0
  %4663 = vmatpush.bf16.msra.mxu0 %v3874
  %4664 = vmatpush.bf16.msra.mxu0 %v3866
  %4665 = vmatpush.bf16.msra.mxu0 %v3858
  %4666 = vmatpush.bf16.msra.mxu0 %v3850
  %4667 = vmatpush.bf16.msra.mxu0 %v3842
  %4668 = vmatpush.bf16.msra.mxu0 %v3834
  %4669 = vmatpush.bf16.msra.mxu0 %v3826
  %4670 = vmatpush.bf16.msra.mxu0 %v3818
  %4671 = vmatmul.bf16.gmra.mxu0 %v2257
  %v4672 = vpop.f32.mrf.mxu0
  %v4673 = vadd.f32 %v2650, %v4672
  %v4674 = vpop.f32.mrf.mxu0
  %4675 = vdwg.mxu0
  %4676 = vmatpush.bf16.msra.mxu0 %v3938
  %4677 = vmatpush.bf16.msra.mxu0 %v3930
  %4678 = vmatpush.bf16.msra.mxu0 %v3922
  %4679 = vmatpush.bf16.msra.mxu0 %v3914
  %4680 = vmatpush.bf16.msra.mxu0 %v3906
  %4681 = vmatpush.bf16.msra.mxu0 %v3898
  %4682 = vmatpush.bf16.msra.mxu0 %v3890
  %4683 = vmatpush.bf16.msra.mxu0 %v3882
  %4684 = vmatmul.bf16.gmra.mxu0 %v2258
  %v4685 = vpop.f32.mrf.mxu0
  %v4686 = vadd.f32 %v4673, %v4685
  %v4687 = vpop.f32.mrf.mxu0
  %4688 = vdwg.mxu0
  %4689 = vmatpush.bf16.msra.mxu0 %v4002
  %4690 = vmatpush.bf16.msra.mxu0 %v3994
  %4691 = vmatpush.bf16.msra.mxu0 %v3986
  %4692 = vmatpush.bf16.msra.mxu0 %v3978
  %4693 = vmatpush.bf16.msra.mxu0 %v3970
  %4694 = vmatpush.bf16.msra.mxu0 %v3962
  %4695 = vmatpush.bf16.msra.mxu0 %v3954
  %4696 = vmatpush.bf16.msra.mxu0 %v3946
  %4697 = vmatmul.bf16.gmra.mxu0 %v2259
  %v4698 = vpop.f32.mrf.mxu0
  %v4699 = vadd.f32 %v4686, %v4698
  %v4700 = vpop.f32.mrf.mxu0
  %4701 = vdwg.mxu0
  %4702 = vmatpush.bf16.msra.mxu0 %v4066
  %4703 = vmatpush.bf16.msra.mxu0 %v4058
  %4704 = vmatpush.bf16.msra.mxu0 %v4050
  %4705 = vmatpush.bf16.msra.mxu0 %v4042
  %4706 = vmatpush.bf16.msra.mxu0 %v4034
  %4707 = vmatpush.bf16.msra.mxu0 %v4026
  %4708 = vmatpush.bf16.msra.mxu0 %v4018
  %4709 = vmatpush.bf16.msra.mxu0 %v4010
  %4710 = vmatmul.bf16.gmra.mxu0 %v2260
  %v4711 = vpop.f32.mrf.mxu0
  %v4712 = vadd.f32 %v4699, %v4711
  %v4713 = vpop.f32.mrf.mxu0
  %4714 = vdwg.mxu0
  %4715 = vmatpush.bf16.msra.mxu0 %v4130
  %4716 = vmatpush.bf16.msra.mxu0 %v4122
  %4717 = vmatpush.bf16.msra.mxu0 %v4114
  %4718 = vmatpush.bf16.msra.mxu0 %v4106
  %4719 = vmatpush.bf16.msra.mxu0 %v4098
  %4720 = vmatpush.bf16.msra.mxu0 %v4090
  %4721 = vmatpush.bf16.msra.mxu0 %v4082
  %4722 = vmatpush.bf16.msra.mxu0 %v4074
  %4723 = vmatmul.bf16.gmra.mxu0 %v2261
  %v4724 = vpop.f32.mrf.mxu0
  %v4725 = vadd.f32 %v4712, %v4724
  %v4726 = vpop.f32.mrf.mxu0
  %4727 = vdwg.mxu0
  %4728 = vmatpush.bf16.msra.mxu0 %v4194
  %4729 = vmatpush.bf16.msra.mxu0 %v4186
  %4730 = vmatpush.bf16.msra.mxu0 %v4178
  %4731 = vmatpush.bf16.msra.mxu0 %v4170
  %4732 = vmatpush.bf16.msra.mxu0 %v4162
  %4733 = vmatpush.bf16.msra.mxu0 %v4154
  %4734 = vmatpush.bf16.msra.mxu0 %v4146
  %4735 = vmatpush.bf16.msra.mxu0 %v4138
  %4736 = vmatmul.bf16.gmra.mxu0 %v2262
  %v4737 = vpop.f32.mrf.mxu0
  %v4738 = vadd.f32 %v4725, %v4737
  %v4739 = vpop.f32.mrf.mxu0
  %4740 = vdwg.mxu0
  %4741 = vmatpush.bf16.msra.mxu0 %v3875
  %4742 = vmatpush.bf16.msra.mxu0 %v3867
  %4743 = vmatpush.bf16.msra.mxu0 %v3859
  %4744 = vmatpush.bf16.msra.mxu0 %v3851
  %4745 = vmatpush.bf16.msra.mxu0 %v3843
  %4746 = vmatpush.bf16.msra.mxu0 %v3835
  %4747 = vmatpush.bf16.msra.mxu0 %v3827
  %4748 = vmatpush.bf16.msra.mxu0 %v3819
  %4749 = vmatmul.bf16.gmra.mxu0 %v2257
  %v4750 = vpop.f32.mrf.mxu0
  %v4751 = vadd.f32 %v2651, %v4750
  %v4752 = vpop.f32.mrf.mxu0
  %4753 = vdwg.mxu0
  %4754 = vmatpush.bf16.msra.mxu0 %v3939
  %4755 = vmatpush.bf16.msra.mxu0 %v3931
  %4756 = vmatpush.bf16.msra.mxu0 %v3923
  %4757 = vmatpush.bf16.msra.mxu0 %v3915
  %4758 = vmatpush.bf16.msra.mxu0 %v3907
  %4759 = vmatpush.bf16.msra.mxu0 %v3899
  %4760 = vmatpush.bf16.msra.mxu0 %v3891
  %4761 = vmatpush.bf16.msra.mxu0 %v3883
  %4762 = vmatmul.bf16.gmra.mxu0 %v2258
  %v4763 = vpop.f32.mrf.mxu0
  %v4764 = vadd.f32 %v4751, %v4763
  %v4765 = vpop.f32.mrf.mxu0
  %4766 = vdwg.mxu0
  %4767 = vmatpush.bf16.msra.mxu0 %v4003
  %4768 = vmatpush.bf16.msra.mxu0 %v3995
  %4769 = vmatpush.bf16.msra.mxu0 %v3987
  %4770 = vmatpush.bf16.msra.mxu0 %v3979
  %4771 = vmatpush.bf16.msra.mxu0 %v3971
  %4772 = vmatpush.bf16.msra.mxu0 %v3963
  %4773 = vmatpush.bf16.msra.mxu0 %v3955
  %4774 = vmatpush.bf16.msra.mxu0 %v3947
  %4775 = vmatmul.bf16.gmra.mxu0 %v2259
  %v4776 = vpop.f32.mrf.mxu0
  %v4777 = vadd.f32 %v4764, %v4776
  %v4778 = vpop.f32.mrf.mxu0
  %4779 = vdwg.mxu0
  %4780 = vmatpush.bf16.msra.mxu0 %v4067
  %4781 = vmatpush.bf16.msra.mxu0 %v4059
  %4782 = vmatpush.bf16.msra.mxu0 %v4051
  %4783 = vmatpush.bf16.msra.mxu0 %v4043
  %4784 = vmatpush.bf16.msra.mxu0 %v4035
  %4785 = vmatpush.bf16.msra.mxu0 %v4027
  %4786 = vmatpush.bf16.msra.mxu0 %v4019
  %4787 = vmatpush.bf16.msra.mxu0 %v4011
  %4788 = vmatmul.bf16.gmra.mxu0 %v2260
  %v4789 = vpop.f32.mrf.mxu0
  %v4790 = vadd.f32 %v4777, %v4789
  %v4791 = vpop.f32.mrf.mxu0
  %4792 = vdwg.mxu0
  %4793 = vmatpush.bf16.msra.mxu0 %v4131
  %4794 = vmatpush.bf16.msra.mxu0 %v4123
  %4795 = vmatpush.bf16.msra.mxu0 %v4115
  %4796 = vmatpush.bf16.msra.mxu0 %v4107
  %4797 = vmatpush.bf16.msra.mxu0 %v4099
  %4798 = vmatpush.bf16.msra.mxu0 %v4091
  %4799 = vmatpush.bf16.msra.mxu0 %v4083
  %4800 = vmatpush.bf16.msra.mxu0 %v4075
  %4801 = vmatmul.bf16.gmra.mxu0 %v2261
  %v4802 = vpop.f32.mrf.mxu0
  %v4803 = vadd.f32 %v4790, %v4802
  %v4804 = vpop.f32.mrf.mxu0
  %4805 = vdwg.mxu0
  %4806 = vmatpush.bf16.msra.mxu0 %v4195
  %4807 = vmatpush.bf16.msra.mxu0 %v4187
  %4808 = vmatpush.bf16.msra.mxu0 %v4179
  %4809 = vmatpush.bf16.msra.mxu0 %v4171
  %4810 = vmatpush.bf16.msra.mxu0 %v4163
  %4811 = vmatpush.bf16.msra.mxu0 %v4155
  %4812 = vmatpush.bf16.msra.mxu0 %v4147
  %4813 = vmatpush.bf16.msra.mxu0 %v4139
  %4814 = vmatmul.bf16.gmra.mxu0 %v2262
  %v4815 = vpop.f32.mrf.mxu0
  %v4816 = vadd.f32 %v4803, %v4815
  %v4817 = vpop.f32.mrf.mxu0
  %4818 = vdwg.mxu0
  %4819 = vmatpush.bf16.msra.mxu0 %v3876
  %4820 = vmatpush.bf16.msra.mxu0 %v3868
  %4821 = vmatpush.bf16.msra.mxu0 %v3860
  %4822 = vmatpush.bf16.msra.mxu0 %v3852
  %4823 = vmatpush.bf16.msra.mxu0 %v3844
  %4824 = vmatpush.bf16.msra.mxu0 %v3836
  %4825 = vmatpush.bf16.msra.mxu0 %v3828
  %4826 = vmatpush.bf16.msra.mxu0 %v3820
  %4827 = vmatmul.bf16.gmra.mxu0 %v2257
  %v4828 = vpop.f32.mrf.mxu0
  %v4829 = vadd.f32 %v2652, %v4828
  %v4830 = vpop.f32.mrf.mxu0
  %4831 = vdwg.mxu0
  %4832 = vmatpush.bf16.msra.mxu0 %v3940
  %4833 = vmatpush.bf16.msra.mxu0 %v3932
  %4834 = vmatpush.bf16.msra.mxu0 %v3924
  %4835 = vmatpush.bf16.msra.mxu0 %v3916
  %4836 = vmatpush.bf16.msra.mxu0 %v3908
  %4837 = vmatpush.bf16.msra.mxu0 %v3900
  %4838 = vmatpush.bf16.msra.mxu0 %v3892
  %4839 = vmatpush.bf16.msra.mxu0 %v3884
  %4840 = vmatmul.bf16.gmra.mxu0 %v2258
  %v4841 = vpop.f32.mrf.mxu0
  %v4842 = vadd.f32 %v4829, %v4841
  %v4843 = vpop.f32.mrf.mxu0
  %4844 = vdwg.mxu0
  %4845 = vmatpush.bf16.msra.mxu0 %v4004
  %4846 = vmatpush.bf16.msra.mxu0 %v3996
  %4847 = vmatpush.bf16.msra.mxu0 %v3988
  %4848 = vmatpush.bf16.msra.mxu0 %v3980
  %4849 = vmatpush.bf16.msra.mxu0 %v3972
  %4850 = vmatpush.bf16.msra.mxu0 %v3964
  %4851 = vmatpush.bf16.msra.mxu0 %v3956
  %4852 = vmatpush.bf16.msra.mxu0 %v3948
  %4853 = vmatmul.bf16.gmra.mxu0 %v2259
  %v4854 = vpop.f32.mrf.mxu0
  %v4855 = vadd.f32 %v4842, %v4854
  %v4856 = vpop.f32.mrf.mxu0
  %4857 = vdwg.mxu0
  %4858 = vmatpush.bf16.msra.mxu0 %v4068
  %4859 = vmatpush.bf16.msra.mxu0 %v4060
  %4860 = vmatpush.bf16.msra.mxu0 %v4052
  %4861 = vmatpush.bf16.msra.mxu0 %v4044
  %4862 = vmatpush.bf16.msra.mxu0 %v4036
  %4863 = vmatpush.bf16.msra.mxu0 %v4028
  %4864 = vmatpush.bf16.msra.mxu0 %v4020
  %4865 = vmatpush.bf16.msra.mxu0 %v4012
  %4866 = vmatmul.bf16.gmra.mxu0 %v2260
  %v4867 = vpop.f32.mrf.mxu0
  %v4868 = vadd.f32 %v4855, %v4867
  %v4869 = vpop.f32.mrf.mxu0
  %4870 = vdwg.mxu0
  %4871 = vmatpush.bf16.msra.mxu0 %v4132
  %4872 = vmatpush.bf16.msra.mxu0 %v4124
  %4873 = vmatpush.bf16.msra.mxu0 %v4116
  %4874 = vmatpush.bf16.msra.mxu0 %v4108
  %4875 = vmatpush.bf16.msra.mxu0 %v4100
  %4876 = vmatpush.bf16.msra.mxu0 %v4092
  %4877 = vmatpush.bf16.msra.mxu0 %v4084
  %4878 = vmatpush.bf16.msra.mxu0 %v4076
  %4879 = vmatmul.bf16.gmra.mxu0 %v2261
  %v4880 = vpop.f32.mrf.mxu0
  %v4881 = vadd.f32 %v4868, %v4880
  %v4882 = vpop.f32.mrf.mxu0
  %4883 = vdwg.mxu0
  %4884 = vmatpush.bf16.msra.mxu0 %v4196
  %4885 = vmatpush.bf16.msra.mxu0 %v4188
  %4886 = vmatpush.bf16.msra.mxu0 %v4180
  %4887 = vmatpush.bf16.msra.mxu0 %v4172
  %4888 = vmatpush.bf16.msra.mxu0 %v4164
  %4889 = vmatpush.bf16.msra.mxu0 %v4156
  %4890 = vmatpush.bf16.msra.mxu0 %v4148
  %4891 = vmatpush.bf16.msra.mxu0 %v4140
  %4892 = vmatmul.bf16.gmra.mxu0 %v2262
  %v4893 = vpop.f32.mrf.mxu0
  %v4894 = vadd.f32 %v4881, %v4893
  %v4895 = vpop.f32.mrf.mxu0
  %4896 = vdwg.mxu0
  %4897 = vmatpush.bf16.msra.mxu0 %v3877
  %4898 = vmatpush.bf16.msra.mxu0 %v3869
  %4899 = vmatpush.bf16.msra.mxu0 %v3861
  %4900 = vmatpush.bf16.msra.mxu0 %v3853
  %4901 = vmatpush.bf16.msra.mxu0 %v3845
  %4902 = vmatpush.bf16.msra.mxu0 %v3837
  %4903 = vmatpush.bf16.msra.mxu0 %v3829
  %4904 = vmatpush.bf16.msra.mxu0 %v3821
  %4905 = vmatmul.bf16.gmra.mxu0 %v2257
  %v4906 = vpop.f32.mrf.mxu0
  %v4907 = vadd.f32 %v2653, %v4906
  %v4908 = vpop.f32.mrf.mxu0
  %4909 = vdwg.mxu0
  %4910 = vmatpush.bf16.msra.mxu0 %v3941
  %4911 = vmatpush.bf16.msra.mxu0 %v3933
  %4912 = vmatpush.bf16.msra.mxu0 %v3925
  %4913 = vmatpush.bf16.msra.mxu0 %v3917
  %4914 = vmatpush.bf16.msra.mxu0 %v3909
  %4915 = vmatpush.bf16.msra.mxu0 %v3901
  %4916 = vmatpush.bf16.msra.mxu0 %v3893
  %4917 = vmatpush.bf16.msra.mxu0 %v3885
  %4918 = vmatmul.bf16.gmra.mxu0 %v2258
  %v4919 = vpop.f32.mrf.mxu0
  %v4920 = vadd.f32 %v4907, %v4919
  %v4921 = vpop.f32.mrf.mxu0
  %4922 = vdwg.mxu0
  %4923 = vmatpush.bf16.msra.mxu0 %v4005
  %4924 = vmatpush.bf16.msra.mxu0 %v3997
  %4925 = vmatpush.bf16.msra.mxu0 %v3989
  %4926 = vmatpush.bf16.msra.mxu0 %v3981
  %4927 = vmatpush.bf16.msra.mxu0 %v3973
  %4928 = vmatpush.bf16.msra.mxu0 %v3965
  %4929 = vmatpush.bf16.msra.mxu0 %v3957
  %4930 = vmatpush.bf16.msra.mxu0 %v3949
  %4931 = vmatmul.bf16.gmra.mxu0 %v2259
  %v4932 = vpop.f32.mrf.mxu0
  %v4933 = vadd.f32 %v4920, %v4932
  %v4934 = vpop.f32.mrf.mxu0
  %4935 = vdwg.mxu0
  %4936 = vmatpush.bf16.msra.mxu0 %v4069
  %4937 = vmatpush.bf16.msra.mxu0 %v4061
  %4938 = vmatpush.bf16.msra.mxu0 %v4053
  %4939 = vmatpush.bf16.msra.mxu0 %v4045
  %4940 = vmatpush.bf16.msra.mxu0 %v4037
  %4941 = vmatpush.bf16.msra.mxu0 %v4029
  %4942 = vmatpush.bf16.msra.mxu0 %v4021
  %4943 = vmatpush.bf16.msra.mxu0 %v4013
  %4944 = vmatmul.bf16.gmra.mxu0 %v2260
  %v4945 = vpop.f32.mrf.mxu0
  %v4946 = vadd.f32 %v4933, %v4945
  %v4947 = vpop.f32.mrf.mxu0
  %4948 = vdwg.mxu0
  %4949 = vmatpush.bf16.msra.mxu0 %v4133
  %4950 = vmatpush.bf16.msra.mxu0 %v4125
  %4951 = vmatpush.bf16.msra.mxu0 %v4117
  %4952 = vmatpush.bf16.msra.mxu0 %v4109
  %4953 = vmatpush.bf16.msra.mxu0 %v4101
  %4954 = vmatpush.bf16.msra.mxu0 %v4093
  %4955 = vmatpush.bf16.msra.mxu0 %v4085
  %4956 = vmatpush.bf16.msra.mxu0 %v4077
  %4957 = vmatmul.bf16.gmra.mxu0 %v2261
  %v4958 = vpop.f32.mrf.mxu0
  %v4959 = vadd.f32 %v4946, %v4958
  %v4960 = vpop.f32.mrf.mxu0
  %4961 = vdwg.mxu0
  %4962 = vmatpush.bf16.msra.mxu0 %v4197
  %4963 = vmatpush.bf16.msra.mxu0 %v4189
  %4964 = vmatpush.bf16.msra.mxu0 %v4181
  %4965 = vmatpush.bf16.msra.mxu0 %v4173
  %4966 = vmatpush.bf16.msra.mxu0 %v4165
  %4967 = vmatpush.bf16.msra.mxu0 %v4157
  %4968 = vmatpush.bf16.msra.mxu0 %v4149
  %4969 = vmatpush.bf16.msra.mxu0 %v4141
  %4970 = vmatmul.bf16.gmra.mxu0 %v2262
  %v4971 = vpop.f32.mrf.mxu0
  %v4972 = vadd.f32 %v4959, %v4971
  %v4973 = vpop.f32.mrf.mxu0
  %4974 = vdwg.mxu0
  %4975 = vmatpush.bf16.msra.mxu0 %v3878
  %4976 = vmatpush.bf16.msra.mxu0 %v3870
  %4977 = vmatpush.bf16.msra.mxu0 %v3862
  %4978 = vmatpush.bf16.msra.mxu0 %v3854
  %4979 = vmatpush.bf16.msra.mxu0 %v3846
  %4980 = vmatpush.bf16.msra.mxu0 %v3838
  %4981 = vmatpush.bf16.msra.mxu0 %v3830
  %4982 = vmatpush.bf16.msra.mxu0 %v3822
  %4983 = vmatmul.bf16.gmra.mxu0 %v2257
  %v4984 = vpop.f32.mrf.mxu0
  %v4985 = vadd.f32 %v2654, %v4984
  %v4986 = vpop.f32.mrf.mxu0
  %4987 = vdwg.mxu0
  %4988 = vmatpush.bf16.msra.mxu0 %v3942
  %4989 = vmatpush.bf16.msra.mxu0 %v3934
  %4990 = vmatpush.bf16.msra.mxu0 %v3926
  %4991 = vmatpush.bf16.msra.mxu0 %v3918
  %4992 = vmatpush.bf16.msra.mxu0 %v3910
  %4993 = vmatpush.bf16.msra.mxu0 %v3902
  %4994 = vmatpush.bf16.msra.mxu0 %v3894
  %4995 = vmatpush.bf16.msra.mxu0 %v3886
  %4996 = vmatmul.bf16.gmra.mxu0 %v2258
  %v4997 = vpop.f32.mrf.mxu0
  %v4998 = vadd.f32 %v4985, %v4997
  %v4999 = vpop.f32.mrf.mxu0
  %5000 = vdwg.mxu0
  %5001 = vmatpush.bf16.msra.mxu0 %v4006
  %5002 = vmatpush.bf16.msra.mxu0 %v3998
  %5003 = vmatpush.bf16.msra.mxu0 %v3990
  %5004 = vmatpush.bf16.msra.mxu0 %v3982
  %5005 = vmatpush.bf16.msra.mxu0 %v3974
  %5006 = vmatpush.bf16.msra.mxu0 %v3966
  %5007 = vmatpush.bf16.msra.mxu0 %v3958
  %5008 = vmatpush.bf16.msra.mxu0 %v3950
  %5009 = vmatmul.bf16.gmra.mxu0 %v2259
  %v5010 = vpop.f32.mrf.mxu0
  %v5011 = vadd.f32 %v4998, %v5010
  %v5012 = vpop.f32.mrf.mxu0
  %5013 = vdwg.mxu0
  %5014 = vmatpush.bf16.msra.mxu0 %v4070
  %5015 = vmatpush.bf16.msra.mxu0 %v4062
  %5016 = vmatpush.bf16.msra.mxu0 %v4054
  %5017 = vmatpush.bf16.msra.mxu0 %v4046
  %5018 = vmatpush.bf16.msra.mxu0 %v4038
  %5019 = vmatpush.bf16.msra.mxu0 %v4030
  %5020 = vmatpush.bf16.msra.mxu0 %v4022
  %5021 = vmatpush.bf16.msra.mxu0 %v4014
  %5022 = vmatmul.bf16.gmra.mxu0 %v2260
  %v5023 = vpop.f32.mrf.mxu0
  %v5024 = vadd.f32 %v5011, %v5023
  %v5025 = vpop.f32.mrf.mxu0
  %5026 = vdwg.mxu0
  %5027 = vmatpush.bf16.msra.mxu0 %v4134
  %5028 = vmatpush.bf16.msra.mxu0 %v4126
  %5029 = vmatpush.bf16.msra.mxu0 %v4118
  %5030 = vmatpush.bf16.msra.mxu0 %v4110
  %5031 = vmatpush.bf16.msra.mxu0 %v4102
  %5032 = vmatpush.bf16.msra.mxu0 %v4094
  %5033 = vmatpush.bf16.msra.mxu0 %v4086
  %5034 = vmatpush.bf16.msra.mxu0 %v4078
  %5035 = vmatmul.bf16.gmra.mxu0 %v2261
  %v5036 = vpop.f32.mrf.mxu0
  %v5037 = vadd.f32 %v5024, %v5036
  %v5038 = vpop.f32.mrf.mxu0
  %5039 = vdwg.mxu0
  %5040 = vmatpush.bf16.msra.mxu0 %v4198
  %5041 = vmatpush.bf16.msra.mxu0 %v4190
  %5042 = vmatpush.bf16.msra.mxu0 %v4182
  %5043 = vmatpush.bf16.msra.mxu0 %v4174
  %5044 = vmatpush.bf16.msra.mxu0 %v4166
  %5045 = vmatpush.bf16.msra.mxu0 %v4158
  %5046 = vmatpush.bf16.msra.mxu0 %v4150
  %5047 = vmatpush.bf16.msra.mxu0 %v4142
  %5048 = vmatmul.bf16.gmra.mxu0 %v2262
  %v5049 = vpop.f32.mrf.mxu0
  %v5050 = vadd.f32 %v5037, %v5049
  %v5051 = vpop.f32.mrf.mxu0
  %5052 = vdwg.mxu0
  %5053 = vmatpush.bf16.msra.mxu0 %v3879
  %5054 = vmatpush.bf16.msra.mxu0 %v3871
  %5055 = vmatpush.bf16.msra.mxu0 %v3863
  %5056 = vmatpush.bf16.msra.mxu0 %v3855
  %5057 = vmatpush.bf16.msra.mxu0 %v3847
  %5058 = vmatpush.bf16.msra.mxu0 %v3839
  %5059 = vmatpush.bf16.msra.mxu0 %v3831
  %5060 = vmatpush.bf16.msra.mxu0 %v3823
  %5061 = vmatmul.bf16.gmra.mxu0 %v2257
  %v5062 = vpop.f32.mrf.mxu0
  %v5063 = vadd.f32 %v2655, %v5062
  %v5064 = vpop.f32.mrf.mxu0
  %5065 = vdwg.mxu0
  %5066 = vmatpush.bf16.msra.mxu0 %v3943
  %5067 = vmatpush.bf16.msra.mxu0 %v3935
  %5068 = vmatpush.bf16.msra.mxu0 %v3927
  %5069 = vmatpush.bf16.msra.mxu0 %v3919
  %5070 = vmatpush.bf16.msra.mxu0 %v3911
  %5071 = vmatpush.bf16.msra.mxu0 %v3903
  %5072 = vmatpush.bf16.msra.mxu0 %v3895
  %5073 = vmatpush.bf16.msra.mxu0 %v3887
  %5074 = vmatmul.bf16.gmra.mxu0 %v2258
  %v5075 = vpop.f32.mrf.mxu0
  %v5076 = vadd.f32 %v5063, %v5075
  %v5077 = vpop.f32.mrf.mxu0
  %5078 = vdwg.mxu0
  %5079 = vmatpush.bf16.msra.mxu0 %v4007
  %5080 = vmatpush.bf16.msra.mxu0 %v3999
  %5081 = vmatpush.bf16.msra.mxu0 %v3991
  %5082 = vmatpush.bf16.msra.mxu0 %v3983
  %5083 = vmatpush.bf16.msra.mxu0 %v3975
  %5084 = vmatpush.bf16.msra.mxu0 %v3967
  %5085 = vmatpush.bf16.msra.mxu0 %v3959
  %5086 = vmatpush.bf16.msra.mxu0 %v3951
  %5087 = vmatmul.bf16.gmra.mxu0 %v2259
  %v5088 = vpop.f32.mrf.mxu0
  %v5089 = vadd.f32 %v5076, %v5088
  %v5090 = vpop.f32.mrf.mxu0
  %5091 = vdwg.mxu0
  %5092 = vmatpush.bf16.msra.mxu0 %v4071
  %5093 = vmatpush.bf16.msra.mxu0 %v4063
  %5094 = vmatpush.bf16.msra.mxu0 %v4055
  %5095 = vmatpush.bf16.msra.mxu0 %v4047
  %5096 = vmatpush.bf16.msra.mxu0 %v4039
  %5097 = vmatpush.bf16.msra.mxu0 %v4031
  %5098 = vmatpush.bf16.msra.mxu0 %v4023
  %5099 = vmatpush.bf16.msra.mxu0 %v4015
  %5100 = vmatmul.bf16.gmra.mxu0 %v2260
  %v5101 = vpop.f32.mrf.mxu0
  %v5102 = vadd.f32 %v5089, %v5101
  %v5103 = vpop.f32.mrf.mxu0
  %5104 = vdwg.mxu0
  %5105 = vmatpush.bf16.msra.mxu0 %v4135
  %5106 = vmatpush.bf16.msra.mxu0 %v4127
  %5107 = vmatpush.bf16.msra.mxu0 %v4119
  %5108 = vmatpush.bf16.msra.mxu0 %v4111
  %5109 = vmatpush.bf16.msra.mxu0 %v4103
  %5110 = vmatpush.bf16.msra.mxu0 %v4095
  %5111 = vmatpush.bf16.msra.mxu0 %v4087
  %5112 = vmatpush.bf16.msra.mxu0 %v4079
  %5113 = vmatmul.bf16.gmra.mxu0 %v2261
  %v5114 = vpop.f32.mrf.mxu0
  %v5115 = vadd.f32 %v5102, %v5114
  %v5116 = vpop.f32.mrf.mxu0
  %5117 = vdwg.mxu0
  %5118 = vmatpush.bf16.msra.mxu0 %v4199
  %5119 = vmatpush.bf16.msra.mxu0 %v4191
  %5120 = vmatpush.bf16.msra.mxu0 %v4183
  %5121 = vmatpush.bf16.msra.mxu0 %v4175
  %5122 = vmatpush.bf16.msra.mxu0 %v4167
  %5123 = vmatpush.bf16.msra.mxu0 %v4159
  %5124 = vmatpush.bf16.msra.mxu0 %v4151
  %5125 = vmatpush.bf16.msra.mxu0 %v4143
  %5126 = vmatmul.bf16.gmra.mxu0 %v2262
  %v5127 = vpop.f32.mrf.mxu0
  %v5128 = vadd.f32 %v5115, %v5127
  %v5129 = vpop.f32.mrf.mxu0
  %5130 = vdwg.mxu0
  %5131 = vmatpush.bf16.msra.mxu0 %v3880
  %5132 = vmatpush.bf16.msra.mxu0 %v3872
  %5133 = vmatpush.bf16.msra.mxu0 %v3864
  %5134 = vmatpush.bf16.msra.mxu0 %v3856
  %5135 = vmatpush.bf16.msra.mxu0 %v3848
  %5136 = vmatpush.bf16.msra.mxu0 %v3840
  %5137 = vmatpush.bf16.msra.mxu0 %v3832
  %5138 = vmatpush.bf16.msra.mxu0 %v3824
  %5139 = vmatmul.bf16.gmra.mxu0 %v2257
  %v5140 = vpop.f32.mrf.mxu0
  %v5141 = vadd.f32 %v2656, %v5140
  %v5142 = vpop.f32.mrf.mxu0
  %5143 = vdwg.mxu0
  %5144 = vmatpush.bf16.msra.mxu0 %v3944
  %5145 = vmatpush.bf16.msra.mxu0 %v3936
  %5146 = vmatpush.bf16.msra.mxu0 %v3928
  %5147 = vmatpush.bf16.msra.mxu0 %v3920
  %5148 = vmatpush.bf16.msra.mxu0 %v3912
  %5149 = vmatpush.bf16.msra.mxu0 %v3904
  %5150 = vmatpush.bf16.msra.mxu0 %v3896
  %5151 = vmatpush.bf16.msra.mxu0 %v3888
  %5152 = vmatmul.bf16.gmra.mxu0 %v2258
  %v5153 = vpop.f32.mrf.mxu0
  %v5154 = vadd.f32 %v5141, %v5153
  %v5155 = vpop.f32.mrf.mxu0
  %5156 = vdwg.mxu0
  %5157 = vmatpush.bf16.msra.mxu0 %v4008
  %5158 = vmatpush.bf16.msra.mxu0 %v4000
  %5159 = vmatpush.bf16.msra.mxu0 %v3992
  %5160 = vmatpush.bf16.msra.mxu0 %v3984
  %5161 = vmatpush.bf16.msra.mxu0 %v3976
  %5162 = vmatpush.bf16.msra.mxu0 %v3968
  %5163 = vmatpush.bf16.msra.mxu0 %v3960
  %5164 = vmatpush.bf16.msra.mxu0 %v3952
  %5165 = vmatmul.bf16.gmra.mxu0 %v2259
  %v5166 = vpop.f32.mrf.mxu0
  %v5167 = vadd.f32 %v5154, %v5166
  %v5168 = vpop.f32.mrf.mxu0
  %5169 = vdwg.mxu0
  %5170 = vmatpush.bf16.msra.mxu0 %v4072
  %5171 = vmatpush.bf16.msra.mxu0 %v4064
  %5172 = vmatpush.bf16.msra.mxu0 %v4056
  %5173 = vmatpush.bf16.msra.mxu0 %v4048
  %5174 = vmatpush.bf16.msra.mxu0 %v4040
  %5175 = vmatpush.bf16.msra.mxu0 %v4032
  %5176 = vmatpush.bf16.msra.mxu0 %v4024
  %5177 = vmatpush.bf16.msra.mxu0 %v4016
  %5178 = vmatmul.bf16.gmra.mxu0 %v2260
  %v5179 = vpop.f32.mrf.mxu0
  %v5180 = vadd.f32 %v5167, %v5179
  %v5181 = vpop.f32.mrf.mxu0
  %5182 = vdwg.mxu0
  %5183 = vmatpush.bf16.msra.mxu0 %v4136
  %5184 = vmatpush.bf16.msra.mxu0 %v4128
  %5185 = vmatpush.bf16.msra.mxu0 %v4120
  %5186 = vmatpush.bf16.msra.mxu0 %v4112
  %5187 = vmatpush.bf16.msra.mxu0 %v4104
  %5188 = vmatpush.bf16.msra.mxu0 %v4096
  %5189 = vmatpush.bf16.msra.mxu0 %v4088
  %5190 = vmatpush.bf16.msra.mxu0 %v4080
  %5191 = vmatmul.bf16.gmra.mxu0 %v2261
  %v5192 = vpop.f32.mrf.mxu0
  %v5193 = vadd.f32 %v5180, %v5192
  %v5194 = vpop.f32.mrf.mxu0
  %5195 = vdwg.mxu0
  %5196 = vmatpush.bf16.msra.mxu0 %v4200
  %5197 = vmatpush.bf16.msra.mxu0 %v4192
  %5198 = vmatpush.bf16.msra.mxu0 %v4184
  %5199 = vmatpush.bf16.msra.mxu0 %v4176
  %5200 = vmatpush.bf16.msra.mxu0 %v4168
  %5201 = vmatpush.bf16.msra.mxu0 %v4160
  %5202 = vmatpush.bf16.msra.mxu0 %v4152
  %5203 = vmatpush.bf16.msra.mxu0 %v4144
  %5204 = vmatmul.bf16.gmra.mxu0 %v2262
  %v5205 = vpop.f32.mrf.mxu0
  %v5206 = vadd.f32 %v5193, %v5205
  %v5207 = vpop.f32.mrf.mxu0
  %5208 = vdwg.mxu0
  %v5209 = vmax.f32 %v4660, 0.0
  %v5210 = vmax.f32 %v4738, 0.0
  %v5211 = vmax.f32 %v4816, 0.0
  %v5212 = vmax.f32 %v4894, 0.0
  %v5213 = vmax.f32 %v4972, 0.0
  %v5214 = vmax.f32 %v5050, 0.0
  %v5215 = vmax.f32 %v5128, 0.0
  %v5216 = vmax.f32 %v5206, 0.0
  %v5217 = vpack.c.bf16 %v5209, %v5209
  %v5218 = vpack.c.bf16 %v5210, %v5210
  %v5219 = vpack.c.bf16 %v5211, %v5211
  %v5220 = vpack.c.bf16 %v5212, %v5212
  %v5221 = vpack.c.bf16 %v5213, %v5213
  %v5222 = vpack.c.bf16 %v5214, %v5214
  %v5223 = vpack.c.bf16 %v5215, %v5215
  %v5224 = vpack.c.bf16 %v5216, %v5216
  %v5225 = vld [vmem:[%s5] sm:$0xf]
  %v5226 = vld [vmem:[%s5 + $0x4] sm:$0xf]
  %v5227 = vld [vmem:[%s5 + $0x8] sm:$0xf]
  %v5228 = vld [vmem:[%s5 + $0xc] sm:$0xf]
  %v5229 = vld [vmem:[%s5 + $0x10] sm:$0xf]
  %v5230 = vld [vmem:[%s5 + $0x14] sm:$0xf]
  %v5231 = vld [vmem:[%s5 + $0x18] sm:$0xf]
  %v5232 = vld [vmem:[%s5 + $0x1c] sm:$0xf]
  %v5233 = vld [vmem:[%s5 + $0x20] sm:$0xf]
  %v5234 = vld [vmem:[%s5 + $0x24] sm:$0xf]
  %v5235 = vld [vmem:[%s5 + $0x28] sm:$0xf]
  %v5236 = vld [vmem:[%s5 + $0x2c] sm:$0xf]
  %v5237 = vld [vmem:[%s5 + $0x30] sm:$0xf]
  %v5238 = vld [vmem:[%s5 + $0x34] sm:$0xf]
  %v5239 = vld [vmem:[%s5 + $0x38] sm:$0xf]
  %v5240 = vld [vmem:[%s5 + $0x3c] sm:$0xf]
  %v5241 = vld [vmem:[%s5 + $0x40] sm:$0xf]
  %v5242 = vld [vmem:[%s5 + $0x44] sm:$0xf]
  %v5243 = vld [vmem:[%s5 + $0x48] sm:$0xf]
  %v5244 = vld [vmem:[%s5 + $0x4c] sm:$0xf]
  %v5245 = vld [vmem:[%s5 + $0x50] sm:$0xf]
  %v5246 = vld [vmem:[%s5 + $0x54] sm:$0xf]
  %v5247 = vld [vmem:[%s5 + $0x58] sm:$0xf]
  %v5248 = vld [vmem:[%s5 + $0x5c] sm:$0xf]
  %v5249 = vld [vmem:[%s5 + $0x60] sm:$0xf]
  %v5250 = vld [vmem:[%s5 + $0x64] sm:$0xf]
  %v5251 = vld [vmem:[%s5 + $0x68] sm:$0xf]
  %v5252 = vld [vmem:[%s5 + $0x6c] sm:$0xf]
  %v5253 = vld [vmem:[%s5 + $0x70] sm:$0xf]
  %v5254 = vld [vmem:[%s5 + $0x74] sm:$0xf]
  %v5255 = vld [vmem:[%s5 + $0x78] sm:$0xf]
  %v5256 = vld [vmem:[%s5 + $0x7c] sm:$0xf]
  %v5257 = vld [vmem:[%s5 + $0x80] sm:$0xf]
  %v5258 = vld [vmem:[%s5 + $0x84] sm:$0xf]
  %v5259 = vld [vmem:[%s5 + $0x88] sm:$0xf]
  %v5260 = vld [vmem:[%s5 + $0x8c] sm:$0xf]
  %v5261 = vld [vmem:[%s5 + $0x90] sm:$0xf]
  %v5262 = vld [vmem:[%s5 + $0x94] sm:$0xf]
  %v5263 = vld [vmem:[%s5 + $0x98] sm:$0xf]
  %v5264 = vld [vmem:[%s5 + $0x9c] sm:$0xf]
  %v5265 = vld [vmem:[%s5 + $0xa0] sm:$0xf]
  %v5266 = vld [vmem:[%s5 + $0xa4] sm:$0xf]
  %v5267 = vld [vmem:[%s5 + $0xa8] sm:$0xf]
  %v5268 = vld [vmem:[%s5 + $0xac] sm:$0xf]
  %v5269 = vld [vmem:[%s5 + $0xb0] sm:$0xf]
  %v5270 = vld [vmem:[%s5 + $0xb4] sm:$0xf]
  %v5271 = vld [vmem:[%s5 + $0xb8] sm:$0xf]
  %v5272 = vld [vmem:[%s5 + $0xbc] sm:$0xf]
  %v5273 = vld [vmem:[%s5 + $0xc0] sm:$0xf]
  %v5274 = vld [vmem:[%s5 + $0xc4] sm:$0xf]
  %v5275 = vld [vmem:[%s5 + $0xc8] sm:$0xf]
  %v5276 = vld [vmem:[%s5 + $0xcc] sm:$0xf]
  %v5277 = vld [vmem:[%s5 + $0xd0] sm:$0xf]
  %v5278 = vld [vmem:[%s5 + $0xd4] sm:$0xf]
  %v5279 = vld [vmem:[%s5 + $0xd8] sm:$0xf]
  %v5280 = vld [vmem:[%s5 + $0xdc] sm:$0xf]
  %v5281 = vld [vmem:[%s5 + $0xe0] sm:$0xf]
  %v5282 = vld [vmem:[%s5 + $0xe4] sm:$0xf]
  %v5283 = vld [vmem:[%s5 + $0xe8] sm:$0xf]
  %v5284 = vld [vmem:[%s5 + $0xec] sm:$0xf]
  %v5285 = vld [vmem:[%s5 + $0xf0] sm:$0xf]
  %v5286 = vld [vmem:[%s5 + $0xf4] sm:$0xf]
  %v5287 = vld [vmem:[%s5 + $0xf8] sm:$0xf]
  %v5288 = vld [vmem:[%s5 + $0xfc] sm:$0xf]
  %v5289 = vld [vmem:[%s5 + $0x100] sm:$0xf]
  %v5290 = vld [vmem:[%s5 + $0x104] sm:$0xf]
  %v5291 = vld [vmem:[%s5 + $0x108] sm:$0xf]
  %v5292 = vld [vmem:[%s5 + $0x10c] sm:$0xf]
  %v5293 = vld [vmem:[%s5 + $0x110] sm:$0xf]
  %v5294 = vld [vmem:[%s5 + $0x114] sm:$0xf]
  %v5295 = vld [vmem:[%s5 + $0x118] sm:$0xf]
  %v5296 = vld [vmem:[%s5 + $0x11c] sm:$0xf]
  %v5297 = vld [vmem:[%s5 + $0x120] sm:$0xf]
  %v5298 = vld [vmem:[%s5 + $0x124] sm:$0xf]
  %v5299 = vld [vmem:[%s5 + $0x128] sm:$0xf]
  %v5300 = vld [vmem:[%s5 + $0x12c] sm:$0xf]
  %v5301 = vld [vmem:[%s5 + $0x130] sm:$0xf]
  %v5302 = vld [vmem:[%s5 + $0x134] sm:$0xf]
  %v5303 = vld [vmem:[%s5 + $0x138] sm:$0xf]
  %v5304 = vld [vmem:[%s5 + $0x13c] sm:$0xf]
  %v5305 = vld [vmem:[%s5 + $0x140] sm:$0xf]
  %v5306 = vld [vmem:[%s5 + $0x144] sm:$0xf]
  %v5307 = vld [vmem:[%s5 + $0x148] sm:$0xf]
  %v5308 = vld [vmem:[%s5 + $0x14c] sm:$0xf]
  %v5309 = vld [vmem:[%s5 + $0x150] sm:$0xf]
  %v5310 = vld [vmem:[%s5 + $0x154] sm:$0xf]
  %v5311 = vld [vmem:[%s5 + $0x158] sm:$0xf]
  %v5312 = vld [vmem:[%s5 + $0x15c] sm:$0xf]
  %v5313 = vld [vmem:[%s5 + $0x160] sm:$0xf]
  %v5314 = vld [vmem:[%s5 + $0x164] sm:$0xf]
  %v5315 = vld [vmem:[%s5 + $0x168] sm:$0xf]
  %v5316 = vld [vmem:[%s5 + $0x16c] sm:$0xf]
  %v5317 = vld [vmem:[%s5 + $0x170] sm:$0xf]
  %v5318 = vld [vmem:[%s5 + $0x174] sm:$0xf]
  %v5319 = vld [vmem:[%s5 + $0x178] sm:$0xf]
  %v5320 = vld [vmem:[%s5 + $0x17c] sm:$0xf]
  %v5321 = vld [vmem:[%s5 + $0x180] sm:$0xf]
  %v5322 = vld [vmem:[%s5 + $0x184] sm:$0xf]
  %v5323 = vld [vmem:[%s5 + $0x188] sm:$0xf]
  %v5324 = vld [vmem:[%s5 + $0x18c] sm:$0xf]
  %v5325 = vld [vmem:[%s5 + $0x190] sm:$0xf]
  %v5326 = vld [vmem:[%s5 + $0x194] sm:$0xf]
  %v5327 = vld [vmem:[%s5 + $0x198] sm:$0xf]
  %v5328 = vld [vmem:[%s5 + $0x19c] sm:$0xf]
  %v5329 = vld [vmem:[%s5 + $0x1a0] sm:$0xf]
  %v5330 = vld [vmem:[%s5 + $0x1a4] sm:$0xf]
  %v5331 = vld [vmem:[%s5 + $0x1a8] sm:$0xf]
  %v5332 = vld [vmem:[%s5 + $0x1ac] sm:$0xf]
  %v5333 = vld [vmem:[%s5 + $0x1b0] sm:$0xf]
  %v5334 = vld [vmem:[%s5 + $0x1b4] sm:$0xf]
  %v5335 = vld [vmem:[%s5 + $0x1b8] sm:$0xf]
  %v5336 = vld [vmem:[%s5 + $0x1bc] sm:$0xf]
  %v5337 = vld [vmem:[%s5 + $0x1c0] sm:$0xf]
  %v5338 = vld [vmem:[%s5 + $0x1c4] sm:$0xf]
  %v5339 = vld [vmem:[%s5 + $0x1c8] sm:$0xf]
  %v5340 = vld [vmem:[%s5 + $0x1cc] sm:$0xf]
  %v5341 = vld [vmem:[%s5 + $0x1d0] sm:$0xf]
  %v5342 = vld [vmem:[%s5 + $0x1d4] sm:$0xf]
  %v5343 = vld [vmem:[%s5 + $0x1d8] sm:$0xf]
  %v5344 = vld [vmem:[%s5 + $0x1dc] sm:$0xf]
  %v5345 = vld [vmem:[%s5 + $0x1e0] sm:$0xf]
  %v5346 = vld [vmem:[%s5 + $0x1e4] sm:$0xf]
  %v5347 = vld [vmem:[%s5 + $0x1e8] sm:$0xf]
  %v5348 = vld [vmem:[%s5 + $0x1ec] sm:$0xf]
  %v5349 = vld [vmem:[%s5 + $0x1f0] sm:$0xf]
  %v5350 = vld [vmem:[%s5 + $0x1f4] sm:$0xf]
  %v5351 = vld [vmem:[%s5 + $0x1f8] sm:$0xf]
  %v5352 = vld [vmem:[%s5 + $0x1fc] sm:$0xf]
  %v5353 = vld [vmem:[%s6] sm:$0xf]
  %v5354 = vld [vmem:[%s6 + $0x4] sm:$0xf]
  %v5355 = vld [vmem:[%s6 + $0x8] sm:$0xf]
  %v5356 = vld [vmem:[%s6 + $0xc] sm:$0xf]
  %v5357 = vld [vmem:[%s6 + $0x10] sm:$0xf]
  %v5358 = vld [vmem:[%s6 + $0x14] sm:$0xf]
  %v5359 = vld [vmem:[%s6 + $0x18] sm:$0xf]
  %v5360 = vld [vmem:[%s6 + $0x1c] sm:$0xf]
  %v5361 = vld [vmem:[%s6 + $0x20] sm:$0xf]
  %v5362 = vld [vmem:[%s6 + $0x24] sm:$0xf]
  %v5363 = vld [vmem:[%s6 + $0x28] sm:$0xf]
  %v5364 = vld [vmem:[%s6 + $0x2c] sm:$0xf]
  %v5365 = vld [vmem:[%s6 + $0x30] sm:$0xf]
  %v5366 = vld [vmem:[%s6 + $0x34] sm:$0xf]
  %v5367 = vld [vmem:[%s6 + $0x38] sm:$0xf]
  %v5368 = vld [vmem:[%s6 + $0x3c] sm:$0xf]
  %v5369 = vld [vmem:[%s6 + $0x40] sm:$0xf]
  %v5370 = vld [vmem:[%s6 + $0x44] sm:$0xf]
  %v5371 = vld [vmem:[%s6 + $0x48] sm:$0xf]
  %v5372 = vld [vmem:[%s6 + $0x4c] sm:$0xf]
  %v5373 = vld [vmem:[%s6 + $0x50] sm:$0xf]
  %v5374 = vld [vmem:[%s6 + $0x54] sm:$0xf]
  %v5375 = vld [vmem:[%s6 + $0x58] sm:$0xf]
  %v5376 = vld [vmem:[%s6 + $0x5c] sm:$0xf]
  %v5377 = vld [vmem:[%s6 + $0x60] sm:$0xf]
  %v5378 = vld [vmem:[%s6 + $0x64] sm:$0xf]
  %v5379 = vld [vmem:[%s6 + $0x68] sm:$0xf]
  %v5380 = vld [vmem:[%s6 + $0x6c] sm:$0xf]
  %v5381 = vld [vmem:[%s6 + $0x70] sm:$0xf]
  %v5382 = vld [vmem:[%s6 + $0x74] sm:$0xf]
  %v5383 = vld [vmem:[%s6 + $0x78] sm:$0xf]
  %v5384 = vld [vmem:[%s6 + $0x7c] sm:$0xf]
  %v5385 = vld [vmem:[%s6 + $0x80] sm:$0xf]
  %v5386 = vld [vmem:[%s6 + $0x84] sm:$0xf]
  %v5387 = vld [vmem:[%s6 + $0x88] sm:$0xf]
  %v5388 = vld [vmem:[%s6 + $0x8c] sm:$0xf]
  %v5389 = vld [vmem:[%s6 + $0x90] sm:$0xf]
  %v5390 = vld [vmem:[%s6 + $0x94] sm:$0xf]
  %v5391 = vld [vmem:[%s6 + $0x98] sm:$0xf]
  %v5392 = vld [vmem:[%s6 + $0x9c] sm:$0xf]
  %v5393 = vld [vmem:[%s6 + $0xa0] sm:$0xf]
  %v5394 = vld [vmem:[%s6 + $0xa4] sm:$0xf]
  %v5395 = vld [vmem:[%s6 + $0xa8] sm:$0xf]
  %v5396 = vld [vmem:[%s6 + $0xac] sm:$0xf]
  %v5397 = vld [vmem:[%s6 + $0xb0] sm:$0xf]
  %v5398 = vld [vmem:[%s6 + $0xb4] sm:$0xf]
  %v5399 = vld [vmem:[%s6 + $0xb8] sm:$0xf]
  %v5400 = vld [vmem:[%s6 + $0xbc] sm:$0xf]
  %v5401 = vld [vmem:[%s6 + $0xc0] sm:$0xf]
  %v5402 = vld [vmem:[%s6 + $0xc4] sm:$0xf]
  %v5403 = vld [vmem:[%s6 + $0xc8] sm:$0xf]
  %v5404 = vld [vmem:[%s6 + $0xcc] sm:$0xf]
  %v5405 = vld [vmem:[%s6 + $0xd0] sm:$0xf]
  %v5406 = vld [vmem:[%s6 + $0xd4] sm:$0xf]
  %v5407 = vld [vmem:[%s6 + $0xd8] sm:$0xf]
  %v5408 = vld [vmem:[%s6 + $0xdc] sm:$0xf]
  %v5409 = vld [vmem:[%s6 + $0xe0] sm:$0xf]
  %v5410 = vld [vmem:[%s6 + $0xe4] sm:$0xf]
  %v5411 = vld [vmem:[%s6 + $0xe8] sm:$0xf]
  %v5412 = vld [vmem:[%s6 + $0xec] sm:$0xf]
  %v5413 = vld [vmem:[%s6 + $0xf0] sm:$0xf]
  %v5414 = vld [vmem:[%s6 + $0xf4] sm:$0xf]
  %v5415 = vld [vmem:[%s6 + $0xf8] sm:$0xf]
  %v5416 = vld [vmem:[%s6 + $0xfc] sm:$0xf]
  %v5417 = vld [vmem:[%s6 + $0x100] sm:$0xf]
  %v5418 = vld [vmem:[%s6 + $0x104] sm:$0xf]
  %v5419 = vld [vmem:[%s6 + $0x108] sm:$0xf]
  %v5420 = vld [vmem:[%s6 + $0x10c] sm:$0xf]
  %v5421 = vld [vmem:[%s6 + $0x110] sm:$0xf]
  %v5422 = vld [vmem:[%s6 + $0x114] sm:$0xf]
  %v5423 = vld [vmem:[%s6 + $0x118] sm:$0xf]
  %v5424 = vld [vmem:[%s6 + $0x11c] sm:$0xf]
  %v5425 = vld [vmem:[%s6 + $0x120] sm:$0xf]
  %v5426 = vld [vmem:[%s6 + $0x124] sm:$0xf]
  %v5427 = vld [vmem:[%s6 + $0x128] sm:$0xf]
  %v5428 = vld [vmem:[%s6 + $0x12c] sm:$0xf]
  %v5429 = vld [vmem:[%s6 + $0x130] sm:$0xf]
  %v5430 = vld [vmem:[%s6 + $0x134] sm:$0xf]
  %v5431 = vld [vmem:[%s6 + $0x138] sm:$0xf]
  %v5432 = vld [vmem:[%s6 + $0x13c] sm:$0xf]
  %v5433 = vld [vmem:[%s6 + $0x140] sm:$0xf]
  %v5434 = vld [vmem:[%s6 + $0x144] sm:$0xf]
  %v5435 = vld [vmem:[%s6 + $0x148] sm:$0xf]
  %v5436 = vld [vmem:[%s6 + $0x14c] sm:$0xf]
  %v5437 = vld [vmem:[%s6 + $0x150] sm:$0xf]
  %v5438 = vld [vmem:[%s6 + $0x154] sm:$0xf]
  %v5439 = vld [vmem:[%s6 + $0x158] sm:$0xf]
  %v5440 = vld [vmem:[%s6 + $0x15c] sm:$0xf]
  %v5441 = vld [vmem:[%s6 + $0x160] sm:$0xf]
  %v5442 = vld [vmem:[%s6 + $0x164] sm:$0xf]
  %v5443 = vld [vmem:[%s6 + $0x168] sm:$0xf]
  %v5444 = vld [vmem:[%s6 + $0x16c] sm:$0xf]
  %v5445 = vld [vmem:[%s6 + $0x170] sm:$0xf]
  %v5446 = vld [vmem:[%s6 + $0x174] sm:$0xf]
  %v5447 = vld [vmem:[%s6 + $0x178] sm:$0xf]
  %v5448 = vld [vmem:[%s6 + $0x17c] sm:$0xf]
  %v5545 = vunpack.c.l.b16 %v5353
  %v5546 = vunpack.c.l.b16 %v5354
  %v5547 = vunpack.c.l.b16 %v5355
  %v5548 = vunpack.c.l.b16 %v5356
  %v5549 = vunpack.c.l.b16 %v5357
  %v5550 = vunpack.c.l.b16 %v5358
  %v5551 = vunpack.c.l.b16 %v5359
  %v5552 = vunpack.c.l.b16 %v5360
  %v5553 = vunpack.c.l.b16 %v5361
  %v5554 = vunpack.c.l.b16 %v5362
  %v5555 = vunpack.c.l.b16 %v5363
  %v5556 = vunpack.c.l.b16 %v5364
  %v5557 = vunpack.c.l.b16 %v5365
  %v5558 = vunpack.c.l.b16 %v5366
  %v5559 = vunpack.c.l.b16 %v5367
  %v5560 = vunpack.c.l.b16 %v5368
  %v5561 = vunpack.c.l.b16 %v5369
  %v5562 = vunpack.c.l.b16 %v5370
  %v5563 = vunpack.c.l.b16 %v5371
  %v5564 = vunpack.c.l.b16 %v5372
  %v5565 = vunpack.c.l.b16 %v5373
  %v5566 = vunpack.c.l.b16 %v5374
  %v5567 = vunpack.c.l.b16 %v5375
  %v5568 = vunpack.c.l.b16 %v5376
  %v5569 = vunpack.c.l.b16 %v5377
  %v5570 = vunpack.c.l.b16 %v5378
  %v5571 = vunpack.c.l.b16 %v5379
  %v5572 = vunpack.c.l.b16 %v5380
  %v5573 = vunpack.c.l.b16 %v5381
  %v5574 = vunpack.c.l.b16 %v5382
  %v5575 = vunpack.c.l.b16 %v5383
  %v5576 = vunpack.c.l.b16 %v5384
  %v5577 = vunpack.c.l.b16 %v5385
  %v5578 = vunpack.c.l.b16 %v5386
  %v5579 = vunpack.c.l.b16 %v5387
  %v5580 = vunpack.c.l.b16 %v5388
  %v5581 = vunpack.c.l.b16 %v5389
  %v5582 = vunpack.c.l.b16 %v5390
  %v5583 = vunpack.c.l.b16 %v5391
  %v5584 = vunpack.c.l.b16 %v5392
  %v5585 = vunpack.c.l.b16 %v5393
  %v5586 = vunpack.c.l.b16 %v5394
  %v5587 = vunpack.c.l.b16 %v5395
  %v5588 = vunpack.c.l.b16 %v5396
  %v5589 = vunpack.c.l.b16 %v5397
  %v5590 = vunpack.c.l.b16 %v5398
  %v5591 = vunpack.c.l.b16 %v5399
  %v5592 = vunpack.c.l.b16 %v5400
  %v5593 = vunpack.c.l.b16 %v5401
  %v5594 = vunpack.c.l.b16 %v5402
  %v5595 = vunpack.c.l.b16 %v5403
  %v5596 = vunpack.c.l.b16 %v5404
  %v5597 = vunpack.c.l.b16 %v5405
  %v5598 = vunpack.c.l.b16 %v5406
  %v5599 = vunpack.c.l.b16 %v5407
  %v5600 = vunpack.c.l.b16 %v5408
  %v5601 = vunpack.c.l.b16 %v5409
  %v5602 = vunpack.c.l.b16 %v5410
  %v5603 = vunpack.c.l.b16 %v5411
  %v5604 = vunpack.c.l.b16 %v5412
  %v5605 = vunpack.c.l.b16 %v5413
  %v5606 = vunpack.c.l.b16 %v5414
  %v5607 = vunpack.c.l.b16 %v5415
  %v5608 = vunpack.c.l.b16 %v5416
  %v5609 = vunpack.c.l.b16 %v5417
  %v5610 = vunpack.c.l.b16 %v5418
  %v5611 = vunpack.c.l.b16 %v5419
  %v5612 = vunpack.c.l.b16 %v5420
  %v5613 = vunpack.c.l.b16 %v5421
  %v5614 = vunpack.c.l.b16 %v5422
  %v5615 = vunpack.c.l.b16 %v5423
  %v5616 = vunpack.c.l.b16 %v5424
  %v5617 = vunpack.c.l.b16 %v5425
  %v5618 = vunpack.c.l.b16 %v5426
  %v5619 = vunpack.c.l.b16 %v5427
  %v5620 = vunpack.c.l.b16 %v5428
  %v5621 = vunpack.c.l.b16 %v5429
  %v5622 = vunpack.c.l.b16 %v5430
  %v5623 = vunpack.c.l.b16 %v5431
  %v5624 = vunpack.c.l.b16 %v5432
  %v5625 = vunpack.c.l.b16 %v5433
  %v5626 = vunpack.c.l.b16 %v5434
  %v5627 = vunpack.c.l.b16 %v5435
  %v5628 = vunpack.c.l.b16 %v5436
  %v5629 = vunpack.c.l.b16 %v5437
  %v5630 = vunpack.c.l.b16 %v5438
  %v5631 = vunpack.c.l.b16 %v5439
  %v5632 = vunpack.c.l.b16 %v5440
  %v5633 = vunpack.c.l.b16 %v5441
  %v5634 = vunpack.c.l.b16 %v5442
  %v5635 = vunpack.c.l.b16 %v5443
  %v5636 = vunpack.c.l.b16 %v5444
  %v5637 = vunpack.c.l.b16 %v5445
  %v5638 = vunpack.c.l.b16 %v5446
  %v5639 = vunpack.c.l.b16 %v5447
  %v5640 = vunpack.c.l.b16 %v5448
  %v5641 = vpack.c.b16 %v5546, %v5545
  %v5642 = vpack.c.b16 %v5548, %v5547
  %v5643 = vpack.c.b16 %v5550, %v5549
  %v5644 = vpack.c.b16 %v5552, %v5551
  %v5645 = vpack.c.b16 %v5554, %v5553
  %v5646 = vpack.c.b16 %v5556, %v5555
  %v5647 = vpack.c.b16 %v5558, %v5557
  %v5648 = vpack.c.b16 %v5560, %v5559
  %v5649 = vpack.c.b16 %v5562, %v5561
  %v5650 = vpack.c.b16 %v5564, %v5563
  %v5651 = vpack.c.b16 %v5566, %v5565
  %v5652 = vpack.c.b16 %v5568, %v5567
  %v5653 = vpack.c.b16 %v5570, %v5569
  %v5654 = vpack.c.b16 %v5572, %v5571
  %v5655 = vpack.c.b16 %v5574, %v5573
  %v5656 = vpack.c.b16 %v5576, %v5575
  %v5657 = vpack.c.b16 %v5578, %v5577
  %v5658 = vpack.c.b16 %v5580, %v5579
  %v5659 = vpack.c.b16 %v5582, %v5581
  %v5660 = vpack.c.b16 %v5584, %v5583
  %v5661 = vpack.c.b16 %v5586, %v5585
  %v5662 = vpack.c.b16 %v5588, %v5587
  %v5663 = vpack.c.b16 %v5590, %v5589
  %v5664 = vpack.c.b16 %v5592, %v5591
  %v5665 = vpack.c.b16 %v5594, %v5593
  %v5666 = vpack.c.b16 %v5596, %v5595
  %v5667 = vpack.c.b16 %v5598, %v5597
  %v5668 = vpack.c.b16 %v5600, %v5599
  %v5669 = vpack.c.b16 %v5602, %v5601
  %v5670 = vpack.c.b16 %v5604, %v5603
  %v5671 = vpack.c.b16 %v5606, %v5605
  %v5672 = vpack.c.b16 %v5608, %v5607
  %v5673 = vpack.c.b16 %v5610, %v5609
  %v5674 = vpack.c.b16 %v5612, %v5611
  %v5675 = vpack.c.b16 %v5614, %v5613
  %v5676 = vpack.c.b16 %v5616, %v5615
  %v5677 = vpack.c.b16 %v5618, %v5617
  %v5678 = vpack.c.b16 %v5620, %v5619
  %v5679 = vpack.c.b16 %v5622, %v5621
  %v5680 = vpack.c.b16 %v5624, %v5623
  %v5681 = vpack.c.b16 %v5626, %v5625
  %v5682 = vpack.c.b16 %v5628, %v5627
  %v5683 = vpack.c.b16 %v5630, %v5629
  %v5684 = vpack.c.b16 %v5632, %v5631
  %v5685 = vpack.c.b16 %v5634, %v5633
  %v5686 = vpack.c.b16 %v5636, %v5635
  %v5687 = vpack.c.b16 %v5638, %v5637
  %v5688 = vpack.c.b16 %v5640, %v5639
  %5737 = vmatpush.bf16.msra.mxu0 %v5648
  %5738 = vmatpush.bf16.msra.mxu0 %v5647
  %5739 = vmatpush.bf16.msra.mxu0 %v5646
  %5740 = vmatpush.bf16.msra.mxu0 %v5645
  %5741 = vmatpush.bf16.msra.mxu0 %v5644
  %5742 = vmatpush.bf16.msra.mxu0 %v5643
  %5743 = vmatpush.bf16.msra.mxu0 %v5642
  %5744 = vmatpush.bf16.msra.mxu0 %v5641
  %5745 = vmatmul.bf16.gmra.mxu0 %v2257
  %v5746 = vpop.f32.mrf.mxu0
  %v5747 = vadd.f32 0.0, %v5746
  %v5748 = vpop.f32.mrf.mxu0
  %5749 = vdwg.mxu0
  %5750 = vmatpush.bf16.msra.mxu0 %v5656
  %5751 = vmatpush.bf16.msra.mxu0 %v5655
  %5752 = vmatpush.bf16.msra.mxu0 %v5654
  %5753 = vmatpush.bf16.msra.mxu0 %v5653
  %5754 = vmatpush.bf16.msra.mxu0 %v5652
  %5755 = vmatpush.bf16.msra.mxu0 %v5651
  %5756 = vmatpush.bf16.msra.mxu0 %v5650
  %5757 = vmatpush.bf16.msra.mxu0 %v5649
  %5758 = vmatmul.bf16.gmra.mxu0 %v2258
  %v5759 = vpop.f32.mrf.mxu0
  %v5760 = vadd.f32 %v5747, %v5759
  %v5761 = vpop.f32.mrf.mxu0
  %5762 = vdwg.mxu0
  %5763 = vmatpush.bf16.msra.mxu0 %v5664
  %5764 = vmatpush.bf16.msra.mxu0 %v5663
  %5765 = vmatpush.bf16.msra.mxu0 %v5662
  %5766 = vmatpush.bf16.msra.mxu0 %v5661
  %5767 = vmatpush.bf16.msra.mxu0 %v5660
  %5768 = vmatpush.bf16.msra.mxu0 %v5659
  %5769 = vmatpush.bf16.msra.mxu0 %v5658
  %5770 = vmatpush.bf16.msra.mxu0 %v5657
  %5771 = vmatmul.bf16.gmra.mxu0 %v2259
  %v5772 = vpop.f32.mrf.mxu0
  %v5773 = vadd.f32 %v5760, %v5772
  %v5774 = vpop.f32.mrf.mxu0
  %5775 = vdwg.mxu0
  %5776 = vmatpush.bf16.msra.mxu0 %v5672
  %5777 = vmatpush.bf16.msra.mxu0 %v5671
  %5778 = vmatpush.bf16.msra.mxu0 %v5670
  %5779 = vmatpush.bf16.msra.mxu0 %v5669
  %5780 = vmatpush.bf16.msra.mxu0 %v5668
  %5781 = vmatpush.bf16.msra.mxu0 %v5667
  %5782 = vmatpush.bf16.msra.mxu0 %v5666
  %5783 = vmatpush.bf16.msra.mxu0 %v5665
  %5784 = vmatmul.bf16.gmra.mxu0 %v2260
  %v5785 = vpop.f32.mrf.mxu0
  %v5786 = vadd.f32 %v5773, %v5785
  %v5787 = vpop.f32.mrf.mxu0
  %5788 = vdwg.mxu0
  %5789 = vmatpush.bf16.msra.mxu0 %v5680
  %5790 = vmatpush.bf16.msra.mxu0 %v5679
  %5791 = vmatpush.bf16.msra.mxu0 %v5678
  %5792 = vmatpush.bf16.msra.mxu0 %v5677
  %5793 = vmatpush.bf16.msra.mxu0 %v5676
  %5794 = vmatpush.bf16.msra.mxu0 %v5675
  %5795 = vmatpush.bf16.msra.mxu0 %v5674
  %5796 = vmatpush.bf16.msra.mxu0 %v5673
  %5797 = vmatmul.bf16.gmra.mxu0 %v2261
  %v5798 = vpop.f32.mrf.mxu0
  %v5799 = vadd.f32 %v5786, %v5798
  %v5800 = vpop.f32.mrf.mxu0
  %5801 = vdwg.mxu0
  %5802 = vmatpush.bf16.msra.mxu0 %v5688
  %5803 = vmatpush.bf16.msra.mxu0 %v5687
  %5804 = vmatpush.bf16.msra.mxu0 %v5686
  %5805 = vmatpush.bf16.msra.mxu0 %v5685
  %5806 = vmatpush.bf16.msra.mxu0 %v5684
  %5807 = vmatpush.bf16.msra.mxu0 %v5683
  %5808 = vmatpush.bf16.msra.mxu0 %v5682
  %5809 = vmatpush.bf16.msra.mxu0 %v5681
  %5810 = vmatmul.bf16.gmra.mxu0 %v2262
  %v5811 = vpop.f32.mrf.mxu0
  %v5812 = vadd.f32 %v5799, %v5811
  %v5813 = vpop.f32.mrf.mxu0
  %5814 = vdwg.mxu0
  %v5943 = vunpack.c.l.b16 %v5225
  %v5944 = vunpack.c.l.b16 %v5226
  %v5945 = vunpack.c.l.b16 %v5227
  %v5946 = vunpack.c.l.b16 %v5228
  %v5947 = vunpack.c.l.b16 %v5229
  %v5948 = vunpack.c.l.b16 %v5230
  %v5949 = vunpack.c.l.b16 %v5231
  %v5950 = vunpack.c.l.b16 %v5232
  %v5951 = vunpack.c.l.b16 %v5233
  %v5952 = vunpack.c.l.b16 %v5234
  %v5953 = vunpack.c.l.b16 %v5235
  %v5954 = vunpack.c.l.b16 %v5236
  %v5955 = vunpack.c.l.b16 %v5237
  %v5956 = vunpack.c.l.b16 %v5238
  %v5957 = vunpack.c.l.b16 %v5239
  %v5958 = vunpack.c.l.b16 %v5240
  %v5959 = vunpack.c.l.b16 %v5241
  %v5960 = vunpack.c.l.b16 %v5242
  %v5961 = vunpack.c.l.b16 %v5243
  %v5962 = vunpack.c.l.b16 %v5244
  %v5963 = vunpack.c.l.b16 %v5245
  %v5964 = vunpack.c.l.b16 %v5246
  %v5965 = vunpack.c.l.b16 %v5247
  %v5966 = vunpack.c.l.b16 %v5248
  %v5967 = vunpack.c.l.b16 %v5249
  %v5968 = vunpack.c.l.b16 %v5250
  %v5969 = vunpack.c.l.b16 %v5251
  %v5970 = vunpack.c.l.b16 %v5252
  %v5971 = vunpack.c.l.b16 %v5253
  %v5972 = vunpack.c.l.b16 %v5254
  %v5973 = vunpack.c.l.b16 %v5255
  %v5974 = vunpack.c.l.b16 %v5256
  %v5975 = vunpack.c.l.b16 %v5257
  %v5976 = vunpack.c.l.b16 %v5258
  %v5977 = vunpack.c.l.b16 %v5259
  %v5978 = vunpack.c.l.b16 %v5260
  %v5979 = vunpack.c.l.b16 %v5261
  %v5980 = vunpack.c.l.b16 %v5262
  %v5981 = vunpack.c.l.b16 %v5263
  %v5982 = vunpack.c.l.b16 %v5264
  %v5983 = vunpack.c.l.b16 %v5265
  %v5984 = vunpack.c.l.b16 %v5266
  %v5985 = vunpack.c.l.b16 %v5267
  %v5986 = vunpack.c.l.b16 %v5268
  %v5987 = vunpack.c.l.b16 %v5269
  %v5988 = vunpack.c.l.b16 %v5270
  %v5989 = vunpack.c.l.b16 %v5271
  %v5990 = vunpack.c.l.b16 %v5272
  %v5991 = vunpack.c.l.b16 %v5273
  %v5992 = vunpack.c.l.b16 %v5274
  %v5993 = vunpack.c.l.b16 %v5275
  %v5994 = vunpack.c.l.b16 %v5276
  %v5995 = vunpack.c.l.b16 %v5277
  %v5996 = vunpack.c.l.b16 %v5278
  %v5997 = vunpack.c.l.b16 %v5279
  %v5998 = vunpack.c.l.b16 %v5280
  %v5999 = vunpack.c.l.b16 %v5281
  %v6000 = vunpack.c.l.b16 %v5282
  %v6001 = vunpack.c.l.b16 %v5283
  %v6002 = vunpack.c.l.b16 %v5284
  %v6003 = vunpack.c.l.b16 %v5285
  %v6004 = vunpack.c.l.b16 %v5286
  %v6005 = vunpack.c.l.b16 %v5287
  %v6006 = vunpack.c.l.b16 %v5288
  %v6007 = vunpack.c.l.b16 %v5289
  %v6008 = vunpack.c.l.b16 %v5290
  %v6009 = vunpack.c.l.b16 %v5291
  %v6010 = vunpack.c.l.b16 %v5292
  %v6011 = vunpack.c.l.b16 %v5293
  %v6012 = vunpack.c.l.b16 %v5294
  %v6013 = vunpack.c.l.b16 %v5295
  %v6014 = vunpack.c.l.b16 %v5296
  %v6015 = vunpack.c.l.b16 %v5297
  %v6016 = vunpack.c.l.b16 %v5298
  %v6017 = vunpack.c.l.b16 %v5299
  %v6018 = vunpack.c.l.b16 %v5300
  %v6019 = vunpack.c.l.b16 %v5301
  %v6020 = vunpack.c.l.b16 %v5302
  %v6021 = vunpack.c.l.b16 %v5303
  %v6022 = vunpack.c.l.b16 %v5304
  %v6023 = vunpack.c.l.b16 %v5305
  %v6024 = vunpack.c.l.b16 %v5306
  %v6025 = vunpack.c.l.b16 %v5307
  %v6026 = vunpack.c.l.b16 %v5308
  %v6027 = vunpack.c.l.b16 %v5309
  %v6028 = vunpack.c.l.b16 %v5310
  %v6029 = vunpack.c.l.b16 %v5311
  %v6030 = vunpack.c.l.b16 %v5312
  %v6031 = vunpack.c.l.b16 %v5313
  %v6032 = vunpack.c.l.b16 %v5314
  %v6033 = vunpack.c.l.b16 %v5315
  %v6034 = vunpack.c.l.b16 %v5316
  %v6035 = vunpack.c.l.b16 %v5317
  %v6036 = vunpack.c.l.b16 %v5318
  %v6037 = vunpack.c.l.b16 %v5319
  %v6038 = vunpack.c.l.b16 %v5320
  %v6039 = vunpack.c.l.b16 %v5321
  %v6040 = vunpack.c.l.b16 %v5322
  %v6041 = vunpack.c.l.b16 %v5323
  %v6042 = vunpack.c.l.b16 %v5324
  %v6043 = vunpack.c.l.b16 %v5325
  %v6044 = vunpack.c.l.b16 %v5326
  %v6045 = vunpack.c.l.b16 %v5327
  %v6046 = vunpack.c.l.b16 %v5328
  %v6047 = vunpack.c.l.b16 %v5329
  %v6048 = vunpack.c.l.b16 %v5330
  %v6049 = vunpack.c.l.b16 %v5331
  %v6050 = vunpack.c.l.b16 %v5332
  %v6051 = vunpack.c.l.b16 %v5333
  %v6052 = vunpack.c.l.b16 %v5334
  %v6053 = vunpack.c.l.b16 %v5335
  %v6054 = vunpack.c.l.b16 %v5336
  %v6055 = vunpack.c.l.b16 %v5337
  %v6056 = vunpack.c.l.b16 %v5338
  %v6057 = vunpack.c.l.b16 %v5339
  %v6058 = vunpack.c.l.b16 %v5340
  %v6059 = vunpack.c.l.b16 %v5341
  %v6060 = vunpack.c.l.b16 %v5342
  %v6061 = vunpack.c.l.b16 %v5343
  %v6062 = vunpack.c.l.b16 %v5344
  %v6063 = vunpack.c.l.b16 %v5345
  %v6064 = vunpack.c.l.b16 %v5346
  %v6065 = vunpack.c.l.b16 %v5347
  %v6066 = vunpack.c.l.b16 %v5348
  %v6067 = vunpack.c.l.b16 %v5349
  %v6068 = vunpack.c.l.b16 %v5350
  %v6069 = vunpack.c.l.b16 %v5351
  %v6070 = vunpack.c.l.b16 %v5352
  %v6071 = vpack.c.b16 %v5944, %v5943
  %v6072 = vpack.c.b16 %v5946, %v5945
  %v6073 = vpack.c.b16 %v5948, %v5947
  %v6074 = vpack.c.b16 %v5950, %v5949
  %v6075 = vpack.c.b16 %v5952, %v5951
  %v6076 = vpack.c.b16 %v5954, %v5953
  %v6077 = vpack.c.b16 %v5956, %v5955
  %v6078 = vpack.c.b16 %v5958, %v5957
  %v6079 = vpack.c.b16 %v5960, %v5959
  %v6080 = vpack.c.b16 %v5962, %v5961
  %v6081 = vpack.c.b16 %v5964, %v5963
  %v6082 = vpack.c.b16 %v5966, %v5965
  %v6083 = vpack.c.b16 %v5968, %v5967
  %v6084 = vpack.c.b16 %v5970, %v5969
  %v6085 = vpack.c.b16 %v5972, %v5971
  %v6086 = vpack.c.b16 %v5974, %v5973
  %v6087 = vpack.c.b16 %v5976, %v5975
  %v6088 = vpack.c.b16 %v5978, %v5977
  %v6089 = vpack.c.b16 %v5980, %v5979
  %v6090 = vpack.c.b16 %v5982, %v5981
  %v6091 = vpack.c.b16 %v5984, %v5983
  %v6092 = vpack.c.b16 %v5986, %v5985
  %v6093 = vpack.c.b16 %v5988, %v5987
  %v6094 = vpack.c.b16 %v5990, %v5989
  %v6095 = vpack.c.b16 %v5992, %v5991
  %v6096 = vpack.c.b16 %v5994, %v5993
  %v6097 = vpack.c.b16 %v5996, %v5995
  %v6098 = vpack.c.b16 %v5998, %v5997
  %v6099 = vpack.c.b16 %v6000, %v5999
  %v6100 = vpack.c.b16 %v6002, %v6001
  %v6101 = vpack.c.b16 %v6004, %v6003
  %v6102 = vpack.c.b16 %v6006, %v6005
  %v6103 = vpack.c.b16 %v6008, %v6007
  %v6104 = vpack.c.b16 %v6010, %v6009
  %v6105 = vpack.c.b16 %v6012, %v6011
  %v6106 = vpack.c.b16 %v6014, %v6013
  %v6107 = vpack.c.b16 %v6016, %v6015
  %v6108 = vpack.c.b16 %v6018, %v6017
  %v6109 = vpack.c.b16 %v6020, %v6019
  %v6110 = vpack.c.b16 %v6022, %v6021
  %v6111 = vpack.c.b16 %v6024, %v6023
  %v6112 = vpack.c.b16 %v6026, %v6025
  %v6113 = vpack.c.b16 %v6028, %v6027
  %v6114 = vpack.c.b16 %v6030, %v6029
  %v6115 = vpack.c.b16 %v6032, %v6031
  %v6116 = vpack.c.b16 %v6034, %v6033
  %v6117 = vpack.c.b16 %v6036, %v6035
  %v6118 = vpack.c.b16 %v6038, %v6037
  %v6119 = vpack.c.b16 %v6040, %v6039
  %v6120 = vpack.c.b16 %v6042, %v6041
  %v6121 = vpack.c.b16 %v6044, %v6043
  %v6122 = vpack.c.b16 %v6046, %v6045
  %v6123 = vpack.c.b16 %v6048, %v6047
  %v6124 = vpack.c.b16 %v6050, %v6049
  %v6125 = vpack.c.b16 %v6052, %v6051
  %v6126 = vpack.c.b16 %v6054, %v6053
  %v6127 = vpack.c.b16 %v6056, %v6055
  %v6128 = vpack.c.b16 %v6058, %v6057
  %v6129 = vpack.c.b16 %v6060, %v6059
  %v6130 = vpack.c.b16 %v6062, %v6061
  %v6131 = vpack.c.b16 %v6064, %v6063
  %v6132 = vpack.c.b16 %v6066, %v6065
  %v6133 = vpack.c.b16 %v6068, %v6067
  %v6134 = vpack.c.b16 %v6070, %v6069
  %6199 = vmatpush.bf16.msra.mxu0 %v6078
  %6200 = vmatpush.bf16.msra.mxu0 %v6077
  %6201 = vmatpush.bf16.msra.mxu0 %v6076
  %6202 = vmatpush.bf16.msra.mxu0 %v6075
  %6203 = vmatpush.bf16.msra.mxu0 %v6074
  %6204 = vmatpush.bf16.msra.mxu0 %v6073
  %6205 = vmatpush.bf16.msra.mxu0 %v6072
  %6206 = vmatpush.bf16.msra.mxu0 %v6071
  %6207 = vmatmul.bf16.gmra.mxu0 %v5217
  %v6208 = vpop.f32.mrf.mxu0
  %v6209 = vadd.f32 %v5812, %v6208
  %v6210 = vpop.f32.mrf.mxu0
  %6211 = vdwg.mxu0
  %6212 = vmatpush.bf16.msra.mxu0 %v6086
  %6213 = vmatpush.bf16.msra.mxu0 %v6085
  %6214 = vmatpush.bf16.msra.mxu0 %v6084
  %6215 = vmatpush.bf16.msra.mxu0 %v6083
  %6216 = vmatpush.bf16.msra.mxu0 %v6082
  %6217 = vmatpush.bf16.msra.mxu0 %v6081
  %6218 = vmatpush.bf16.msra.mxu0 %v6080
  %6219 = vmatpush.bf16.msra.mxu0 %v6079
  %6220 = vmatmul.bf16.gmra.mxu0 %v5218
  %v6221 = vpop.f32.mrf.mxu0
  %v6222 = vadd.f32 %v6209, %v6221
  %v6223 = vpop.f32.mrf.mxu0
  %6224 = vdwg.mxu0
  %6225 = vmatpush.bf16.msra.mxu0 %v6094
  %6226 = vmatpush.bf16.msra.mxu0 %v6093
  %6227 = vmatpush.bf16.msra.mxu0 %v6092
  %6228 = vmatpush.bf16.msra.mxu0 %v6091
  %6229 = vmatpush.bf16.msra.mxu0 %v6090
  %6230 = vmatpush.bf16.msra.mxu0 %v6089
  %6231 = vmatpush.bf16.msra.mxu0 %v6088
  %6232 = vmatpush.bf16.msra.mxu0 %v6087
  %6233 = vmatmul.bf16.gmra.mxu0 %v5219
  %v6234 = vpop.f32.mrf.mxu0
  %v6235 = vadd.f32 %v6222, %v6234
  %v6236 = vpop.f32.mrf.mxu0
  %6237 = vdwg.mxu0
  %6238 = vmatpush.bf16.msra.mxu0 %v6102
  %6239 = vmatpush.bf16.msra.mxu0 %v6101
  %6240 = vmatpush.bf16.msra.mxu0 %v6100
  %6241 = vmatpush.bf16.msra.mxu0 %v6099
  %6242 = vmatpush.bf16.msra.mxu0 %v6098
  %6243 = vmatpush.bf16.msra.mxu0 %v6097
  %6244 = vmatpush.bf16.msra.mxu0 %v6096
  %6245 = vmatpush.bf16.msra.mxu0 %v6095
  %6246 = vmatmul.bf16.gmra.mxu0 %v5220
  %v6247 = vpop.f32.mrf.mxu0
  %v6248 = vadd.f32 %v6235, %v6247
  %v6249 = vpop.f32.mrf.mxu0
  %6250 = vdwg.mxu0
  %6251 = vmatpush.bf16.msra.mxu0 %v6110
  %6252 = vmatpush.bf16.msra.mxu0 %v6109
  %6253 = vmatpush.bf16.msra.mxu0 %v6108
  %6254 = vmatpush.bf16.msra.mxu0 %v6107
  %6255 = vmatpush.bf16.msra.mxu0 %v6106
  %6256 = vmatpush.bf16.msra.mxu0 %v6105
  %6257 = vmatpush.bf16.msra.mxu0 %v6104
  %6258 = vmatpush.bf16.msra.mxu0 %v6103
  %6259 = vmatmul.bf16.gmra.mxu0 %v5221
  %v6260 = vpop.f32.mrf.mxu0
  %v6261 = vadd.f32 %v6248, %v6260
  %v6262 = vpop.f32.mrf.mxu0
  %6263 = vdwg.mxu0
  %6264 = vmatpush.bf16.msra.mxu0 %v6118
  %6265 = vmatpush.bf16.msra.mxu0 %v6117
  %6266 = vmatpush.bf16.msra.mxu0 %v6116
  %6267 = vmatpush.bf16.msra.mxu0 %v6115
  %6268 = vmatpush.bf16.msra.mxu0 %v6114
  %6269 = vmatpush.bf16.msra.mxu0 %v6113
  %6270 = vmatpush.bf16.msra.mxu0 %v6112
  %6271 = vmatpush.bf16.msra.mxu0 %v6111
  %6272 = vmatmul.bf16.gmra.mxu0 %v5222
  %v6273 = vpop.f32.mrf.mxu0
  %v6274 = vadd.f32 %v6261, %v6273
  %v6275 = vpop.f32.mrf.mxu0
  %6276 = vdwg.mxu0
  %6277 = vmatpush.bf16.msra.mxu0 %v6126
  %6278 = vmatpush.bf16.msra.mxu0 %v6125
  %6279 = vmatpush.bf16.msra.mxu0 %v6124
  %6280 = vmatpush.bf16.msra.mxu0 %v6123
  %6281 = vmatpush.bf16.msra.mxu0 %v6122
  %6282 = vmatpush.bf16.msra.mxu0 %v6121
  %6283 = vmatpush.bf16.msra.mxu0 %v6120
  %6284 = vmatpush.bf16.msra.mxu0 %v6119
  %6285 = vmatmul.bf16.gmra.mxu0 %v5223
  %v6286 = vpop.f32.mrf.mxu0
  %v6287 = vadd.f32 %v6274, %v6286
  %v6288 = vpop.f32.mrf.mxu0
  %6289 = vdwg.mxu0
  %6290 = vmatpush.bf16.msra.mxu0 %v6134
  %6291 = vmatpush.bf16.msra.mxu0 %v6133
  %6292 = vmatpush.bf16.msra.mxu0 %v6132
  %6293 = vmatpush.bf16.msra.mxu0 %v6131
  %6294 = vmatpush.bf16.msra.mxu0 %v6130
  %6295 = vmatpush.bf16.msra.mxu0 %v6129
  %6296 = vmatpush.bf16.msra.mxu0 %v6128
  %6297 = vmatpush.bf16.msra.mxu0 %v6127
  %6298 = vmatmul.bf16.gmra.mxu0 %v5224
  %v6299 = vpop.f32.mrf.mxu0
  %v6300 = vadd.f32 %v6287, %v6299
  %v6301 = vpop.f32.mrf.mxu0
  %6302 = vdwg.mxu0
  %v6303 = vld [vmem:[%s7] sm:$0x1]
  %v6305 = vperm.slane %v6303, 0
  %v6307 = vadd.f32 %v6300, %v6305
  %6308 = vst [vmem:[%s8] sm:$0xff] %v6307
  // Predicated region
  $region34: #{lirr_forward.1} parent=0 // pred_check
    _
  $region35: #{lirr_forward.1} parent=0 // pred_check_branch
    %6310 = sbr.rel (0) target = $region37
  $region36: #{lirr_forward.1} parent=0 // pred_region
    _
  $region37: #{lirr_forward.1} parent=0 // pred_fallthru
    _
  // Predicated region
  $region38: #{lirr_forward.1} parent=0 // pred_check
    _
  $region39: #{lirr_forward.1} parent=0 // pred_check_branch
    %6312 = sbr.rel (0) target = $region41
  $region40: #{lirr_forward.1} parent=0 // pred_region
    _
  $region41: #{lirr_forward.1} parent=0 // pred_fallthru
    _

</llo_original>
